<compile_context>
chip_gen: v6e
topology: v6e:2x2x1
jax: 0.10.0
libtpu: 0.0.40
codegen_flags: <defaults>
</compile_context>

<pallas_src>
import functools

import jax
import jax.numpy as jnp
from jax.experimental import pallas as pl
from jax.experimental.pallas import tpu as pltpu


LANE = 128
_VMEM_LIMIT = 48 * 1024 * 1024      # scoped-VMEM request; < v7x's 64 MiB physical


def _gate_act_dtype():
    """bf16 gate activations where the VPU/EUP supports bf16 (v6e/v7x); f32 on v5-."""
    try:
        kind = jax.devices()[0].device_kind.lower()
    except Exception:
        return jnp.float32
    if any(v in kind for v in ("v2", "v3", "v4", "v5")):
        return jnp.float32
    return jnp.bfloat16


def _pick_time_chunk(T, Bp, In, H):
    """Largest time chunk dividing T (kept to >=2 chunks when possible so the
    next chunk's X DMA overlaps the serial recurrence) whose working set —
    double-buffered X/Y chunks, f32 gate scratch and resident weights for both
    directions — fits the VMEM budget."""
    G = 4 * H
    resident = 2 * (2 * In * G * 2 + 2 * H * G * 2 + 2 * G * 4)   # dbl-buffered weights
    resident += 4 * Bp * H * 4 + Bp * 4                           # carries + lens
    budget = int(_VMEM_LIMIT * 0.75)
    cap = max(1, T // 2)              # >=2 chunks -> DMA/compute overlap
    best = 1
    for tc in range(1, cap + 1):
        if T % tc:
            continue
        streamed = 2 * 2 * tc * Bp * (In + H) * 2    # x + y chunks, 2 dirs, 2 buffers
        scratch = 2 * tc * Bp * G * 4                # f32 gate scratch per direction
        if resident + streamed + scratch <= budget:
            best = tc
    return best


def _time_tile_rows(T, Bp, bytes_per_row):
    """Largest time tile dividing T for the row-tiled matmul kernels."""
    budget = _VMEM_LIMIT // 3
    best = 1
    for tb in range(1, T + 1):
        cost = 2 * tb * Bp * bytes_per_row           # double-buffered
        if T % tb == 0 and cost <= max(budget, 2 * Bp * bytes_per_row):
            best = tb
    return best


# ----------------------------------------------------------------------------
# Kernel 1: fused (input projection + bidirectional LSTM recurrence),
# time-chunked with carried (h, c) state, both directions interleaved.
# ----------------------------------------------------------------------------
def _bilstm_fused_kernel(xf_ref, xb_ref, len_ref, wih_ref, b_ref, whh_ref,
                         yf_ref, yb_ref,
                         gf_ref, gb_ref, hf_s, cf_s, hb_s, cb_s, *, act_dtype):
    c_idx = pl.program_id(0)
    n_chunks = pl.num_programs(0)
    TC, Bp, In = xf_ref.shape
    H = whh_ref.shape[1]

    @pl.when(c_idx == 0)
    def _():
        hf_s[...] = jnp.zeros_like(hf_s)
        cf_s[...] = jnp.zeros_like(cf_s)
        hb_s[...] = jnp.zeros_like(hb_s)
        cb_s[...] = jnp.zeros_like(cb_s)

    # Per-chunk input projection (carry-independent) — fused here so the
    # (2, M, 4H) gate tensor never round-trips through HBM.
    xf = xf_ref[...].reshape(TC * Bp, In)
    xb = xb_ref[...].reshape(TC * Bp, In)
    gf_ref[...] = (jnp.dot(xf, wih_ref[0], preferred_element_type=jnp.float32)
                   + b_ref[0]).reshape(TC, Bp, 4 * H)
    gb_ref[...] = (jnp.dot(xb, wih_ref[1], preferred_element_type=jnp.float32)
                   + b_ref[1]).reshape(TC, Bp, 4 * H)

    w_f = whh_ref[0]                       # (H, 4H) bf16, resident
    w_b = whh_ref[1]
    lens = len_ref[...]                    # (Bp, 1) int32
    t0_f = c_idx * TC                      # global time offset, forward chunk
    t0_b = (n_chunks - 1 - c_idx) * TC     # global time offset, backward chunk

    def cell(g_pre, h, c, w):
        g = g_pre + jnp.dot(h.astype(w.dtype), w, preferred_element_type=jnp.float32)
        ga = g.astype(act_dtype)           # bf16 EUP on v6e/v7x, f32 on v5e
        i_g = jax.nn.sigmoid(ga[:, 0:H]).astype(jnp.float32)
        f_g = jax.nn.sigmoid(ga[:, H:2 * H]).astype(jnp.float32)
        g_g = jnp.tanh(ga[:, 2 * H:3 * H]).astype(jnp.float32)
        o_g = jax.nn.sigmoid(ga[:, 3 * H:4 * H]).astype(jnp.float32)
        c_new = f_g * c + i_g * g_g
        h_new = o_g * jnp.tanh(c_new.astype(act_dtype)).astype(jnp.float32)
        return h_new, c_new

    def step(s, carry):
        hf, cf, hb, cb = carry
        sb = TC - 1 - s                                  # in-chunk reversed walk
        mf = (t0_f + s) < lens                           # pack_padded_sequence mask
        mb = (t0_b + sb) < lens
        hf_n, cf_n = cell(gf_ref[s], hf, cf, w_f)        # forward chain
        hb_n, cb_n = cell(gb_ref[sb], hb, cb, w_b)       # backward chain (independent)
        hf = jnp.where(mf, hf_n, hf)
        cf = jnp.where(mf, cf_n, cf)
        hb = jnp.where(mb, hb_n, hb)
        cb = jnp.where(mb, cb_n, cb)
        yf_ref[s] = jnp.where(mf, hf, 0.0).astype(yf_ref.dtype)
        yb_ref[sb] = jnp.where(mb, hb, 0.0).astype(yb_ref.dtype)
        return hf, cf, hb, cb

    carry0 = (hf_s[...], cf_s[...], hb_s[...], cb_s[...])
    hf, cf, hb, cb = jax.lax.fori_loop(0, TC, step, carry0, unroll=(TC <= 8))
    hf_s[...] = hf
    cf_s[...] = cf
    hb_s[...] = hb
    cb_s[...] = cb


def _bilstm_layer(x3d, lens, layer):
    """x3d: (T, Bp, In) bf16 time-major; lens: (Bp, 1) int32.
    Returns (y_fwd, y_bwd), each (T, Bp, H) bf16."""
    T, Bp, In = x3d.shape
    H = layer["w_hh"].shape[1]
    G = 4 * H
    TC = _pick_time_chunk(T, Bp, In, H)
    n_chunks = T // TC
    kernel = functools.partial(_bilstm_fused_kernel, act_dtype=_gate_act_dtype())
    y_f, y_b = pl.pallas_call(
        kernel,
        out_shape=(jax.ShapeDtypeStruct((T, Bp, H), jnp.bfloat16),
                   jax.ShapeDtypeStruct((T, Bp, H), jnp.bfloat16)),
        grid=(n_chunks,),
        in_specs=[
            pl.BlockSpec((TC, Bp, In), lambda c: (c, 0, 0)),                  # x, fwd
            pl.BlockSpec((TC, Bp, In), lambda c: (n_chunks - 1 - c, 0, 0)),   # x, bwd
            pl.BlockSpec((Bp, 1), lambda c: (0, 0)),                          # lengths
            pl.BlockSpec((2, In, G), lambda c: (0, 0, 0)),                    # W_ih
            pl.BlockSpec((2, 1, G), lambda c: (0, 0, 0)),                     # bias
            pl.BlockSpec((2, H, G), lambda c: (0, 0, 0)),                     # W_hh
        ],
        out_specs=(pl.BlockSpec((TC, Bp, H), lambda c: (c, 0, 0)),
                   pl.BlockSpec((TC, Bp, H), lambda c: (n_chunks - 1 - c, 0, 0))),
        scratch_shapes=[
            pltpu.VMEM((TC, Bp, G), jnp.float32),    # fwd gate chunk
            pltpu.VMEM((TC, Bp, G), jnp.float32),    # bwd gate chunk
            pltpu.VMEM((Bp, H), jnp.float32),        # h fwd carry
            pltpu.VMEM((Bp, H), jnp.float32),        # c fwd carry
            pltpu.VMEM((Bp, H), jnp.float32),        # h bwd carry
            pltpu.VMEM((Bp, H), jnp.float32),        # c bwd carry
        ],
        compiler_params=pltpu.CompilerParams(
            dimension_semantics=("arbitrary",),      # serial carry over time chunks
            vmem_limit_bytes=_VMEM_LIMIT),
    )(x3d, x3d, lens, layer["w_ih"], layer["b"], layer["w_hh"])
    return y_f, y_b


def bilstm(x3d, lens, layers):
    hf = hb = None
    for li, layer in enumerate(layers):
        if li > 0:
            # TODO(synk): for stacked layers fuse this concat into the next
            # layer's in-kernel projection via split weight rows.
            x3d = jnp.concatenate([hf, hb], axis=-1)
        hf, hb = _bilstm_layer(x3d, lens, layer)
    return hf, hb


# ----------------------------------------------------------------------------
# Kernel 2: fused  cat(h_fwd, h_bwd, slot) @ W_linear
# (concat fused via split weight rows; slot term precomputed per batch row and
#  broadcast over time inside the kernel — no (M, E) slot materialization)
# ----------------------------------------------------------------------------
def _linear_slot_kernel(hf_ref, hb_ref, slot_ref, wf_ref, wb_ref, o_ref):
    TB, Bp, H = hf_ref.shape
    L = wf_ref.shape[1]
    hf = hf_ref[...].reshape(TB * Bp, H)
    hb = hb_ref[...].reshape(TB * Bp, H)
    acc = jnp.dot(hf, wf_ref[...], preferred_element_type=jnp.float32)
    acc = acc + jnp.dot(hb, wb_ref[...], preferred_element_type=jnp.float32)
    acc = acc.reshape(TB, Bp, L) + slot_ref[...]       # broadcast slot over time
    o_ref[...] = acc.astype(o_ref.dtype)


def linear_slot(hf, hb, slot_proj, wf, wb):
    T, Bp, H = hf.shape
    L = wf.shape[1]
    TB = _time_tile_rows(T, Bp, bytes_per_row=2 * H * 2 + L * 2)
    return pl.pallas_call(
        _linear_slot_kernel,
        out_shape=jax.ShapeDtypeStruct((T, Bp, L), jnp.bfloat16),
        grid=(T // TB,),
        in_specs=[pl.BlockSpec((TB, Bp, H), lambda m: (m, 0, 0)),
                  pl.BlockSpec((TB, Bp, H), lambda m: (m, 0, 0)),
                  pl.BlockSpec((Bp, L), lambda m: (0, 0)),
                  pl.BlockSpec((H, L), lambda m: (0, 0)),
                  pl.BlockSpec((H, L), lambda m: (0, 0))],
        out_specs=pl.BlockSpec((TB, Bp, L), lambda m: (m, 0, 0)),
        compiler_params=pltpu.CompilerParams(
            dimension_semantics=("parallel",),
            vmem_limit_bytes=_VMEM_LIMIT),
    )(hf, hb, slot_proj, wf, wb)


# ----------------------------------------------------------------------------
# Kernel 3: fused  cat(h_fwd, h_bwd) @ W_fc + softmax   (lane-dense 128 output)
# ----------------------------------------------------------------------------
def _fc_softmax_kernel(hf_ref, hb_ref, wf_ref, wb_ref, o_ref, *, n_valid):
    TB, Bp, H = hf_ref.shape
    N = wf_ref.shape[1]
    hf = hf_ref[...].reshape(TB * Bp, H)
    hb = hb_ref[...].reshape(TB * Bp, H)
    logits = jnp.dot(hf, wf_ref[...], preferred_element_type=jnp.float32)
    logits = logits + jnp.dot(hb, wb_ref[...], preferred_element_type=jnp.float32)
    col = jax.lax.broadcasted_iota(jnp.int32, logits.shape, 1)
    logits = jnp.where(col < n_valid, logits, -1e30)   # mask padded label lanes
    m = jnp.max(logits, axis=-1, keepdims=True)
    e = jnp.exp(logits - m)
    p = e * pl.reciprocal(jnp.sum(e, axis=-1, keepdims=True), approx=True)
    o_ref[...] = p.reshape(TB, Bp, N)


def fc_softmax(hf, hb, wf_pad, wb_pad, n_valid):
    T, Bp, H = hf.shape
    N = wf_pad.shape[1]                    # padded to a multiple of 128 lanes
    TB = _time_tile_rows(T, Bp, bytes_per_row=2 * H * 2 + N * 4)
    return pl.pallas_call(
        functools.partial(_fc_softmax_kernel, n_valid=n_valid),
        out_shape=jax.ShapeDtypeStruct((T, Bp, N), jnp.float32),
        grid=(T // TB,),
        in_specs=[pl.BlockSpec((TB, Bp, H), lambda m: (m, 0, 0)),
                  pl.BlockSpec((TB, Bp, H), lambda m: (m, 0, 0)),
                  pl.BlockSpec((H, N), lambda m: (0, 0)),
                  pl.BlockSpec((H, N), lambda m: (0, 0))],
        out_specs=pl.BlockSpec((TB, Bp, N), lambda m: (m, 0, 0)),
        compiler_params=pltpu.CompilerParams(
            dimension_semantics=("parallel",),
            vmem_limit_bytes=_VMEM_LIMIT),
    )(hf, hb, wf_pad, wb_pad)


# ----------------------------------------------------------------------------
# CT forward (glue in JAX, hot paths in Pallas)
# ----------------------------------------------------------------------------
def ct_forward(params, inputX, inputLen, inputS, embedding):
    B, T = inputX.shape
    Bp = ((B + 7) // 8) * 8                 # pad batch to a sublane multiple

    embX = embedding[inputX]                # (B, T, E) f32
    embS = embedding[inputS]                # (B, S, E) f32

    # time-major (T, Bp, E), batch padded with zeros (matches torch transpose(0,1))
    x3d = jnp.transpose(embX, (1, 0, 2))
    x3d = jnp.pad(x3d, ((0, 0), (0, Bp - B), (0, 0))).astype(jnp.bfloat16)

    # sequence lengths (padded batch rows get length 0 -> fully masked)
    lens = jnp.pad(inputLen.astype(jnp.int32), (0, Bp - B)).reshape(Bp, 1)

    # slot path: mean slot embedding projected once through the slot rows of the
    # linear weight (tiny, off the hot path); broadcast-added inside kernel 2.
    slot_mean = jnp.mean(embS, axis=1)                              # (B, E)
    slot_mean = jnp.pad(slot_mean, ((0, Bp - B), (0, 0)))           # (Bp, E)
    slot_proj = slot_mean @ params["lin_ws"]                        # (Bp, L) f32

    # biLSTM_1
    hf1, hb1 = bilstm(x3d, lens, params["lstm1"])                   # (T, Bp, H1) x2

    # linear(cat(outputH, slot)), concat fused via split weight rows
    lin = linear_slot(hf1, hb1, slot_proj,
                      params["lin_wf"], params["lin_wb"])           # (T, Bp, L)

    # biLSTM_2
    hf2, hb2 = bilstm(lin, lens, params["lstm2"])                   # (T, Bp, H2) x2

    # fc + softmax over the 3 BIO labels (lane-padded to 128 inside the kernel)
    probs = fc_softmax(hf2, hb2, params["fc_wf"], params["fc_wb"], n_valid=3)
    return jnp.transpose(probs[:, :B, :3], (1, 0, 2))               # (B, T, 3)


# ----------------------------------------------------------------------------
# Deterministic parameter init (PyTorch-style uniform(-1/sqrt(H), 1/sqrt(H)))
# ----------------------------------------------------------------------------
def init_bilstm_params(key, input_size, hidden, num_layers):
    bound = 1.0 / (hidden ** 0.5)
    layers = []
    for l in range(num_layers):
        in_size = input_size if l == 0 else 2 * hidden
        key, k1, k2, k3, k4 = jax.random.split(key, 5)
        # packed gate order (i, f, g, o) along the 4H axis, [fwd, bwd] leading
        w_ih = jax.random.uniform(k1, (2, in_size, 4 * hidden), jnp.float32, -bound, bound)
        w_hh = jax.random.uniform(k2, (2, hidden, 4 * hidden), jnp.float32, -bound, bound)
        b_ih = jax.random.uniform(k3, (2, 1, 4 * hidden), jnp.float32, -bound, bound)
        b_hh = jax.random.uniform(k4, (2, 1, 4 * hidden), jnp.float32, -bound, bound)
        layers.append({"w_ih": w_ih.astype(jnp.bfloat16),
                       "w_hh": w_hh.astype(jnp.bfloat16),
                       "b": b_ih + b_hh})          # bias kept f32
    return key, layers


if __name__ == "__main__":
    # Small shapes consistent with the module's constraints:
    #   linear in-dim:  2*H2 == 2*H1 + EMB   (cat(outputH, slot) fed to self.linear)
    #   biLSTM_2 input: LINEARDIM == 2*H1
    B, T, S = 2, 8, 4          # batch, maxlenX, slot length
    V, EMB = 50, 16            # vocab, embedding size
    H1, H2 = 16, 24            # hidden_lstm_1, hidden_lstm_2
    LINEARDIM = 2 * H1         # 32
    LAYERS = 1                 # layer_lstm
    LABEL = 3
    assert 2 * H2 == 2 * H1 + EMB

    key = jax.random.PRNGKey(0)
    key, ke, kx, ks, k1, k2, k3, k4 = jax.random.split(key, 8)

    embedding = jax.random.normal(ke, (V, EMB), jnp.float32)
    inputX = jax.random.randint(kx, (B, T), 0, V)
    inputS = jax.random.randint(ks, (B, S), 0, V)
    inputLen = jnp.array([T, 5], jnp.int32)     # variable lengths, sorted descending

    params = {}
    _, params["lstm1"] = init_bilstm_params(k1, EMB, H1, LAYERS)
    _, params["lstm2"] = init_bilstm_params(k2, LINEARDIM, H2, LAYERS)

    # linear: (2*H1 + EMB, LINEARDIM), split rows for h_fwd / h_bwd / slot
    bound = 1.0 / ((2 * H2) ** 0.5)
    w_lin = jax.random.uniform(k3, (2 * H1 + EMB, LINEARDIM), jnp.float32, -bound, bound)
    params["lin_wf"] = w_lin[:H1].astype(jnp.bfloat16)
    params["lin_wb"] = w_lin[H1:2 * H1].astype(jnp.bfloat16)
    params["lin_ws"] = w_lin[2 * H1:]                       # f32, used in tiny glue matmul

    # fc: (2*H2, LABEL), split rows for h_fwd / h_bwd, zero-padded to 128 lanes
    w_fc = jax.random.uniform(k4, (2 * H2, LABEL), jnp.float32, -bound, bound)
    pad = jnp.zeros((H2, LANE), jnp.float32)
    params["fc_wf"] = pad.at[:, :LABEL].set(w_fc[:H2]).astype(jnp.bfloat16)
    params["fc_wb"] = pad.at[:, :LABEL].set(w_fc[H2:]).astype(jnp.bfloat16)

    fwd = jax.jit(ct_forward)
    out = jax.block_until_ready(fwd(params, inputX, inputLen, inputS, embedding))
    assert out.shape == (B, T, LABEL)
    assert bool(jnp.all(jnp.isfinite(out)))
    # softmax rows sum to 1 (padded label lanes carry exactly zero probability;
    # tolerance loosened for the EUP approximate reciprocal)
    assert bool(jnp.allclose(jnp.sum(out, axis=-1), 1.0, atol=1e-2))
    print("KERNEL_OK")
</pallas_src>

<mosaic_0001>
module attributes {stable_mosaic.version = 11 : i64} {
  func.func @_linear_slot_kernel(%arg0: i32, %arg1: memref<8x8x16xbf16, #tpu.memory_space<vmem>>, %arg2: memref<8x8x16xbf16, #tpu.memory_space<vmem>>, %arg3: memref<8x32xf32, #tpu.memory_space<vmem>>, %arg4: memref<16x32xbf16, #tpu.memory_space<vmem>>, %arg5: memref<16x32xbf16, #tpu.memory_space<vmem>>, %arg6: memref<8x8x32xbf16, #tpu.memory_space<vmem>>) attributes {dimension_semantics = [#tpu.dimension_semantics<parallel>], iteration_bounds = array<i64: 1>, scalar_prefetch = 0 : i64, scratch_operands = 0 : i64, tpu.core_type = #tpu.core_type<tc>, window_params = [{transform_indices = @transform_0, window_bounds = array<i64: 8, 8, 16>}, {transform_indices = @transform_1, window_bounds = array<i64: 8, 8, 16>}, {pipeline_mode = #tpu.pipeline_mode<synchronous>, transform_indices = @transform_2, window_bounds = array<i64: 8, 32>}, {pipeline_mode = #tpu.pipeline_mode<synchronous>, transform_indices = @transform_3, window_bounds = array<i64: 16, 32>}, {pipeline_mode = #tpu.pipeline_mode<synchronous>, transform_indices = @transform_4, window_bounds = array<i64: 16, 32>}, {transform_indices = @transform_5, window_bounds = array<i64: 8, 8, 32>}]} {
    %c0 = arith.constant 0 : index
    %c0_0 = arith.constant 0 : index
    %c0_1 = arith.constant 0 : index
    %0 = vector.load %arg1[%c0, %c0_0, %c0_1] : memref<8x8x16xbf16, #tpu.memory_space<vmem>>, vector<8x8x16xbf16>
    %1 = vector.shape_cast %0 : vector<8x8x16xbf16> to vector<64x16xbf16>
    %c0_2 = arith.constant 0 : index
    %c0_3 = arith.constant 0 : index
    %c0_4 = arith.constant 0 : index
    %2 = vector.load %arg2[%c0_2, %c0_3, %c0_4] : memref<8x8x16xbf16, #tpu.memory_space<vmem>>, vector<8x8x16xbf16>
    %3 = vector.shape_cast %2 : vector<8x8x16xbf16> to vector<64x16xbf16>
    %c0_5 = arith.constant 0 : index
    %c0_6 = arith.constant 0 : index
    %4 = vector.load %arg4[%c0_5, %c0_6] : memref<16x32xbf16, #tpu.memory_space<vmem>>, vector<16x32xbf16>
    %cst = arith.constant dense<0.000000e+00> : vector<64x32xf32>
    %5 = tpu.matmul %1, %4, %cst {dimension_numbers = #tpu.dot_dimension_numbers<[1], [0], [0], [1], [0, 0, 1, 1], [], []>} : vector<64x16xbf16>, vector<16x32xbf16>, vector<64x32xf32> -> vector<64x32xf32>
    %c0_7 = arith.constant 0 : index
    %c0_8 = arith.constant 0 : index
    %6 = vector.load %arg5[%c0_7, %c0_8] : memref<16x32xbf16, #tpu.memory_space<vmem>>, vector<16x32xbf16>
    %cst_9 = arith.constant dense<0.000000e+00> : vector<64x32xf32>
    %7 = tpu.matmul %3, %6, %cst_9 {dimension_numbers = #tpu.dot_dimension_numbers<[1], [0], [0], [1], [0, 0, 1, 1], [], []>} : vector<64x16xbf16>, vector<16x32xbf16>, vector<64x32xf32> -> vector<64x32xf32>
    %8 = arith.addf %5, %7 : vector<64x32xf32>
    %9 = vector.shape_cast %8 : vector<64x32xf32> to vector<8x8x32xf32>
    %c0_10 = arith.constant 0 : index
    %c0_11 = arith.constant 0 : index
    %10 = vector.load %arg3[%c0_10, %c0_11] : memref<8x32xf32, #tpu.memory_space<vmem>>, vector<8x32xf32>
    %11 = vector.shape_cast %10 : vector<8x32xf32> to vector<1x8x32xf32>
    %12 = vector.broadcast %11 : vector<1x8x32xf32> to vector<8x8x32xf32>
    %13 = arith.addf %9, %12 : vector<8x8x32xf32>
    %14 = arith.truncf %13 : vector<8x8x32xf32> to vector<8x8x32xbf16>
    %c0_12 = arith.constant 0 : index
    %c0_13 = arith.constant 0 : index
    %c0_14 = arith.constant 0 : index
    %15 = vector.load %arg6[%c0_12, %c0_13, %c0_14] : memref<8x8x32xbf16, #tpu.memory_space<vmem>>, vector<8x8x32xbf16>
    tpu.vector_store %arg6[%c0_12, %c0_13, %c0_14], %14 {strides = array<i32>} : memref<8x8x32xbf16, #tpu.memory_space<vmem>>, vector<8x8x32xbf16>,
    return
  }
  func.func @transform_0(%arg0: i32) -> (i32, i32, i32) {
    %c0_i32 = arith.constant 0 : i32
    %c0_i32_0 = arith.constant 0 : i32
    %c0_i32_1 = arith.constant 0 : i32
    return %arg0, %c0_i32, %c0_i32_0 : i32, i32, i32
  }
  func.func @transform_1(%arg0: i32) -> (i32, i32, i32) {
    %c0_i32 = arith.constant 0 : i32
    %c0_i32_0 = arith.constant 0 : i32
    %c0_i32_1 = arith.constant 0 : i32
    return %arg0, %c0_i32, %c0_i32_0 : i32, i32, i32
  }
  func.func @transform_2(%arg0: i32) -> (i32, i32) {
    %c0_i32 = arith.constant 0 : i32
    %c0_i32_0 = arith.constant 0 : i32
    %c0_i32_1 = arith.constant 0 : i32
    return %c0_i32, %c0_i32_0 : i32, i32
  }
  func.func @transform_3(%arg0: i32) -> (i32, i32) {
    %c0_i32 = arith.constant 0 : i32
    %c0_i32_0 = arith.constant 0 : i32
    %c0_i32_1 = arith.constant 0 : i32
    return %c0_i32, %c0_i32_0 : i32, i32
  }
  func.func @transform_4(%arg0: i32) -> (i32, i32) {
    %c0_i32 = arith.constant 0 : i32
    %c0_i32_0 = arith.constant 0 : i32
    %c0_i32_1 = arith.constant 0 : i32
    return %c0_i32, %c0_i32_0 : i32, i32
  }
  func.func @transform_5(%arg0: i32) -> (i32, i32, i32) {
    %c0_i32 = arith.constant 0 : i32
    %c0_i32_0 = arith.constant 0 : i32
    %c0_i32_1 = arith.constant 0 : i32
    return %arg0, %c0_i32, %c0_i32_0 : i32, i32, i32
  }
}

module attributes {stable_mosaic.version = 11 : i64} {
  func.func @_bilstm_fused_kernel(%arg0: i32, %arg1: memref<4x8x16xbf16, #tpu.memory_space<vmem>>, %arg2: memref<4x8x16xbf16, #tpu.memory_space<vmem>>, %arg3: memref<8x1xi32, #tpu.memory_space<vmem>>, %arg4: memref<2x16x64xbf16, #tpu.memory_space<vmem>>, %arg5: memref<2x1x64xf32, #tpu.memory_space<vmem>>, %arg6: memref<2x16x64xbf16, #tpu.memory_space<vmem>>, %arg7: memref<4x8x16xbf16, #tpu.memory_space<vmem>>, %arg8: memref<4x8x16xbf16, #tpu.memory_space<vmem>>, %arg9: memref<4x8x64xf32, #tpu.memory_space<vmem>>, %arg10: memref<4x8x64xf32, #tpu.memory_space<vmem>>, %arg11: memref<8x16xf32, #tpu.memory_space<vmem>>, %arg12: memref<8x16xf32, #tpu.memory_space<vmem>>, %arg13: memref<8x16xf32, #tpu.memory_space<vmem>>, %arg14: memref<8x16xf32, #tpu.memory_space<vmem>>) attributes {dimension_semantics = [#tpu.dimension_semantics<arbitrary>], iteration_bounds = array<i64: 2>, scalar_prefetch = 0 : i64, scratch_operands = 6 : i64, tpu.core_type = #tpu.core_type<tc>, window_params = [{transform_indices = @transform_0, window_bounds = array<i64: 4, 8, 16>}, {transform_indices = @transform_1, window_bounds = array<i64: 4, 8, 16>}, {pipeline_mode = #tpu.pipeline_mode<synchronous>, transform_indices = @transform_2, window_bounds = array<i64: 8, 1>}, {pipeline_mode = #tpu.pipeline_mode<synchronous>, transform_indices = @transform_3, window_bounds = array<i64: 2, 16, 64>}, {pipeline_mode = #tpu.pipeline_mode<synchronous>, transform_indices = @transform_4, window_bounds = array<i64: 2, 1, 64>}, {pipeline_mode = #tpu.pipeline_mode<synchronous>, transform_indices = @transform_5, window_bounds = array<i64: 2, 16, 64>}, {transform_indices = @transform_6, window_bounds = array<i64: 4, 8, 16>}, {transform_indices = @transform_7, window_bounds = array<i64: 4, 8, 16>}]} {
    %c0_i32 = arith.constant 0 : i32
    %0 = arith.cmpi eq, %arg0, %c0_i32 : i32
    %1 = arith.extui %0 : i1 to i32
    %c0_i32_0 = arith.constant 0 : i32
    %2 = arith.cmpi ne, %1, %c0_i32_0 : i32
    scf.if %2 {
      %cst_128 = arith.constant 0.000000e+00 : f32
      %493 = vector.broadcast %cst_128 : f32 to vector<8x16xf32>
      %c0_129 = arith.constant 0 : index
      %c0_130 = arith.constant 0 : index
      %494 = vector.load %arg11[%c0_129, %c0_130] : memref<8x16xf32, #tpu.memory_space<vmem>>, vector<8x16xf32>
      tpu.vector_store %arg11[%c0_129, %c0_130], %493 {strides = array<i32>} : memref<8x16xf32, #tpu.memory_space<vmem>>, vector<8x16xf32>,
      %cst_131 = arith.constant 0.000000e+00 : f32
      %495 = vector.broadcast %cst_131 : f32 to vector<8x16xf32>
      %c0_132 = arith.constant 0 : index
      %c0_133 = arith.constant 0 : index
      %496 = vector.load %arg12[%c0_132, %c0_133] : memref<8x16xf32, #tpu.memory_space<vmem>>, vector<8x16xf32>
      tpu.vector_store %arg12[%c0_132, %c0_133], %495 {strides = array<i32>} : memref<8x16xf32, #tpu.memory_space<vmem>>, vector<8x16xf32>,
      %cst_134 = arith.constant 0.000000e+00 : f32
      %497 = vector.broadcast %cst_134 : f32 to vector<8x16xf32>
      %c0_135 = arith.constant 0 : index
      %c0_136 = arith.constant 0 : index
      %498 = vector.load %arg13[%c0_135, %c0_136] : memref<8x16xf32, #tpu.memory_space<vmem>>, vector<8x16xf32>
      tpu.vector_store %arg13[%c0_135, %c0_136], %497 {strides = array<i32>} : memref<8x16xf32, #tpu.memory_space<vmem>>, vector<8x16xf32>,
      %cst_137 = arith.constant 0.000000e+00 : f32
      %499 = vector.broadcast %cst_137 : f32 to vector<8x16xf32>
      %c0_138 = arith.constant 0 : index
      %c0_139 = arith.constant 0 : index
      %500 = vector.load %arg14[%c0_138, %c0_139] : memref<8x16xf32, #tpu.memory_space<vmem>>, vector<8x16xf32>
      tpu.vector_store %arg14[%c0_138, %c0_139], %499 {strides = array<i32>} : memref<8x16xf32, #tpu.memory_space<vmem>>, vector<8x16xf32>,
    } else {
    }
    %c0 = arith.constant 0 : index
    %c0_1 = arith.constant 0 : index
    %c0_2 = arith.constant 0 : index
    %3 = vector.load %arg1[%c0, %c0_1, %c0_2] : memref<4x8x16xbf16, #tpu.memory_space<vmem>>, vector<4x8x16xbf16>
    %4 = vector.shape_cast %3 : vector<4x8x16xbf16> to vector<32x16xbf16>
    %c0_3 = arith.constant 0 : index
    %c0_4 = arith.constant 0 : index
    %c0_5 = arith.constant 0 : index
    %5 = vector.load %arg2[%c0_3, %c0_4, %c0_5] : memref<4x8x16xbf16, #tpu.memory_space<vmem>>, vector<4x8x16xbf16>
    %6 = vector.shape_cast %5 : vector<4x8x16xbf16> to vector<32x16xbf16>
    %c0_6 = arith.constant 0 : index
    %c0_7 = arith.constant 0 : index
    %c0_8 = arith.constant 0 : index
    %7 = vector.load %arg4[%c0_6, %c0_7, %c0_8] : memref<2x16x64xbf16, #tpu.memory_space<vmem>>, vector<1x16x64xbf16>
    %8 = vector.shape_cast %7 : vector<1x16x64xbf16> to vector<16x64xbf16>
    %cst = arith.constant dense<0.000000e+00> : vector<32x64xf32>
    %9 = tpu.matmul %4, %8, %cst {dimension_numbers = #tpu.dot_dimension_numbers<[1], [0], [0], [1], [0, 0, 1, 1], [], []>} : vector<32x16xbf16>, vector<16x64xbf16>, vector<32x64xf32> -> vector<32x64xf32>
    %c0_9 = arith.constant 0 : index
    %c0_10 = arith.constant 0 : index
    %c0_11 = arith.constant 0 : index
    %10 = vector.load %arg5[%c0_9, %c0_10, %c0_11] : memref<2x1x64xf32, #tpu.memory_space<vmem>>, vector<1x1x64xf32>
    %11 = vector.shape_cast %10 : vector<1x1x64xf32> to vector<1x64xf32>
    %12 = vector.broadcast %11 : vector<1x64xf32> to vector<32x64xf32>
    %13 = arith.addf %9, %12 : vector<32x64xf32>
    %14 = vector.shape_cast %13 : vector<32x64xf32> to vector<4x8x64xf32>
    %c0_12 = arith.constant 0 : index
    %c0_13 = arith.constant 0 : index
    %c0_14 = arith.constant 0 : index
    %15 = vector.load %arg9[%c0_12, %c0_13, %c0_14] : memref<4x8x64xf32, #tpu.memory_space<vmem>>, vector<4x8x64xf32>
    tpu.vector_store %arg9[%c0_12, %c0_13, %c0_14], %14 {strides = array<i32>} : memref<4x8x64xf32, #tpu.memory_space<vmem>>, vector<4x8x64xf32>,
    %c1 = arith.constant 1 : index
    %c0_15 = arith.constant 0 : index
    %c0_16 = arith.constant 0 : index
    %16 = vector.load %arg4[%c1, %c0_15, %c0_16] : memref<2x16x64xbf16, #tpu.memory_space<vmem>>, vector<1x16x64xbf16>
    %17 = vector.shape_cast %16 : vector<1x16x64xbf16> to vector<16x64xbf16>
    %cst_17 = arith.constant dense<0.000000e+00> : vector<32x64xf32>
    %18 = tpu.matmul %6, %17, %cst_17 {dimension_numbers = #tpu.dot_dimension_numbers<[1], [0], [0], [1], [0, 0, 1, 1], [], []>} : vector<32x16xbf16>, vector<16x64xbf16>, vector<32x64xf32> -> vector<32x64xf32>
    %c1_18 = arith.constant 1 : index
    %c0_19 = arith.constant 0 : index
    %c0_20 = arith.constant 0 : index
    %19 = vector.load %arg5[%c1_18, %c0_19, %c0_20] : memref<2x1x64xf32, #tpu.memory_space<vmem>>, vector<1x1x64xf32>
    %20 = vector.shape_cast %19 : vector<1x1x64xf32> to vector<1x64xf32>
    %21 = vector.broadcast %20 : vector<1x64xf32> to vector<32x64xf32>
    %22 = arith.addf %18, %21 : vector<32x64xf32>
    %23 = vector.shape_cast %22 : vector<32x64xf32> to vector<4x8x64xf32>
    %c0_21 = arith.constant 0 : index
    %c0_22 = arith.constant 0 : index
    %c0_23 = arith.constant 0 : index
    %24 = vector.load %arg10[%c0_21, %c0_22, %c0_23] : memref<4x8x64xf32, #tpu.memory_space<vmem>>, vector<4x8x64xf32>
    tpu.vector_store %arg10[%c0_21, %c0_22, %c0_23], %23 {strides = array<i32>} : memref<4x8x64xf32, #tpu.memory_space<vmem>>, vector<4x8x64xf32>,
    %c0_24 = arith.constant 0 : index
    %c0_25 = arith.constant 0 : index
    %c0_26 = arith.constant 0 : index
    %25 = vector.load %arg6[%c0_24, %c0_25, %c0_26] : memref<2x16x64xbf16, #tpu.memory_space<vmem>>, vector<1x16x64xbf16>
    %26 = vector.shape_cast %25 : vector<1x16x64xbf16> to vector<16x64xbf16>
    %c1_27 = arith.constant 1 : index
    %c0_28 = arith.constant 0 : index
    %c0_29 = arith.constant 0 : index
    %27 = vector.load %arg6[%c1_27, %c0_28, %c0_29] : memref<2x16x64xbf16, #tpu.memory_space<vmem>>, vector<1x16x64xbf16>
    %28 = vector.shape_cast %27 : vector<1x16x64xbf16> to vector<16x64xbf16>
    %c0_30 = arith.constant 0 : index
    %c0_31 = arith.constant 0 : index
    %29 = vector.load %arg3[%c0_30, %c0_31] : memref<8x1xi32, #tpu.memory_space<vmem>>, vector<8x1xi32>
    %c4_i32 = arith.constant 4 : i32
    %30 = arith.muli %arg0, %c4_i32 : i32
    %c1_i32 = arith.constant 1 : i32
    %31 = arith.subi %c1_i32, %arg0 : i32
    %c4_i32_32 = arith.constant 4 : i32
    %32 = arith.muli %31, %c4_i32_32 : i32
    %c0_33 = arith.constant 0 : index
    %c0_34 = arith.constant 0 : index
    %33 = vector.load %arg11[%c0_33, %c0_34] : memref<8x16xf32, #tpu.memory_space<vmem>>, vector<8x16xf32>
    %c0_35 = arith.constant 0 : index
    %c0_36 = arith.constant 0 : index
    %34 = vector.load %arg12[%c0_35, %c0_36] : memref<8x16xf32, #tpu.memory_space<vmem>>, vector<8x16xf32>
    %c0_37 = arith.constant 0 : index
    %c0_38 = arith.constant 0 : index
    %35 = vector.load %arg13[%c0_37, %c0_38] : memref<8x16xf32, #tpu.memory_space<vmem>>, vector<8x16xf32>
    %c0_39 = arith.constant 0 : index
    %c0_40 = arith.constant 0 : index
    %36 = vector.load %arg14[%c0_39, %c0_40] : memref<8x16xf32, #tpu.memory_space<vmem>>, vector<8x16xf32>
    %c0_i32_41 = arith.constant 0 : i32
    %c3_i32 = arith.constant 3 : i32
    %37 = arith.subi %c3_i32, %c0_i32_41 : i32
    %38 = arith.addi %30, %c0_i32_41 : i32
    %39 = vector.broadcast %38 : i32 to vector<8x1xi32>
    %40 = arith.cmpi slt, %39, %29 : vector<8x1xi32>
    %41 = arith.addi %32, %37 : i32
    %42 = vector.broadcast %41 : i32 to vector<8x1xi32>
    %43 = arith.cmpi slt, %42, %29 : vector<8x1xi32>
    %44 = arith.index_cast %c0_i32_41 : i32 to index
    %c0_42 = arith.constant 0 : index
    %c0_43 = arith.constant 0 : index
    %45 = vector.load %arg9[%44, %c0_42, %c0_43] : memref<4x8x64xf32, #tpu.memory_space<vmem>>, vector<1x8x64xf32>
    %46 = vector.shape_cast %45 : vector<1x8x64xf32> to vector<8x64xf32>
    %47 = arith.truncf %33 : vector<8x16xf32> to vector<8x16xbf16>
    %cst_44 = arith.constant dense<0.000000e+00> : vector<8x64xf32>
    %48 = tpu.matmul %47, %26, %cst_44 {dimension_numbers = #tpu.dot_dimension_numbers<[1], [0], [0], [1], [0, 0, 1, 1], [], []>} : vector<8x16xbf16>, vector<16x64xbf16>, vector<8x64xf32> -> vector<8x64xf32>
    %49 = arith.addf %46, %48 : vector<8x64xf32>
    %50 = arith.truncf %49 : vector<8x64xf32> to vector<8x64xbf16>
    %51 = vector.extract_strided_slice %50 {offsets = [0, 0], sizes = [8, 16], strides = [1, 1]} : vector<8x64xbf16> to vector<8x16xbf16>
    %52 = arith.negf %51 : vector<8x16xbf16>
    %53 = math.exp %52 : vector<8x16xbf16>
    %cst_45 = arith.constant 1.000000e+00 : bf16
    %54 = vector.broadcast %cst_45 : bf16 to vector<8x16xbf16>
    %55 = arith.addf %54, %53 : vector<8x16xbf16>
    %56 = arith.divf %54, %55 : vector<8x16xbf16>
    %57 = arith.extf %56 : vector<8x16xbf16> to vector<8x16xf32>
    %58 = vector.extract_strided_slice %50 {offsets = [0, 16], sizes = [8, 16], strides = [1, 1]} : vector<8x64xbf16> to vector<8x16xbf16>
    %59 = arith.negf %58 : vector<8x16xbf16>
    %60 = math.exp %59 : vector<8x16xbf16>
    %cst_46 = arith.constant 1.000000e+00 : bf16
    %61 = vector.broadcast %cst_46 : bf16 to vector<8x16xbf16>
    %62 = arith.addf %61, %60 : vector<8x16xbf16>
    %63 = arith.divf %61, %62 : vector<8x16xbf16>
    %64 = arith.extf %63 : vector<8x16xbf16> to vector<8x16xf32>
    %65 = vector.extract_strided_slice %50 {offsets = [0, 32], sizes = [8, 16], strides = [1, 1]} : vector<8x64xbf16> to vector<8x16xbf16>
    %66 = math.tanh %65 : vector<8x16xbf16>
    %67 = arith.extf %66 : vector<8x16xbf16> to vector<8x16xf32>
    %68 = vector.extract_strided_slice %50 {offsets = [0, 48], sizes = [8, 16], strides = [1, 1]} : vector<8x64xbf16> to vector<8x16xbf16>
    %69 = arith.negf %68 : vector<8x16xbf16>
    %70 = math.exp %69 : vector<8x16xbf16>
    %cst_47 = arith.constant 1.000000e+00 : bf16
    %71 = vector.broadcast %cst_47 : bf16 to vector<8x16xbf16>
    %72 = arith.addf %71, %70 : vector<8x16xbf16>
    %73 = arith.divf %71, %72 : vector<8x16xbf16>
    %74 = arith.extf %73 : vector<8x16xbf16> to vector<8x16xf32>
    %75 = arith.mulf %64, %34 : vector<8x16xf32>
    %76 = arith.mulf %57, %67 : vector<8x16xf32>
    %77 = arith.addf %75, %76 : vector<8x16xf32>
    %78 = arith.truncf %77 : vector<8x16xf32> to vector<8x16xbf16>
    %79 = math.tanh %78 : vector<8x16xbf16>
    %80 = arith.extf %79 : vector<8x16xbf16> to vector<8x16xf32>
    %81 = arith.mulf %74, %80 : vector<8x16xf32>
    %82 = arith.index_cast %37 : i32 to index
    %c0_48 = arith.constant 0 : index
    %c0_49 = arith.constant 0 : index
    %83 = vector.load %arg10[%82, %c0_48, %c0_49] : memref<4x8x64xf32, #tpu.memory_space<vmem>>, vector<1x8x64xf32>
    %84 = vector.shape_cast %83 : vector<1x8x64xf32> to vector<8x64xf32>
    %85 = arith.truncf %35 : vector<8x16xf32> to vector<8x16xbf16>
    %cst_50 = arith.constant dense<0.000000e+00> : vector<8x64xf32>
    %86 = tpu.matmul %85, %28, %cst_50 {dimension_numbers = #tpu.dot_dimension_numbers<[1], [0], [0], [1], [0, 0, 1, 1], [], []>} : vector<8x16xbf16>, vector<16x64xbf16>, vector<8x64xf32> -> vector<8x64xf32>
    %87 = arith.addf %84, %86 : vector<8x64xf32>
    %88 = arith.truncf %87 : vector<8x64xf32> to vector<8x64xbf16>
    %89 = vector.extract_strided_slice %88 {offsets = [0, 0], sizes = [8, 16], strides = [1, 1]} : vector<8x64xbf16> to vector<8x16xbf16>
    %90 = arith.negf %89 : vector<8x16xbf16>
    %91 = math.exp %90 : vector<8x16xbf16>
    %cst_51 = arith.constant 1.000000e+00 : bf16
    %92 = vector.broadcast %cst_51 : bf16 to vector<8x16xbf16>
    %93 = arith.addf %92, %91 : vector<8x16xbf16>
    %94 = arith.divf %92, %93 : vector<8x16xbf16>
    %95 = arith.extf %94 : vector<8x16xbf16> to vector<8x16xf32>
    %96 = vector.extract_strided_slice %88 {offsets = [0, 16], sizes = [8, 16], strides = [1, 1]} : vector<8x64xbf16> to vector<8x16xbf16>
    %97 = arith.negf %96 : vector<8x16xbf16>
    %98 = math.exp %97 : vector<8x16xbf16>
    %cst_52 = arith.constant 1.000000e+00 : bf16
    %99 = vector.broadcast %cst_52 : bf16 to vector<8x16xbf16>
    %100 = arith.addf %99, %98 : vector<8x16xbf16>
    %101 = arith.divf %99, %100 : vector<8x16xbf16>
    %102 = arith.extf %101 : vector<8x16xbf16> to vector<8x16xf32>
    %103 = vector.extract_strided_slice %88 {offsets = [0, 32], sizes = [8, 16], strides = [1, 1]} : vector<8x64xbf16> to vector<8x16xbf16>
    %104 = math.tanh %103 : vector<8x16xbf16>
    %105 = arith.extf %104 : vector<8x16xbf16> to vector<8x16xf32>
    %106 = vector.extract_strided_slice %88 {offsets = [0, 48], sizes = [8, 16], strides = [1, 1]} : vector<8x64xbf16> to vector<8x16xbf16>
    %107 = arith.negf %106 : vector<8x16xbf16>
    %108 = math.exp %107 : vector<8x16xbf16>
    %cst_53 = arith.constant 1.000000e+00 : bf16
    %109 = vector.broadcast %cst_53 : bf16 to vector<8x16xbf16>
    %110 = arith.addf %109, %108 : vector<8x16xbf16>
    %111 = arith.divf %109, %110 : vector<8x16xbf16>
    %112 = arith.extf %111 : vector<8x16xbf16> to vector<8x16xf32>
    %113 = arith.mulf %102, %36 : vector<8x16xf32>
    %114 = arith.mulf %95, %105 : vector<8x16xf32>
    %115 = arith.addf %113, %114 : vector<8x16xf32>
    %116 = arith.truncf %115 : vector<8x16xf32> to vector<8x16xbf16>
    %117 = math.tanh %116 : vector<8x16xbf16>
    %118 = arith.extf %117 : vector<8x16xbf16> to vector<8x16xf32>
    %119 = arith.mulf %112, %118 : vector<8x16xf32>
    %120 = vector.shape_cast %40 : vector<8x1xi1> to vector<8x1xi1>
    %121 = vector.broadcast %120 : vector<8x1xi1> to vector<8x16xi1>
    %122 = arith.select %121, %81, %33 : vector<8x16xi1>, vector<8x16xf32>
    %123 = vector.shape_cast %40 : vector<8x1xi1> to vector<8x1xi1>
    %124 = vector.broadcast %123 : vector<8x1xi1> to vector<8x16xi1>
    %125 = arith.select %124, %77, %34 : vector<8x16xi1>, vector<8x16xf32>
    %126 = vector.shape_cast %43 : vector<8x1xi1> to vector<8x1xi1>
    %127 = vector.broadcast %126 : vector<8x1xi1> to vector<8x16xi1>
    %128 = arith.select %127, %119, %35 : vector<8x16xi1>, vector<8x16xf32>
    %129 = vector.shape_cast %43 : vector<8x1xi1> to vector<8x1xi1>
    %130 = vector.broadcast %129 : vector<8x1xi1> to vector<8x16xi1>
    %131 = arith.select %130, %115, %36 : vector<8x16xi1>, vector<8x16xf32>
    %cst_54 = arith.constant 0.000000e+00 : f32
    %132 = vector.shape_cast %40 : vector<8x1xi1> to vector<8x1xi1>
    %133 = vector.broadcast %132 : vector<8x1xi1> to vector<8x16xi1>
    %134 = vector.broadcast %cst_54 : f32 to vector<8x16xf32>
    %135 = arith.select %133, %122, %134 : vector<8x16xi1>, vector<8x16xf32>
    %136 = arith.truncf %135 : vector<8x16xf32> to vector<8x16xbf16>
    %137 = arith.index_cast %c0_i32_41 : i32 to index
    %c0_55 = arith.constant 0 : index
    %c0_56 = arith.constant 0 : index
    %138 = vector.load %arg7[%137, %c0_55, %c0_56] : memref<4x8x16xbf16, #tpu.memory_space<vmem>>, vector<1x8x16xbf16>
    %139 = vector.shape_cast %138 : vector<1x8x16xbf16> to vector<8x16xbf16>
    %140 = vector.shape_cast %136 : vector<8x16xbf16> to vector<1x8x16xbf16>
    tpu.vector_store %arg7[%137, %c0_55, %c0_56], %140 {strides = array<i32>} : memref<4x8x16xbf16, #tpu.memory_space<vmem>>, vector<1x8x16xbf16>,
    %cst_57 = arith.constant 0.000000e+00 : f32
    %141 = vector.shape_cast %43 : vector<8x1xi1> to vector<8x1xi1>
    %142 = vector.broadcast %141 : vector<8x1xi1> to vector<8x16xi1>
    %143 = vector.broadcast %cst_57 : f32 to vector<8x16xf32>
    %144 = arith.select %142, %128, %143 : vector<8x16xi1>, vector<8x16xf32>
    %145 = arith.truncf %144 : vector<8x16xf32> to vector<8x16xbf16>
    %146 = arith.index_cast %37 : i32 to index
    %c0_58 = arith.constant 0 : index
    %c0_59 = arith.constant 0 : index
    %147 = vector.load %arg8[%146, %c0_58, %c0_59] : memref<4x8x16xbf16, #tpu.memory_space<vmem>>, vector<1x8x16xbf16>
    %148 = vector.shape_cast %147 : vector<1x8x16xbf16> to vector<8x16xbf16>
    %149 = vector.shape_cast %145 : vector<8x16xbf16> to vector<1x8x16xbf16>
    tpu.vector_store %arg8[%146, %c0_58, %c0_59], %149 {strides = array<i32>} : memref<4x8x16xbf16, #tpu.memory_space<vmem>>, vector<1x8x16xbf16>,
    %c1_i32_60 = arith.constant 1 : i32
    %c3_i32_61 = arith.constant 3 : i32
    %150 = arith.subi %c3_i32_61, %c1_i32_60 : i32
    %151 = arith.addi %30, %c1_i32_60 : i32
    %152 = vector.broadcast %151 : i32 to vector<8x1xi32>
    %153 = arith.cmpi slt, %152, %29 : vector<8x1xi32>
    %154 = arith.addi %32, %150 : i32
    %155 = vector.broadcast %154 : i32 to vector<8x1xi32>
    %156 = arith.cmpi slt, %155, %29 : vector<8x1xi32>
    %157 = arith.index_cast %c1_i32_60 : i32 to index
    %c0_62 = arith.constant 0 : index
    %c0_63 = arith.constant 0 : index
    %158 = vector.load %arg9[%157, %c0_62, %c0_63] : memref<4x8x64xf32, #tpu.memory_space<vmem>>, vector<1x8x64xf32>
    %159 = vector.shape_cast %158 : vector<1x8x64xf32> to vector<8x64xf32>
    %160 = arith.truncf %122 : vector<8x16xf32> to vector<8x16xbf16>
    %cst_64 = arith.constant dense<0.000000e+00> : vector<8x64xf32>
    %161 = tpu.matmul %160, %26, %cst_64 {dimension_numbers = #tpu.dot_dimension_numbers<[1], [0], [0], [1], [0, 0, 1, 1], [], []>} : vector<8x16xbf16>, vector<16x64xbf16>, vector<8x64xf32> -> vector<8x64xf32>
    %162 = arith.addf %159, %161 : vector<8x64xf32>
    %163 = arith.truncf %162 : vector<8x64xf32> to vector<8x64xbf16>
    %164 = vector.extract_strided_slice %163 {offsets = [0, 0], sizes = [8, 16], strides = [1, 1]} : vector<8x64xbf16> to vector<8x16xbf16>
    %165 = arith.negf %164 : vector<8x16xbf16>
    %166 = math.exp %165 : vector<8x16xbf16>
    %cst_65 = arith.constant 1.000000e+00 : bf16
    %167 = vector.broadcast %cst_65 : bf16 to vector<8x16xbf16>
    %168 = arith.addf %167, %166 : vector<8x16xbf16>
    %169 = arith.divf %167, %168 : vector<8x16xbf16>
    %170 = arith.extf %169 : vector<8x16xbf16> to vector<8x16xf32>
    %171 = vector.extract_strided_slice %163 {offsets = [0, 16], sizes = [8, 16], strides = [1, 1]} : vector<8x64xbf16> to vector<8x16xbf16>
    %172 = arith.negf %171 : vector<8x16xbf16>
    %173 = math.exp %172 : vector<8x16xbf16>
    %cst_66 = arith.constant 1.000000e+00 : bf16
    %174 = vector.broadcast %cst_66 : bf16 to vector<8x16xbf16>
    %175 = arith.addf %174, %173 : vector<8x16xbf16>
    %176 = arith.divf %174, %175 : vector<8x16xbf16>
    %177 = arith.extf %176 : vector<8x16xbf16> to vector<8x16xf32>
    %178 = vector.extract_strided_slice %163 {offsets = [0, 32], sizes = [8, 16], strides = [1, 1]} : vector<8x64xbf16> to vector<8x16xbf16>
    %179 = math.tanh %178 : vector<8x16xbf16>
    %180 = arith.extf %179 : vector<8x16xbf16> to vector<8x16xf32>
    %181 = vector.extract_strided_slice %163 {offsets = [0, 48], sizes = [8, 16], strides = [1, 1]} : vector<8x64xbf16> to vector<8x16xbf16>
    %182 = arith.negf %181 : vector<8x16xbf16>
    %183 = math.exp %182 : vector<8x16xbf16>
    %cst_67 = arith.constant 1.000000e+00 : bf16
    %184 = vector.broadcast %cst_67 : bf16 to vector<8x16xbf16>
    %185 = arith.addf %184, %183 : vector<8x16xbf16>
    %186 = arith.divf %184, %185 : vector<8x16xbf16>
    %187 = arith.extf %186 : vector<8x16xbf16> to vector<8x16xf32>
    %188 = arith.mulf %177, %125 : vector<8x16xf32>
    %189 = arith.mulf %170, %180 : vector<8x16xf32>
    %190 = arith.addf %188, %189 : vector<8x16xf32>
    %191 = arith.truncf %190 : vector<8x16xf32> to vector<8x16xbf16>
    %192 = math.tanh %191 : vector<8x16xbf16>
    %193 = arith.extf %192 : vector<8x16xbf16> to vector<8x16xf32>
    %194 = arith.mulf %187, %193 : vector<8x16xf32>
    %195 = arith.index_cast %150 : i32 to index
    %c0_68 = arith.constant 0 : index
    %c0_69 = arith.constant 0 : index
    %196 = vector.load %arg10[%195, %c0_68, %c0_69] : memref<4x8x64xf32, #tpu.memory_space<vmem>>, vector<1x8x64xf32>
    %197 = vector.shape_cast %196 : vector<1x8x64xf32> to vector<8x64xf32>
    %198 = arith.truncf %128 : vector<8x16xf32> to vector<8x16xbf16>
    %cst_70 = arith.constant dense<0.000000e+00> : vector<8x64xf32>
    %199 = tpu.matmul %198, %28, %cst_70 {dimension_numbers = #tpu.dot_dimension_numbers<[1], [0], [0], [1], [0, 0, 1, 1], [], []>} : vector<8x16xbf16>, vector<16x64xbf16>, vector<8x64xf32> -> vector<8x64xf32>
    %200 = arith.addf %197, %199 : vector<8x64xf32>
    %201 = arith.truncf %200 : vector<8x64xf32> to vector<8x64xbf16>
    %202 = vector.extract_strided_slice %201 {offsets = [0, 0], sizes = [8, 16], strides = [1, 1]} : vector<8x64xbf16> to vector<8x16xbf16>
    %203 = arith.negf %202 : vector<8x16xbf16>
    %204 = math.exp %203 : vector<8x16xbf16>
    %cst_71 = arith.constant 1.000000e+00 : bf16
    %205 = vector.broadcast %cst_71 : bf16 to vector<8x16xbf16>
    %206 = arith.addf %205, %204 : vector<8x16xbf16>
    %207 = arith.divf %205, %206 : vector<8x16xbf16>
    %208 = arith.extf %207 : vector<8x16xbf16> to vector<8x16xf32>
    %209 = vector.extract_strided_slice %201 {offsets = [0, 16], sizes = [8, 16], strides = [1, 1]} : vector<8x64xbf16> to vector<8x16xbf16>
    %210 = arith.negf %209 : vector<8x16xbf16>
    %211 = math.exp %210 : vector<8x16xbf16>
    %cst_72 = arith.constant 1.000000e+00 : bf16
    %212 = vector.broadcast %cst_72 : bf16 to vector<8x16xbf16>
    %213 = arith.addf %212, %211 : vector<8x16xbf16>
    %214 = arith.divf %212, %213 : vector<8x16xbf16>
    %215 = arith.extf %214 : vector<8x16xbf16> to vector<8x16xf32>
    %216 = vector.extract_strided_slice %201 {offsets = [0, 32], sizes = [8, 16], strides = [1, 1]} : vector<8x64xbf16> to vector<8x16xbf16>
    %217 = math.tanh %216 : vector<8x16xbf16>
    %218 = arith.extf %217 : vector<8x16xbf16> to vector<8x16xf32>
    %219 = vector.extract_strided_slice %201 {offsets = [0, 48], sizes = [8, 16], strides = [1, 1]} : vector<8x64xbf16> to vector<8x16xbf16>
    %220 = arith.negf %219 : vector<8x16xbf16>
    %221 = math.exp %220 : vector<8x16xbf16>
    %cst_73 = arith.constant 1.000000e+00 : bf16
    %222 = vector.broadcast %cst_73 : bf16 to vector<8x16xbf16>
    %223 = arith.addf %222, %221 : vector<8x16xbf16>
    %224 = arith.divf %222, %223 : vector<8x16xbf16>
    %225 = arith.extf %224 : vector<8x16xbf16> to vector<8x16xf32>
    %226 = arith.mulf %215, %131 : vector<8x16xf32>
    %227 = arith.mulf %208, %218 : vector<8x16xf32>
    %228 = arith.addf %226, %227 : vector<8x16xf32>
    %229 = arith.truncf %228 : vector<8x16xf32> to vector<8x16xbf16>
    %230 = math.tanh %229 : vector<8x16xbf16>
    %231 = arith.extf %230 : vector<8x16xbf16> to vector<8x16xf32>
    %232 = arith.mulf %225, %231 : vector<8x16xf32>
    %233 = vector.shape_cast %153 : vector<8x1xi1> to vector<8x1xi1>
    %234 = vector.broadcast %233 : vector<8x1xi1> to vector<8x16xi1>
    %235 = arith.select %234, %194, %122 : vector<8x16xi1>, vector<8x16xf32>
    %236 = vector.shape_cast %153 : vector<8x1xi1> to vector<8x1xi1>
    %237 = vector.broadcast %236 : vector<8x1xi1> to vector<8x16xi1>
    %238 = arith.select %237, %190, %125 : vector<8x16xi1>, vector<8x16xf32>
    %239 = vector.shape_cast %156 : vector<8x1xi1> to vector<8x1xi1>
    %240 = vector.broadcast %239 : vector<8x1xi1> to vector<8x16xi1>
    %241 = arith.select %240, %232, %128 : vector<8x16xi1>, vector<8x16xf32>
    %242 = vector.shape_cast %156 : vector<8x1xi1> to vector<8x1xi1>
    %243 = vector.broadcast %242 : vector<8x1xi1> to vector<8x16xi1>
    %244 = arith.select %243, %228, %131 : vector<8x16xi1>, vector<8x16xf32>
    %cst_74 = arith.constant 0.000000e+00 : f32
    %245 = vector.shape_cast %153 : vector<8x1xi1> to vector<8x1xi1>
    %246 = vector.broadcast %245 : vector<8x1xi1> to vector<8x16xi1>
    %247 = vector.broadcast %cst_74 : f32 to vector<8x16xf32>
    %248 = arith.select %246, %235, %247 : vector<8x16xi1>, vector<8x16xf32>
    %249 = arith.truncf %248 : vector<8x16xf32> to vector<8x16xbf16>
    %250 = arith.index_cast %c1_i32_60 : i32 to index
    %c0_75 = arith.constant 0 : index
    %c0_76 = arith.constant 0 : index
    %251 = vector.load %arg7[%250, %c0_75, %c0_76] : memref<4x8x16xbf16, #tpu.memory_space<vmem>>, vector<1x8x16xbf16>
    %252 = vector.shape_cast %251 : vector<1x8x16xbf16> to vector<8x16xbf16>
    %253 = vector.shape_cast %249 : vector<8x16xbf16> to vector<1x8x16xbf16>
    tpu.vector_store %arg7[%250, %c0_75, %c0_76], %253 {strides = array<i32>} : memref<4x8x16xbf16, #tpu.memory_space<vmem>>, vector<1x8x16xbf16>,
    %cst_77 = arith.constant 0.000000e+00 : f32
    %254 = vector.shape_cast %156 : vector<8x1xi1> to vector<8x1xi1>
    %255 = vector.broadcast %254 : vector<8x1xi1> to vector<8x16xi1>
    %256 = vector.broadcast %cst_77 : f32 to vector<8x16xf32>
    %257 = arith.select %255, %241, %256 : vector<8x16xi1>, vector<8x16xf32>
    %258 = arith.truncf %257 : vector<8x16xf32> to vector<8x16xbf16>
    %259 = arith.index_cast %150 : i32 to index
    %c0_78 = arith.constant 0 : index
    %c0_79 = arith.constant 0 : index
    %260 = vector.load %arg8[%259, %c0_78, %c0_79] : memref<4x8x16xbf16, #tpu.memory_space<vmem>>, vector<1x8x16xbf16>
    %261 = vector.shape_cast %260 : vector<1x8x16xbf16> to vector<8x16xbf16>
    %262 = vector.shape_cast %258 : vector<8x16xbf16> to vector<1x8x16xbf16>
    tpu.vector_store %arg8[%259, %c0_78, %c0_79], %262 {strides = array<i32>} : memref<4x8x16xbf16, #tpu.memory_space<vmem>>, vector<1x8x16xbf16>,
    %c2_i32 = arith.constant 2 : i32
    %c3_i32_80 = arith.constant 3 : i32
    %263 = arith.subi %c3_i32_80, %c2_i32 : i32
    %264 = arith.addi %30, %c2_i32 : i32
    %265 = vector.broadcast %264 : i32 to vector<8x1xi32>
    %266 = arith.cmpi slt, %265, %29 : vector<8x1xi32>
    %267 = arith.addi %32, %263 : i32
    %268 = vector.broadcast %267 : i32 to vector<8x1xi32>
    %269 = arith.cmpi slt, %268, %29 : vector<8x1xi32>
    %270 = arith.index_cast %c2_i32 : i32 to index
    %c0_81 = arith.constant 0 : index
    %c0_82 = arith.constant 0 : index
    %271 = vector.load %arg9[%270, %c0_81, %c0_82] : memref<4x8x64xf32, #tpu.memory_space<vmem>>, vector<1x8x64xf32>
    %272 = vector.shape_cast %271 : vector<1x8x64xf32> to vector<8x64xf32>
    %273 = arith.truncf %235 : vector<8x16xf32> to vector<8x16xbf16>
    %cst_83 = arith.constant dense<0.000000e+00> : vector<8x64xf32>
    %274 = tpu.matmul %273, %26, %cst_83 {dimension_numbers = #tpu.dot_dimension_numbers<[1], [0], [0], [1], [0, 0, 1, 1], [], []>} : vector<8x16xbf16>, vector<16x64xbf16>, vector<8x64xf32> -> vector<8x64xf32>
    %275 = arith.addf %272, %274 : vector<8x64xf32>
    %276 = arith.truncf %275 : vector<8x64xf32> to vector<8x64xbf16>
    %277 = vector.extract_strided_slice %276 {offsets = [0, 0], sizes = [8, 16], strides = [1, 1]} : vector<8x64xbf16> to vector<8x16xbf16>
    %278 = arith.negf %277 : vector<8x16xbf16>
    %279 = math.exp %278 : vector<8x16xbf16>
    %cst_84 = arith.constant 1.000000e+00 : bf16
    %280 = vector.broadcast %cst_84 : bf16 to vector<8x16xbf16>
    %281 = arith.addf %280, %279 : vector<8x16xbf16>
    %282 = arith.divf %280, %281 : vector<8x16xbf16>
    %283 = arith.extf %282 : vector<8x16xbf16> to vector<8x16xf32>
    %284 = vector.extract_strided_slice %276 {offsets = [0, 16], sizes = [8, 16], strides = [1, 1]} : vector<8x64xbf16> to vector<8x16xbf16>
    %285 = arith.negf %284 : vector<8x16xbf16>
    %286 = math.exp %285 : vector<8x16xbf16>
    %cst_85 = arith.constant 1.000000e+00 : bf16
    %287 = vector.broadcast %cst_85 : bf16 to vector<8x16xbf16>
    %288 = arith.addf %287, %286 : vector<8x16xbf16>
    %289 = arith.divf %287, %288 : vector<8x16xbf16>
    %290 = arith.extf %289 : vector<8x16xbf16> to vector<8x16xf32>
    %291 = vector.extract_strided_slice %276 {offsets = [0, 32], sizes = [8, 16], strides = [1, 1]} : vector<8x64xbf16> to vector<8x16xbf16>
    %292 = math.tanh %291 : vector<8x16xbf16>
    %293 = arith.extf %292 : vector<8x16xbf16> to vector<8x16xf32>
    %294 = vector.extract_strided_slice %276 {offsets = [0, 48], sizes = [8, 16], strides = [1, 1]} : vector<8x64xbf16> to vector<8x16xbf16>
    %295 = arith.negf %294 : vector<8x16xbf16>
    %296 = math.exp %295 : vector<8x16xbf16>
    %cst_86 = arith.constant 1.000000e+00 : bf16
    %297 = vector.broadcast %cst_86 : bf16 to vector<8x16xbf16>
    %298 = arith.addf %297, %296 : vector<8x16xbf16>
    %299 = arith.divf %297, %298 : vector<8x16xbf16>
    %300 = arith.extf %299 : vector<8x16xbf16> to vector<8x16xf32>
    %301 = arith.mulf %290, %238 : vector<8x16xf32>
    %302 = arith.mulf %283, %293 : vector<8x16xf32>
    %303 = arith.addf %301, %302 : vector<8x16xf32>
    %304 = arith.truncf %303 : vector<8x16xf32> to vector<8x16xbf16>
    %305 = math.tanh %304 : vector<8x16xbf16>
    %306 = arith.extf %305 : vector<8x16xbf16> to vector<8x16xf32>
    %307 = arith.mulf %300, %306 : vector<8x16xf32>
    %308 = arith.index_cast %263 : i32 to index
    %c0_87 = arith.constant 0 : index
    %c0_88 = arith.constant 0 : index
    %309 = vector.load %arg10[%308, %c0_87, %c0_88] : memref<4x8x64xf32, #tpu.memory_space<vmem>>, vector<1x8x64xf32>
    %310 = vector.shape_cast %309 : vector<1x8x64xf32> to vector<8x64xf32>
    %311 = arith.truncf %241 : vector<8x16xf32> to vector<8x16xbf16>
    %cst_89 = arith.constant dense<0.000000e+00> : vector<8x64xf32>
    %312 = tpu.matmul %311, %28, %cst_89 {dimension_numbers = #tpu.dot_dimension_numbers<[1], [0], [0], [1], [0, 0, 1, 1], [], []>} : vector<8x16xbf16>, vector<16x64xbf16>, vector<8x64xf32> -> vector<8x64xf32>
    %313 = arith.addf %310, %312 : vector<8x64xf32>
    %314 = arith.truncf %313 : vector<8x64xf32> to vector<8x64xbf16>
    %315 = vector.extract_strided_slice %314 {offsets = [0, 0], sizes = [8, 16], strides = [1, 1]} : vector<8x64xbf16> to vector<8x16xbf16>
    %316 = arith.negf %315 : vector<8x16xbf16>
    %317 = math.exp %316 : vector<8x16xbf16>
    %cst_90 = arith.constant 1.000000e+00 : bf16
    %318 = vector.broadcast %cst_90 : bf16 to vector<8x16xbf16>
    %319 = arith.addf %318, %317 : vector<8x16xbf16>
    %320 = arith.divf %318, %319 : vector<8x16xbf16>
    %321 = arith.extf %320 : vector<8x16xbf16> to vector<8x16xf32>
    %322 = vector.extract_strided_slice %314 {offsets = [0, 16], sizes = [8, 16], strides = [1, 1]} : vector<8x64xbf16> to vector<8x16xbf16>
    %323 = arith.negf %322 : vector<8x16xbf16>
    %324 = math.exp %323 : vector<8x16xbf16>
    %cst_91 = arith.constant 1.000000e+00 : bf16
    %325 = vector.broadcast %cst_91 : bf16 to vector<8x16xbf16>
    %326 = arith.addf %325, %324 : vector<8x16xbf16>
    %327 = arith.divf %325, %326 : vector<8x16xbf16>
    %328 = arith.extf %327 : vector<8x16xbf16> to vector<8x16xf32>
    %329 = vector.extract_strided_slice %314 {offsets = [0, 32], sizes = [8, 16], strides = [1, 1]} : vector<8x64xbf16> to vector<8x16xbf16>
    %330 = math.tanh %329 : vector<8x16xbf16>
    %331 = arith.extf %330 : vector<8x16xbf16> to vector<8x16xf32>
    %332 = vector.extract_strided_slice %314 {offsets = [0, 48], sizes = [8, 16], strides = [1, 1]} : vector<8x64xbf16> to vector<8x16xbf16>
    %333 = arith.negf %332 : vector<8x16xbf16>
    %334 = math.exp %333 : vector<8x16xbf16>
    %cst_92 = arith.constant 1.000000e+00 : bf16
    %335 = vector.broadcast %cst_92 : bf16 to vector<8x16xbf16>
    %336 = arith.addf %335, %334 : vector<8x16xbf16>
    %337 = arith.divf %335, %336 : vector<8x16xbf16>
    %338 = arith.extf %337 : vector<8x16xbf16> to vector<8x16xf32>
    %339 = arith.mulf %328, %244 : vector<8x16xf32>
    %340 = arith.mulf %321, %331 : vector<8x16xf32>
    %341 = arith.addf %339, %340 : vector<8x16xf32>
    %342 = arith.truncf %341 : vector<8x16xf32> to vector<8x16xbf16>
    %343 = math.tanh %342 : vector<8x16xbf16>
    %344 = arith.extf %343 : vector<8x16xbf16> to vector<8x16xf32>
    %345 = arith.mulf %338, %344 : vector<8x16xf32>
    %346 = vector.shape_cast %266 : vector<8x1xi1> to vector<8x1xi1>
    %347 = vector.broadcast %346 : vector<8x1xi1> to vector<8x16xi1>
    %348 = arith.select %347, %307, %235 : vector<8x16xi1>, vector<8x16xf32>
    %349 = vector.shape_cast %266 : vector<8x1xi1> to vector<8x1xi1>
    %350 = vector.broadcast %349 : vector<8x1xi1> to vector<8x16xi1>
    %351 = arith.select %350, %303, %238 : vector<8x16xi1>, vector<8x16xf32>
    %352 = vector.shape_cast %269 : vector<8x1xi1> to vector<8x1xi1>
    %353 = vector.broadcast %352 : vector<8x1xi1> to vector<8x16xi1>
    %354 = arith.select %353, %345, %241 : vector<8x16xi1>, vector<8x16xf32>
    %355 = vector.shape_cast %269 : vector<8x1xi1> to vector<8x1xi1>
    %356 = vector.broadcast %355 : vector<8x1xi1> to vector<8x16xi1>
    %357 = arith.select %356, %341, %244 : vector<8x16xi1>, vector<8x16xf32>
    %cst_93 = arith.constant 0.000000e+00 : f32
    %358 = vector.shape_cast %266 : vector<8x1xi1> to vector<8x1xi1>
    %359 = vector.broadcast %358 : vector<8x1xi1> to vector<8x16xi1>
    %360 = vector.broadcast %cst_93 : f32 to vector<8x16xf32>
    %361 = arith.select %359, %348, %360 : vector<8x16xi1>, vector<8x16xf32>
    %362 = arith.truncf %361 : vector<8x16xf32> to vector<8x16xbf16>
    %363 = arith.index_cast %c2_i32 : i32 to index
    %c0_94 = arith.constant 0 : index
    %c0_95 = arith.constant 0 : index
    %364 = vector.load %arg7[%363, %c0_94, %c0_95] : memref<4x8x16xbf16, #tpu.memory_space<vmem>>, vector<1x8x16xbf16>
    %365 = vector.shape_cast %364 : vector<1x8x16xbf16> to vector<8x16xbf16>
    %366 = vector.shape_cast %362 : vector<8x16xbf16> to vector<1x8x16xbf16>
    tpu.vector_store %arg7[%363, %c0_94, %c0_95], %366 {strides = array<i32>} : memref<4x8x16xbf16, #tpu.memory_space<vmem>>, vector<1x8x16xbf16>,
    %cst_96 = arith.constant 0.000000e+00 : f32
    %367 = vector.shape_cast %269 : vector<8x1xi1> to vector<8x1xi1>
    %368 = vector.broadcast %367 : vector<8x1xi1> to vector<8x16xi1>
    %369 = vector.broadcast %cst_96 : f32 to vector<8x16xf32>
    %370 = arith.select %368, %354, %369 : vector<8x16xi1>, vector<8x16xf32>
    %371 = arith.truncf %370 : vector<8x16xf32> to vector<8x16xbf16>
    %372 = arith.index_cast %263 : i32 to index
    %c0_97 = arith.constant 0 : index
    %c0_98 = arith.constant 0 : index
    %373 = vector.load %arg8[%372, %c0_97, %c0_98] : memref<4x8x16xbf16, #tpu.memory_space<vmem>>, vector<1x8x16xbf16>
    %374 = vector.shape_cast %373 : vector<1x8x16xbf16> to vector<8x16xbf16>
    %375 = vector.shape_cast %371 : vector<8x16xbf16> to vector<1x8x16xbf16>
    tpu.vector_store %arg8[%372, %c0_97, %c0_98], %375 {strides = array<i32>} : memref<4x8x16xbf16, #tpu.memory_space<vmem>>, vector<1x8x16xbf16>,
    %c3_i32_99 = arith.constant 3 : i32
    %c3_i32_100 = arith.constant 3 : i32
    %376 = arith.subi %c3_i32_100, %c3_i32_99 : i32
    %377 = arith.addi %30, %c3_i32_99 : i32
    %378 = vector.broadcast %377 : i32 to vector<8x1xi32>
    %379 = arith.cmpi slt, %378, %29 : vector<8x1xi32>
    %380 = arith.addi %32, %376 : i32
    %381 = vector.broadcast %380 : i32 to vector<8x1xi32>
    %382 = arith.cmpi slt, %381, %29 : vector<8x1xi32>
    %383 = arith.index_cast %c3_i32_99 : i32 to index
    %c0_101 = arith.constant 0 : index
    %c0_102 = arith.constant 0 : index
    %384 = vector.load %arg9[%383, %c0_101, %c0_102] : memref<4x8x64xf32, #tpu.memory_space<vmem>>, vector<1x8x64xf32>
    %385 = vector.shape_cast %384 : vector<1x8x64xf32> to vector<8x64xf32>
    %386 = arith.truncf %348 : vector<8x16xf32> to vector<8x16xbf16>
    %cst_103 = arith.constant dense<0.000000e+00> : vector<8x64xf32>
    %387 = tpu.matmul %386, %26, %cst_103 {dimension_numbers = #tpu.dot_dimension_numbers<[1], [0], [0], [1], [0, 0, 1, 1], [], []>} : vector<8x16xbf16>, vector<16x64xbf16>, vector<8x64xf32> -> vector<8x64xf32>
    %388 = arith.addf %385, %387 : vector<8x64xf32>
    %389 = arith.truncf %388 : vector<8x64xf32> to vector<8x64xbf16>
    %390 = vector.extract_strided_slice %389 {offsets = [0, 0], sizes = [8, 16], strides = [1, 1]} : vector<8x64xbf16> to vector<8x16xbf16>
    %391 = arith.negf %390 : vector<8x16xbf16>
    %392 = math.exp %391 : vector<8x16xbf16>
    %cst_104 = arith.constant 1.000000e+00 : bf16
    %393 = vector.broadcast %cst_104 : bf16 to vector<8x16xbf16>
    %394 = arith.addf %393, %392 : vector<8x16xbf16>
    %395 = arith.divf %393, %394 : vector<8x16xbf16>
    %396 = arith.extf %395 : vector<8x16xbf16> to vector<8x16xf32>
    %397 = vector.extract_strided_slice %389 {offsets = [0, 16], sizes = [8, 16], strides = [1, 1]} : vector<8x64xbf16> to vector<8x16xbf16>
    %398 = arith.negf %397 : vector<8x16xbf16>
    %399 = math.exp %398 : vector<8x16xbf16>
    %cst_105 = arith.constant 1.000000e+00 : bf16
    %400 = vector.broadcast %cst_105 : bf16 to vector<8x16xbf16>
    %401 = arith.addf %400, %399 : vector<8x16xbf16>
    %402 = arith.divf %400, %401 : vector<8x16xbf16>
    %403 = arith.extf %402 : vector<8x16xbf16> to vector<8x16xf32>
    %404 = vector.extract_strided_slice %389 {offsets = [0, 32], sizes = [8, 16], strides = [1, 1]} : vector<8x64xbf16> to vector<8x16xbf16>
    %405 = math.tanh %404 : vector<8x16xbf16>
    %406 = arith.extf %405 : vector<8x16xbf16> to vector<8x16xf32>
    %407 = vector.extract_strided_slice %389 {offsets = [0, 48], sizes = [8, 16], strides = [1, 1]} : vector<8x64xbf16> to vector<8x16xbf16>
    %408 = arith.negf %407 : vector<8x16xbf16>
    %409 = math.exp %408 : vector<8x16xbf16>
    %cst_106 = arith.constant 1.000000e+00 : bf16
    %410 = vector.broadcast %cst_106 : bf16 to vector<8x16xbf16>
    %411 = arith.addf %410, %409 : vector<8x16xbf16>
    %412 = arith.divf %410, %411 : vector<8x16xbf16>
    %413 = arith.extf %412 : vector<8x16xbf16> to vector<8x16xf32>
    %414 = arith.mulf %403, %351 : vector<8x16xf32>
    %415 = arith.mulf %396, %406 : vector<8x16xf32>
    %416 = arith.addf %414, %415 : vector<8x16xf32>
    %417 = arith.truncf %416 : vector<8x16xf32> to vector<8x16xbf16>
    %418 = math.tanh %417 : vector<8x16xbf16>
    %419 = arith.extf %418 : vector<8x16xbf16> to vector<8x16xf32>
    %420 = arith.mulf %413, %419 : vector<8x16xf32>
    %421 = arith.index_cast %376 : i32 to index
    %c0_107 = arith.constant 0 : index
    %c0_108 = arith.constant 0 : index
    %422 = vector.load %arg10[%421, %c0_107, %c0_108] : memref<4x8x64xf32, #tpu.memory_space<vmem>>, vector<1x8x64xf32>
    %423 = vector.shape_cast %422 : vector<1x8x64xf32> to vector<8x64xf32>
    %424 = arith.truncf %354 : vector<8x16xf32> to vector<8x16xbf16>
    %cst_109 = arith.constant dense<0.000000e+00> : vector<8x64xf32>
    %425 = tpu.matmul %424, %28, %cst_109 {dimension_numbers = #tpu.dot_dimension_numbers<[1], [0], [0], [1], [0, 0, 1, 1], [], []>} : vector<8x16xbf16>, vector<16x64xbf16>, vector<8x64xf32> -> vector<8x64xf32>
    %426 = arith.addf %423, %425 : vector<8x64xf32>
    %427 = arith.truncf %426 : vector<8x64xf32> to vector<8x64xbf16>
    %428 = vector.extract_strided_slice %427 {offsets = [0, 0], sizes = [8, 16], strides = [1, 1]} : vector<8x64xbf16> to vector<8x16xbf16>
    %429 = arith.negf %428 : vector<8x16xbf16>
    %430 = math.exp %429 : vector<8x16xbf16>
    %cst_110 = arith.constant 1.000000e+00 : bf16
    %431 = vector.broadcast %cst_110 : bf16 to vector<8x16xbf16>
    %432 = arith.addf %431, %430 : vector<8x16xbf16>
    %433 = arith.divf %431, %432 : vector<8x16xbf16>
    %434 = arith.extf %433 : vector<8x16xbf16> to vector<8x16xf32>
    %435 = vector.extract_strided_slice %427 {offsets = [0, 16], sizes = [8, 16], strides = [1, 1]} : vector<8x64xbf16> to vector<8x16xbf16>
    %436 = arith.negf %435 : vector<8x16xbf16>
    %437 = math.exp %436 : vector<8x16xbf16>
    %cst_111 = arith.constant 1.000000e+00 : bf16
    %438 = vector.broadcast %cst_111 : bf16 to vector<8x16xbf16>
    %439 = arith.addf %438, %437 : vector<8x16xbf16>
    %440 = arith.divf %438, %439 : vector<8x16xbf16>
    %441 = arith.extf %440 : vector<8x16xbf16> to vector<8x16xf32>
    %442 = vector.extract_strided_slice %427 {offsets = [0, 32], sizes = [8, 16], strides = [1, 1]} : vector<8x64xbf16> to vector<8x16xbf16>
    %443 = math.tanh %442 : vector<8x16xbf16>
    %444 = arith.extf %443 : vector<8x16xbf16> to vector<8x16xf32>
    %445 = vector.extract_strided_slice %427 {offsets = [0, 48], sizes = [8, 16], strides = [1, 1]} : vector<8x64xbf16> to vector<8x16xbf16>
    %446 = arith.negf %445 : vector<8x16xbf16>
    %447 = math.exp %446 : vector<8x16xbf16>
    %cst_112 = arith.constant 1.000000e+00 : bf16
    %448 = vector.broadcast %cst_112 : bf16 to vector<8x16xbf16>
    %449 = arith.addf %448, %447 : vector<8x16xbf16>
    %450 = arith.divf %448, %449 : vector<8x16xbf16>
    %451 = arith.extf %450 : vector<8x16xbf16> to vector<8x16xf32>
    %452 = arith.mulf %441, %357 : vector<8x16xf32>
    %453 = arith.mulf %434, %444 : vector<8x16xf32>
    %454 = arith.addf %452, %453 : vector<8x16xf32>
    %455 = arith.truncf %454 : vector<8x16xf32> to vector<8x16xbf16>
    %456 = math.tanh %455 : vector<8x16xbf16>
    %457 = arith.extf %456 : vector<8x16xbf16> to vector<8x16xf32>
    %458 = arith.mulf %451, %457 : vector<8x16xf32>
    %459 = vector.shape_cast %379 : vector<8x1xi1> to vector<8x1xi1>
    %460 = vector.broadcast %459 : vector<8x1xi1> to vector<8x16xi1>
    %461 = arith.select %460, %420, %348 : vector<8x16xi1>, vector<8x16xf32>
    %462 = vector.shape_cast %379 : vector<8x1xi1> to vector<8x1xi1>
    %463 = vector.broadcast %462 : vector<8x1xi1> to vector<8x16xi1>
    %464 = arith.select %463, %416, %351 : vector<8x16xi1>, vector<8x16xf32>
    %465 = vector.shape_cast %382 : vector<8x1xi1> to vector<8x1xi1>
    %466 = vector.broadcast %465 : vector<8x1xi1> to vector<8x16xi1>
    %467 = arith.select %466, %458, %354 : vector<8x16xi1>, vector<8x16xf32>
    %468 = vector.shape_cast %382 : vector<8x1xi1> to vector<8x1xi1>
    %469 = vector.broadcast %468 : vector<8x1xi1> to vector<8x16xi1>
    %470 = arith.select %469, %454, %357 : vector<8x16xi1>, vector<8x16xf32>
    %cst_113 = arith.constant 0.000000e+00 : f32
    %471 = vector.shape_cast %379 : vector<8x1xi1> to vector<8x1xi1>
    %472 = vector.broadcast %471 : vector<8x1xi1> to vector<8x16xi1>
    %473 = vector.broadcast %cst_113 : f32 to vector<8x16xf32>
    %474 = arith.select %472, %461, %473 : vector<8x16xi1>, vector<8x16xf32>
    %475 = arith.truncf %474 : vector<8x16xf32> to vector<8x16xbf16>
    %476 = arith.index_cast %c3_i32_99 : i32 to index
    %c0_114 = arith.constant 0 : index
    %c0_115 = arith.constant 0 : index
    %477 = vector.load %arg7[%476, %c0_114, %c0_115] : memref<4x8x16xbf16, #tpu.memory_space<vmem>>, vector<1x8x16xbf16>
    %478 = vector.shape_cast %477 : vector<1x8x16xbf16> to vector<8x16xbf16>
    %479 = vector.shape_cast %475 : vector<8x16xbf16> to vector<1x8x16xbf16>
    tpu.vector_store %arg7[%476, %c0_114, %c0_115], %479 {strides = array<i32>} : memref<4x8x16xbf16, #tpu.memory_space<vmem>>, vector<1x8x16xbf16>,
    %cst_116 = arith.constant 0.000000e+00 : f32
    %480 = vector.shape_cast %382 : vector<8x1xi1> to vector<8x1xi1>
    %481 = vector.broadcast %480 : vector<8x1xi1> to vector<8x16xi1>
    %482 = vector.broadcast %cst_116 : f32 to vector<8x16xf32>
    %483 = arith.select %481, %467, %482 : vector<8x16xi1>, vector<8x16xf32>
    %484 = arith.truncf %483 : vector<8x16xf32> to vector<8x16xbf16>
    %485 = arith.index_cast %376 : i32 to index
    %c0_117 = arith.constant 0 : index
    %c0_118 = arith.constant 0 : index
    %486 = vector.load %arg8[%485, %c0_117, %c0_118] : memref<4x8x16xbf16, #tpu.memory_space<vmem>>, vector<1x8x16xbf16>
    %487 = vector.shape_cast %486 : vector<1x8x16xbf16> to vector<8x16xbf16>
    %488 = vector.shape_cast %484 : vector<8x16xbf16> to vector<1x8x16xbf16>
    tpu.vector_store %arg8[%485, %c0_117, %c0_118], %488 {strides = array<i32>} : memref<4x8x16xbf16, #tpu.memory_space<vmem>>, vector<1x8x16xbf16>,
    %c4_i32_119 = arith.constant 4 : i32
    %c0_120 = arith.constant 0 : index
    %c0_121 = arith.constant 0 : index
    %489 = vector.load %arg11[%c0_120, %c0_121] : memref<8x16xf32, #tpu.memory_space<vmem>>, vector<8x16xf32>
    tpu.vector_store %arg11[%c0_120, %c0_121], %461 {strides = array<i32>} : memref<8x16xf32, #tpu.memory_space<vmem>>, vector<8x16xf32>,
    %c0_122 = arith.constant 0 : index
    %c0_123 = arith.constant 0 : index
    %490 = vector.load %arg12[%c0_122, %c0_123] : memref<8x16xf32, #tpu.memory_space<vmem>>, vector<8x16xf32>
    tpu.vector_store %arg12[%c0_122, %c0_123], %464 {strides = array<i32>} : memref<8x16xf32, #tpu.memory_space<vmem>>, vector<8x16xf32>,
    %c0_124 = arith.constant 0 : index
    %c0_125 = arith.constant 0 : index
    %491 = vector.load %arg13[%c0_124, %c0_125] : memref<8x16xf32, #tpu.memory_space<vmem>>, vector<8x16xf32>
    tpu.vector_store %arg13[%c0_124, %c0_125], %467 {strides = array<i32>} : memref<8x16xf32, #tpu.memory_space<vmem>>, vector<8x16xf32>,
    %c0_126 = arith.constant 0 : index
    %c0_127 = arith.constant 0 : index
    %492 = vector.load %arg14[%c0_126, %c0_127] : memref<8x16xf32, #tpu.memory_space<vmem>>, vector<8x16xf32>
    tpu.vector_store %arg14[%c0_126, %c0_127], %470 {strides = array<i32>} : memref<8x16xf32, #tpu.memory_space<vmem>>, vector<8x16xf32>,
    return
  }
  func.func @transform_0(%arg0: i32) -> (i32, i32, i32) {
    %c0_i32 = arith.constant 0 : i32
    %c0_i32_0 = arith.constant 0 : i32
    %c0_i32_1 = arith.constant 0 : i32
    return %arg0, %c0_i32, %c0_i32_0 : i32, i32, i32
  }
  func.func @transform_1(%arg0: i32) -> (i32, i32, i32) {
    %c1_i32 = arith.constant 1 : i32
    %0 = arith.subi %c1_i32, %arg0 : i32
    %c0_i32 = arith.constant 0 : i32
    %c0_i32_0 = arith.constant 0 : i32
    %c0_i32_1 = arith.constant 0 : i32
    return %0, %c0_i32, %c0_i32_0 : i32, i32, i32
  }
  func.func @transform_2(%arg0: i32) -> (i32, i32) {
    %c0_i32 = arith.constant 0 : i32
    %c0_i32_0 = arith.constant 0 : i32
    %c0_i32_1 = arith.constant 0 : i32
    return %c0_i32, %c0_i32_0 : i32, i32
  }
  func.func @transform_3(%arg0: i32) -> (i32, i32, i32) {
    %c0_i32 = arith.constant 0 : i32
    %c0_i32_0 = arith.constant 0 : i32
    %c0_i32_1 = arith.constant 0 : i32
    %c0_i32_2 = arith.constant 0 : i32
    return %c0_i32, %c0_i32_0, %c0_i32_1 : i32, i32, i32
  }
  func.func @transform_4(%arg0: i32) -> (i32, i32, i32) {
    %c0_i32 = arith.constant 0 : i32
    %c0_i32_0 = arith.constant 0 : i32
    %c0_i32_1 = arith.constant 0 : i32
    %c0_i32_2 = arith.constant 0 : i32
    return %c0_i32, %c0_i32_0, %c0_i32_1 : i32, i32, i32
  }
  func.func @transform_5(%arg0: i32) -> (i32, i32, i32) {
    %c0_i32 = arith.constant 0 : i32
    %c0_i32_0 = arith.constant 0 : i32
    %c0_i32_1 = arith.constant 0 : i32
    %c0_i32_2 = arith.constant 0 : i32
    return %c0_i32, %c0_i32_0, %c0_i32_1 : i32, i32, i32
  }
  func.func @transform_6(%arg0: i32) -> (i32, i32, i32) {
    %c0_i32 = arith.constant 0 : i32
    %c0_i32_0 = arith.constant 0 : i32
    %c0_i32_1 = arith.constant 0 : i32
    return %arg0, %c0_i32, %c0_i32_0 : i32, i32, i32
  }
  func.func @transform_7(%arg0: i32) -> (i32, i32, i32) {
    %c1_i32 = arith.constant 1 : i32
    %0 = arith.subi %c1_i32, %arg0 : i32
    %c0_i32 = arith.constant 0 : i32
    %c0_i32_0 = arith.constant 0 : i32
    %c0_i32_1 = arith.constant 0 : i32
    return %0, %c0_i32, %c0_i32_0 : i32, i32, i32
  }
}

module attributes {stable_mosaic.version = 11 : i64} {
  func.func @_fc_softmax_kernel(%arg0: i32, %arg1: memref<8x8x24xbf16, #tpu.memory_space<vmem>>, %arg2: memref<8x8x24xbf16, #tpu.memory_space<vmem>>, %arg3: memref<24x128xbf16, #tpu.memory_space<vmem>>, %arg4: memref<24x128xbf16, #tpu.memory_space<vmem>>, %arg5: memref<8x8x128xf32, #tpu.memory_space<vmem>>) attributes {dimension_semantics = [#tpu.dimension_semantics<parallel>], iteration_bounds = array<i64: 1>, scalar_prefetch = 0 : i64, scratch_operands = 0 : i64, tpu.core_type = #tpu.core_type<tc>, window_params = [{transform_indices = @transform_0, window_bounds = array<i64: 8, 8, 24>}, {transform_indices = @transform_1, window_bounds = array<i64: 8, 8, 24>}, {pipeline_mode = #tpu.pipeline_mode<synchronous>, transform_indices = @transform_2, window_bounds = array<i64: 24, 128>}, {pipeline_mode = #tpu.pipeline_mode<synchronous>, transform_indices = @transform_3, window_bounds = array<i64: 24, 128>}, {transform_indices = @transform_4, window_bounds = array<i64: 8, 8, 128>}]} {
    %c0 = arith.constant 0 : index
    %c0_0 = arith.constant 0 : index
    %c0_1 = arith.constant 0 : index
    %0 = vector.load %arg1[%c0, %c0_0, %c0_1] : memref<8x8x24xbf16, #tpu.memory_space<vmem>>, vector<8x8x24xbf16>
    %1 = vector.shape_cast %0 : vector<8x8x24xbf16> to vector<64x24xbf16>
    %c0_2 = arith.constant 0 : index
    %c0_3 = arith.constant 0 : index
    %c0_4 = arith.constant 0 : index
    %2 = vector.load %arg2[%c0_2, %c0_3, %c0_4] : memref<8x8x24xbf16, #tpu.memory_space<vmem>>, vector<8x8x24xbf16>
    %3 = vector.shape_cast %2 : vector<8x8x24xbf16> to vector<64x24xbf16>
    %c0_5 = arith.constant 0 : index
    %c0_6 = arith.constant 0 : index
    %4 = vector.load %arg3[%c0_5, %c0_6] : memref<24x128xbf16, #tpu.memory_space<vmem>>, vector<24x128xbf16>
    %cst = arith.constant dense<0.000000e+00> : vector<64x128xf32>
    %5 = tpu.matmul %1, %4, %cst {dimension_numbers = #tpu.dot_dimension_numbers<[1], [0], [0], [1], [0, 0, 1, 1], [], []>} : vector<64x24xbf16>, vector<24x128xbf16>, vector<64x128xf32> -> vector<64x128xf32>
    %c0_7 = arith.constant 0 : index
    %c0_8 = arith.constant 0 : index
    %6 = vector.load %arg4[%c0_7, %c0_8] : memref<24x128xbf16, #tpu.memory_space<vmem>>, vector<24x128xbf16>
    %cst_9 = arith.constant dense<0.000000e+00> : vector<64x128xf32>
    %7 = tpu.matmul %3, %6, %cst_9 {dimension_numbers = #tpu.dot_dimension_numbers<[1], [0], [0], [1], [0, 0, 1, 1], [], []>} : vector<64x24xbf16>, vector<24x128xbf16>, vector<64x128xf32> -> vector<64x128xf32>
    %8 = arith.addf %5, %7 : vector<64x128xf32>
    %9 = tpu.iota {dimensions = array<i32: 1>} : vector<64x128xi32>
    %c3_i32 = arith.constant 3 : i32
    %10 = vector.broadcast %c3_i32 : i32 to vector<64x128xi32>
    %11 = arith.cmpi slt, %9, %10 : vector<64x128xi32>
    %cst_10 = arith.constant -1.000000e+30 : f32
    %12 = vector.broadcast %cst_10 : f32 to vector<64x128xf32>
    %13 = arith.select %11, %8, %12 : vector<64x128xi1>, vector<64x128xf32>
    %cst_11 = arith.constant dense<0xFF800000> : vector<64xf32>
    %14 = vector.multi_reduction <maximumf>, %13, %cst_11 [1] : vector<64x128xf32> to vector<64xf32>
    %15 = vector.shape_cast %14 : vector<64xf32> to vector<64x1xf32>
    %16 = vector.broadcast %15 : vector<64x1xf32> to vector<64x128xf32>
    %17 = arith.subf %13, %16 : vector<64x128xf32>
    %18 = math.exp %17 : vector<64x128xf32>
    %cst_12 = arith.constant dense<0.000000e+00> : vector<64xf32>
    %19 = vector.multi_reduction <add>, %18, %cst_12 [1] : vector<64x128xf32> to vector<64xf32>
    %20 = vector.shape_cast %19 : vector<64xf32> to vector<64x1xf32>
    %21 = tpu.reciprocal %20 {approx = true} : vector<64x1xf32> -> vector<64x1xf32>
    %22 = vector.broadcast %21 : vector<64x1xf32> to vector<64x128xf32>
    %23 = arith.mulf %18, %22 : vector<64x128xf32>
    %24 = vector.shape_cast %23 : vector<64x128xf32> to vector<8x8x128xf32>
    %c0_13 = arith.constant 0 : index
    %c0_14 = arith.constant 0 : index
    %c0_15 = arith.constant 0 : index
    %25 = vector.load %arg5[%c0_13, %c0_14, %c0_15] : memref<8x8x128xf32, #tpu.memory_space<vmem>>, vector<8x8x128xf32>
    tpu.vector_store %arg5[%c0_13, %c0_14, %c0_15], %24 {strides = array<i32>} : memref<8x8x128xf32, #tpu.memory_space<vmem>>, vector<8x8x128xf32>,
    return
  }
  func.func @transform_0(%arg0: i32) -> (i32, i32, i32) {
    %c0_i32 = arith.constant 0 : i32
    %c0_i32_0 = arith.constant 0 : i32
    %c0_i32_1 = arith.constant 0 : i32
    return %arg0, %c0_i32, %c0_i32_0 : i32, i32, i32
  }
  func.func @transform_1(%arg0: i32) -> (i32, i32, i32) {
    %c0_i32 = arith.constant 0 : i32
    %c0_i32_0 = arith.constant 0 : i32
    %c0_i32_1 = arith.constant 0 : i32
    return %arg0, %c0_i32, %c0_i32_0 : i32, i32, i32
  }
  func.func @transform_2(%arg0: i32) -> (i32, i32) {
    %c0_i32 = arith.constant 0 : i32
    %c0_i32_0 = arith.constant 0 : i32
    %c0_i32_1 = arith.constant 0 : i32
    return %c0_i32, %c0_i32_0 : i32, i32
  }
  func.func @transform_3(%arg0: i32) -> (i32, i32) {
    %c0_i32 = arith.constant 0 : i32
    %c0_i32_0 = arith.constant 0 : i32
    %c0_i32_1 = arith.constant 0 : i32
    return %c0_i32, %c0_i32_0 : i32, i32
  }
  func.func @transform_4(%arg0: i32) -> (i32, i32, i32) {
    %c0_i32 = arith.constant 0 : i32
    %c0_i32_0 = arith.constant 0 : i32
    %c0_i32_1 = arith.constant 0 : i32
    return %arg0, %c0_i32, %c0_i32_0 : i32, i32, i32
  }
}

module attributes {stable_mosaic.version = 11 : i64} {
  func.func @_bilstm_fused_kernel(%arg0: i32, %arg1: memref<4x8x32xbf16, #tpu.memory_space<vmem>>, %arg2: memref<4x8x32xbf16, #tpu.memory_space<vmem>>, %arg3: memref<8x1xi32, #tpu.memory_space<vmem>>, %arg4: memref<2x32x96xbf16, #tpu.memory_space<vmem>>, %arg5: memref<2x1x96xf32, #tpu.memory_space<vmem>>, %arg6: memref<2x24x96xbf16, #tpu.memory_space<vmem>>, %arg7: memref<4x8x24xbf16, #tpu.memory_space<vmem>>, %arg8: memref<4x8x24xbf16, #tpu.memory_space<vmem>>, %arg9: memref<4x8x96xf32, #tpu.memory_space<vmem>>, %arg10: memref<4x8x96xf32, #tpu.memory_space<vmem>>, %arg11: memref<8x24xf32, #tpu.memory_space<vmem>>, %arg12: memref<8x24xf32, #tpu.memory_space<vmem>>, %arg13: memref<8x24xf32, #tpu.memory_space<vmem>>, %arg14: memref<8x24xf32, #tpu.memory_space<vmem>>) attributes {dimension_semantics = [#tpu.dimension_semantics<arbitrary>], iteration_bounds = array<i64: 2>, scalar_prefetch = 0 : i64, scratch_operands = 6 : i64, tpu.core_type = #tpu.core_type<tc>, window_params = [{transform_indices = @transform_0, window_bounds = array<i64: 4, 8, 32>}, {transform_indices = @transform_1, window_bounds = array<i64: 4, 8, 32>}, {pipeline_mode = #tpu.pipeline_mode<synchronous>, transform_indices = @transform_2, window_bounds = array<i64: 8, 1>}, {pipeline_mode = #tpu.pipeline_mode<synchronous>, transform_indices = @transform_3, window_bounds = array<i64: 2, 32, 96>}, {pipeline_mode = #tpu.pipeline_mode<synchronous>, transform_indices = @transform_4, window_bounds = array<i64: 2, 1, 96>}, {pipeline_mode = #tpu.pipeline_mode<synchronous>, transform_indices = @transform_5, window_bounds = array<i64: 2, 24, 96>}, {transform_indices = @transform_6, window_bounds = array<i64: 4, 8, 24>}, {transform_indices = @transform_7, window_bounds = array<i64: 4, 8, 24>}]} {
    %c0_i32 = arith.constant 0 : i32
    %0 = arith.cmpi eq, %arg0, %c0_i32 : i32
    %1 = arith.extui %0 : i1 to i32
    %c0_i32_0 = arith.constant 0 : i32
    %2 = arith.cmpi ne, %1, %c0_i32_0 : i32
    scf.if %2 {
      %cst_128 = arith.constant 0.000000e+00 : f32
      %493 = vector.broadcast %cst_128 : f32 to vector<8x24xf32>
      %c0_129 = arith.constant 0 : index
      %c0_130 = arith.constant 0 : index
      %494 = vector.load %arg11[%c0_129, %c0_130] : memref<8x24xf32, #tpu.memory_space<vmem>>, vector<8x24xf32>
      tpu.vector_store %arg11[%c0_129, %c0_130], %493 {strides = array<i32>} : memref<8x24xf32, #tpu.memory_space<vmem>>, vector<8x24xf32>,
      %cst_131 = arith.constant 0.000000e+00 : f32
      %495 = vector.broadcast %cst_131 : f32 to vector<8x24xf32>
      %c0_132 = arith.constant 0 : index
      %c0_133 = arith.constant 0 : index
      %496 = vector.load %arg12[%c0_132, %c0_133] : memref<8x24xf32, #tpu.memory_space<vmem>>, vector<8x24xf32>
      tpu.vector_store %arg12[%c0_132, %c0_133], %495 {strides = array<i32>} : memref<8x24xf32, #tpu.memory_space<vmem>>, vector<8x24xf32>,
      %cst_134 = arith.constant 0.000000e+00 : f32
      %497 = vector.broadcast %cst_134 : f32 to vector<8x24xf32>
      %c0_135 = arith.constant 0 : index
      %c0_136 = arith.constant 0 : index
      %498 = vector.load %arg13[%c0_135, %c0_136] : memref<8x24xf32, #tpu.memory_space<vmem>>, vector<8x24xf32>
      tpu.vector_store %arg13[%c0_135, %c0_136], %497 {strides = array<i32>} : memref<8x24xf32, #tpu.memory_space<vmem>>, vector<8x24xf32>,
      %cst_137 = arith.constant 0.000000e+00 : f32
      %499 = vector.broadcast %cst_137 : f32 to vector<8x24xf32>
      %c0_138 = arith.constant 0 : index
      %c0_139 = arith.constant 0 : index
      %500 = vector.load %arg14[%c0_138, %c0_139] : memref<8x24xf32, #tpu.memory_space<vmem>>, vector<8x24xf32>
      tpu.vector_store %arg14[%c0_138, %c0_139], %499 {strides = array<i32>} : memref<8x24xf32, #tpu.memory_space<vmem>>, vector<8x24xf32>,
    } else {
    }
    %c0 = arith.constant 0 : index
    %c0_1 = arith.constant 0 : index
    %c0_2 = arith.constant 0 : index
    %3 = vector.load %arg1[%c0, %c0_1, %c0_2] : memref<4x8x32xbf16, #tpu.memory_space<vmem>>, vector<4x8x32xbf16>
    %4 = vector.shape_cast %3 : vector<4x8x32xbf16> to vector<32x32xbf16>
    %c0_3 = arith.constant 0 : index
    %c0_4 = arith.constant 0 : index
    %c0_5 = arith.constant 0 : index
    %5 = vector.load %arg2[%c0_3, %c0_4, %c0_5] : memref<4x8x32xbf16, #tpu.memory_space<vmem>>, vector<4x8x32xbf16>
    %6 = vector.shape_cast %5 : vector<4x8x32xbf16> to vector<32x32xbf16>
    %c0_6 = arith.constant 0 : index
    %c0_7 = arith.constant 0 : index
    %c0_8 = arith.constant 0 : index
    %7 = vector.load %arg4[%c0_6, %c0_7, %c0_8] : memref<2x32x96xbf16, #tpu.memory_space<vmem>>, vector<1x32x96xbf16>
    %8 = vector.shape_cast %7 : vector<1x32x96xbf16> to vector<32x96xbf16>
    %cst = arith.constant dense<0.000000e+00> : vector<32x96xf32>
    %9 = tpu.matmul %4, %8, %cst {dimension_numbers = #tpu.dot_dimension_numbers<[1], [0], [0], [1], [0, 0, 1, 1], [], []>} : vector<32x32xbf16>, vector<32x96xbf16>, vector<32x96xf32> -> vector<32x96xf32>
    %c0_9 = arith.constant 0 : index
    %c0_10 = arith.constant 0 : index
    %c0_11 = arith.constant 0 : index
    %10 = vector.load %arg5[%c0_9, %c0_10, %c0_11] : memref<2x1x96xf32, #tpu.memory_space<vmem>>, vector<1x1x96xf32>
    %11 = vector.shape_cast %10 : vector<1x1x96xf32> to vector<1x96xf32>
    %12 = vector.broadcast %11 : vector<1x96xf32> to vector<32x96xf32>
    %13 = arith.addf %9, %12 : vector<32x96xf32>
    %14 = vector.shape_cast %13 : vector<32x96xf32> to vector<4x8x96xf32>
    %c0_12 = arith.constant 0 : index
    %c0_13 = arith.constant 0 : index
    %c0_14 = arith.constant 0 : index
    %15 = vector.load %arg9[%c0_12, %c0_13, %c0_14] : memref<4x8x96xf32, #tpu.memory_space<vmem>>, vector<4x8x96xf32>
    tpu.vector_store %arg9[%c0_12, %c0_13, %c0_14], %14 {strides = array<i32>} : memref<4x8x96xf32, #tpu.memory_space<vmem>>, vector<4x8x96xf32>,
    %c1 = arith.constant 1 : index
    %c0_15 = arith.constant 0 : index
    %c0_16 = arith.constant 0 : index
    %16 = vector.load %arg4[%c1, %c0_15, %c0_16] : memref<2x32x96xbf16, #tpu.memory_space<vmem>>, vector<1x32x96xbf16>
    %17 = vector.shape_cast %16 : vector<1x32x96xbf16> to vector<32x96xbf16>
    %cst_17 = arith.constant dense<0.000000e+00> : vector<32x96xf32>
    %18 = tpu.matmul %6, %17, %cst_17 {dimension_numbers = #tpu.dot_dimension_numbers<[1], [0], [0], [1], [0, 0, 1, 1], [], []>} : vector<32x32xbf16>, vector<32x96xbf16>, vector<32x96xf32> -> vector<32x96xf32>
    %c1_18 = arith.constant 1 : index
    %c0_19 = arith.constant 0 : index
    %c0_20 = arith.constant 0 : index
    %19 = vector.load %arg5[%c1_18, %c0_19, %c0_20] : memref<2x1x96xf32, #tpu.memory_space<vmem>>, vector<1x1x96xf32>
    %20 = vector.shape_cast %19 : vector<1x1x96xf32> to vector<1x96xf32>
    %21 = vector.broadcast %20 : vector<1x96xf32> to vector<32x96xf32>
    %22 = arith.addf %18, %21 : vector<32x96xf32>
    %23 = vector.shape_cast %22 : vector<32x96xf32> to vector<4x8x96xf32>
    %c0_21 = arith.constant 0 : index
    %c0_22 = arith.constant 0 : index
    %c0_23 = arith.constant 0 : index
    %24 = vector.load %arg10[%c0_21, %c0_22, %c0_23] : memref<4x8x96xf32, #tpu.memory_space<vmem>>, vector<4x8x96xf32>
    tpu.vector_store %arg10[%c0_21, %c0_22, %c0_23], %23 {strides = array<i32>} : memref<4x8x96xf32, #tpu.memory_space<vmem>>, vector<4x8x96xf32>,
    %c0_24 = arith.constant 0 : index
    %c0_25 = arith.constant 0 : index
    %c0_26 = arith.constant 0 : index
    %25 = vector.load %arg6[%c0_24, %c0_25, %c0_26] : memref<2x24x96xbf16, #tpu.memory_space<vmem>>, vector<1x24x96xbf16>
    %26 = vector.shape_cast %25 : vector<1x24x96xbf16> to vector<24x96xbf16>
    %c1_27 = arith.constant 1 : index
    %c0_28 = arith.constant 0 : index
    %c0_29 = arith.constant 0 : index
    %27 = vector.load %arg6[%c1_27, %c0_28, %c0_29] : memref<2x24x96xbf16, #tpu.memory_space<vmem>>, vector<1x24x96xbf16>
    %28 = vector.shape_cast %27 : vector<1x24x96xbf16> to vector<24x96xbf16>
    %c0_30 = arith.constant 0 : index
    %c0_31 = arith.constant 0 : index
    %29 = vector.load %arg3[%c0_30, %c0_31] : memref<8x1xi32, #tpu.memory_space<vmem>>, vector<8x1xi32>
    %c4_i32 = arith.constant 4 : i32
    %30 = arith.muli %arg0, %c4_i32 : i32
    %c1_i32 = arith.constant 1 : i32
    %31 = arith.subi %c1_i32, %arg0 : i32
    %c4_i32_32 = arith.constant 4 : i32
    %32 = arith.muli %31, %c4_i32_32 : i32
    %c0_33 = arith.constant 0 : index
    %c0_34 = arith.constant 0 : index
    %33 = vector.load %arg11[%c0_33, %c0_34] : memref<8x24xf32, #tpu.memory_space<vmem>>, vector<8x24xf32>
    %c0_35 = arith.constant 0 : index
    %c0_36 = arith.constant 0 : index
    %34 = vector.load %arg12[%c0_35, %c0_36] : memref<8x24xf32, #tpu.memory_space<vmem>>, vector<8x24xf32>
    %c0_37 = arith.constant 0 : index
    %c0_38 = arith.constant 0 : index
    %35 = vector.load %arg13[%c0_37, %c0_38] : memref<8x24xf32, #tpu.memory_space<vmem>>, vector<8x24xf32>
    %c0_39 = arith.constant 0 : index
    %c0_40 = arith.constant 0 : index
    %36 = vector.load %arg14[%c0_39, %c0_40] : memref<8x24xf32, #tpu.memory_space<vmem>>, vector<8x24xf32>
    %c0_i32_41 = arith.constant 0 : i32
    %c3_i32 = arith.constant 3 : i32
    %37 = arith.subi %c3_i32, %c0_i32_41 : i32
    %38 = arith.addi %30, %c0_i32_41 : i32
    %39 = vector.broadcast %38 : i32 to vector<8x1xi32>
    %40 = arith.cmpi slt, %39, %29 : vector<8x1xi32>
    %41 = arith.addi %32, %37 : i32
    %42 = vector.broadcast %41 : i32 to vector<8x1xi32>
    %43 = arith.cmpi slt, %42, %29 : vector<8x1xi32>
    %44 = arith.index_cast %c0_i32_41 : i32 to index
    %c0_42 = arith.constant 0 : index
    %c0_43 = arith.constant 0 : index
    %45 = vector.load %arg9[%44, %c0_42, %c0_43] : memref<4x8x96xf32, #tpu.memory_space<vmem>>, vector<1x8x96xf32>
    %46 = vector.shape_cast %45 : vector<1x8x96xf32> to vector<8x96xf32>
    %47 = arith.truncf %33 : vector<8x24xf32> to vector<8x24xbf16>
    %cst_44 = arith.constant dense<0.000000e+00> : vector<8x96xf32>
    %48 = tpu.matmul %47, %26, %cst_44 {dimension_numbers = #tpu.dot_dimension_numbers<[1], [0], [0], [1], [0, 0, 1, 1], [], []>} : vector<8x24xbf16>, vector<24x96xbf16>, vector<8x96xf32> -> vector<8x96xf32>
    %49 = arith.addf %46, %48 : vector<8x96xf32>
    %50 = arith.truncf %49 : vector<8x96xf32> to vector<8x96xbf16>
    %51 = vector.extract_strided_slice %50 {offsets = [0, 0], sizes = [8, 24], strides = [1, 1]} : vector<8x96xbf16> to vector<8x24xbf16>
    %52 = arith.negf %51 : vector<8x24xbf16>
    %53 = math.exp %52 : vector<8x24xbf16>
    %cst_45 = arith.constant 1.000000e+00 : bf16
    %54 = vector.broadcast %cst_45 : bf16 to vector<8x24xbf16>
    %55 = arith.addf %54, %53 : vector<8x24xbf16>
    %56 = arith.divf %54, %55 : vector<8x24xbf16>
    %57 = arith.extf %56 : vector<8x24xbf16> to vector<8x24xf32>
    %58 = vector.extract_strided_slice %50 {offsets = [0, 24], sizes = [8, 24], strides = [1, 1]} : vector<8x96xbf16> to vector<8x24xbf16>
    %59 = arith.negf %58 : vector<8x24xbf16>
    %60 = math.exp %59 : vector<8x24xbf16>
    %cst_46 = arith.constant 1.000000e+00 : bf16
    %61 = vector.broadcast %cst_46 : bf16 to vector<8x24xbf16>
    %62 = arith.addf %61, %60 : vector<8x24xbf16>
    %63 = arith.divf %61, %62 : vector<8x24xbf16>
    %64 = arith.extf %63 : vector<8x24xbf16> to vector<8x24xf32>
    %65 = vector.extract_strided_slice %50 {offsets = [0, 48], sizes = [8, 24], strides = [1, 1]} : vector<8x96xbf16> to vector<8x24xbf16>
    %66 = math.tanh %65 : vector<8x24xbf16>
    %67 = arith.extf %66 : vector<8x24xbf16> to vector<8x24xf32>
    %68 = vector.extract_strided_slice %50 {offsets = [0, 72], sizes = [8, 24], strides = [1, 1]} : vector<8x96xbf16> to vector<8x24xbf16>
    %69 = arith.negf %68 : vector<8x24xbf16>
    %70 = math.exp %69 : vector<8x24xbf16>
    %cst_47 = arith.constant 1.000000e+00 : bf16
    %71 = vector.broadcast %cst_47 : bf16 to vector<8x24xbf16>
    %72 = arith.addf %71, %70 : vector<8x24xbf16>
    %73 = arith.divf %71, %72 : vector<8x24xbf16>
    %74 = arith.extf %73 : vector<8x24xbf16> to vector<8x24xf32>
    %75 = arith.mulf %64, %34 : vector<8x24xf32>
    %76 = arith.mulf %57, %67 : vector<8x24xf32>
    %77 = arith.addf %75, %76 : vector<8x24xf32>
    %78 = arith.truncf %77 : vector<8x24xf32> to vector<8x24xbf16>
    %79 = math.tanh %78 : vector<8x24xbf16>
    %80 = arith.extf %79 : vector<8x24xbf16> to vector<8x24xf32>
    %81 = arith.mulf %74, %80 : vector<8x24xf32>
    %82 = arith.index_cast %37 : i32 to index
    %c0_48 = arith.constant 0 : index
    %c0_49 = arith.constant 0 : index
    %83 = vector.load %arg10[%82, %c0_48, %c0_49] : memref<4x8x96xf32, #tpu.memory_space<vmem>>, vector<1x8x96xf32>
    %84 = vector.shape_cast %83 : vector<1x8x96xf32> to vector<8x96xf32>
    %85 = arith.truncf %35 : vector<8x24xf32> to vector<8x24xbf16>
    %cst_50 = arith.constant dense<0.000000e+00> : vector<8x96xf32>
    %86 = tpu.matmul %85, %28, %cst_50 {dimension_numbers = #tpu.dot_dimension_numbers<[1], [0], [0], [1], [0, 0, 1, 1], [], []>} : vector<8x24xbf16>, vector<24x96xbf16>, vector<8x96xf32> -> vector<8x96xf32>
    %87 = arith.addf %84, %86 : vector<8x96xf32>
    %88 = arith.truncf %87 : vector<8x96xf32> to vector<8x96xbf16>
    %89 = vector.extract_strided_slice %88 {offsets = [0, 0], sizes = [8, 24], strides = [1, 1]} : vector<8x96xbf16> to vector<8x24xbf16>
    %90 = arith.negf %89 : vector<8x24xbf16>
    %91 = math.exp %90 : vector<8x24xbf16>
    %cst_51 = arith.constant 1.000000e+00 : bf16
    %92 = vector.broadcast %cst_51 : bf16 to vector<8x24xbf16>
    %93 = arith.addf %92, %91 : vector<8x24xbf16>
    %94 = arith.divf %92, %93 : vector<8x24xbf16>
    %95 = arith.extf %94 : vector<8x24xbf16> to vector<8x24xf32>
    %96 = vector.extract_strided_slice %88 {offsets = [0, 24], sizes = [8, 24], strides = [1, 1]} : vector<8x96xbf16> to vector<8x24xbf16>
    %97 = arith.negf %96 : vector<8x24xbf16>
    %98 = math.exp %97 : vector<8x24xbf16>
    %cst_52 = arith.constant 1.000000e+00 : bf16
    %99 = vector.broadcast %cst_52 : bf16 to vector<8x24xbf16>
    %100 = arith.addf %99, %98 : vector<8x24xbf16>
    %101 = arith.divf %99, %100 : vector<8x24xbf16>
    %102 = arith.extf %101 : vector<8x24xbf16> to vector<8x24xf32>
    %103 = vector.extract_strided_slice %88 {offsets = [0, 48], sizes = [8, 24], strides = [1, 1]} : vector<8x96xbf16> to vector<8x24xbf16>
    %104 = math.tanh %103 : vector<8x24xbf16>
    %105 = arith.extf %104 : vector<8x24xbf16> to vector<8x24xf32>
    %106 = vector.extract_strided_slice %88 {offsets = [0, 72], sizes = [8, 24], strides = [1, 1]} : vector<8x96xbf16> to vector<8x24xbf16>
    %107 = arith.negf %106 : vector<8x24xbf16>
    %108 = math.exp %107 : vector<8x24xbf16>
    %cst_53 = arith.constant 1.000000e+00 : bf16
    %109 = vector.broadcast %cst_53 : bf16 to vector<8x24xbf16>
    %110 = arith.addf %109, %108 : vector<8x24xbf16>
    %111 = arith.divf %109, %110 : vector<8x24xbf16>
    %112 = arith.extf %111 : vector<8x24xbf16> to vector<8x24xf32>
    %113 = arith.mulf %102, %36 : vector<8x24xf32>
    %114 = arith.mulf %95, %105 : vector<8x24xf32>
    %115 = arith.addf %113, %114 : vector<8x24xf32>
    %116 = arith.truncf %115 : vector<8x24xf32> to vector<8x24xbf16>
    %117 = math.tanh %116 : vector<8x24xbf16>
    %118 = arith.extf %117 : vector<8x24xbf16> to vector<8x24xf32>
    %119 = arith.mulf %112, %118 : vector<8x24xf32>
    %120 = vector.shape_cast %40 : vector<8x1xi1> to vector<8x1xi1>
    %121 = vector.broadcast %120 : vector<8x1xi1> to vector<8x24xi1>
    %122 = arith.select %121, %81, %33 : vector<8x24xi1>, vector<8x24xf32>
    %123 = vector.shape_cast %40 : vector<8x1xi1> to vector<8x1xi1>
    %124 = vector.broadcast %123 : vector<8x1xi1> to vector<8x24xi1>
    %125 = arith.select %124, %77, %34 : vector<8x24xi1>, vector<8x24xf32>
    %126 = vector.shape_cast %43 : vector<8x1xi1> to vector<8x1xi1>
    %127 = vector.broadcast %126 : vector<8x1xi1> to vector<8x24xi1>
    %128 = arith.select %127, %119, %35 : vector<8x24xi1>, vector<8x24xf32>
    %129 = vector.shape_cast %43 : vector<8x1xi1> to vector<8x1xi1>
    %130 = vector.broadcast %129 : vector<8x1xi1> to vector<8x24xi1>
    %131 = arith.select %130, %115, %36 : vector<8x24xi1>, vector<8x24xf32>
    %cst_54 = arith.constant 0.000000e+00 : f32
    %132 = vector.shape_cast %40 : vector<8x1xi1> to vector<8x1xi1>
    %133 = vector.broadcast %132 : vector<8x1xi1> to vector<8x24xi1>
    %134 = vector.broadcast %cst_54 : f32 to vector<8x24xf32>
    %135 = arith.select %133, %122, %134 : vector<8x24xi1>, vector<8x24xf32>
    %136 = arith.truncf %135 : vector<8x24xf32> to vector<8x24xbf16>
    %137 = arith.index_cast %c0_i32_41 : i32 to index
    %c0_55 = arith.constant 0 : index
    %c0_56 = arith.constant 0 : index
    %138 = vector.load %arg7[%137, %c0_55, %c0_56] : memref<4x8x24xbf16, #tpu.memory_space<vmem>>, vector<1x8x24xbf16>
    %139 = vector.shape_cast %138 : vector<1x8x24xbf16> to vector<8x24xbf16>
    %140 = vector.shape_cast %136 : vector<8x24xbf16> to vector<1x8x24xbf16>
    tpu.vector_store %arg7[%137, %c0_55, %c0_56], %140 {strides = array<i32>} : memref<4x8x24xbf16, #tpu.memory_space<vmem>>, vector<1x8x24xbf16>,
    %cst_57 = arith.constant 0.000000e+00 : f32
    %141 = vector.shape_cast %43 : vector<8x1xi1> to vector<8x1xi1>
    %142 = vector.broadcast %141 : vector<8x1xi1> to vector<8x24xi1>
    %143 = vector.broadcast %cst_57 : f32 to vector<8x24xf32>
    %144 = arith.select %142, %128, %143 : vector<8x24xi1>, vector<8x24xf32>
    %145 = arith.truncf %144 : vector<8x24xf32> to vector<8x24xbf16>
    %146 = arith.index_cast %37 : i32 to index
    %c0_58 = arith.constant 0 : index
    %c0_59 = arith.constant 0 : index
    %147 = vector.load %arg8[%146, %c0_58, %c0_59] : memref<4x8x24xbf16, #tpu.memory_space<vmem>>, vector<1x8x24xbf16>
    %148 = vector.shape_cast %147 : vector<1x8x24xbf16> to vector<8x24xbf16>
    %149 = vector.shape_cast %145 : vector<8x24xbf16> to vector<1x8x24xbf16>
    tpu.vector_store %arg8[%146, %c0_58, %c0_59], %149 {strides = array<i32>} : memref<4x8x24xbf16, #tpu.memory_space<vmem>>, vector<1x8x24xbf16>,
    %c1_i32_60 = arith.constant 1 : i32
    %c3_i32_61 = arith.constant 3 : i32
    %150 = arith.subi %c3_i32_61, %c1_i32_60 : i32
    %151 = arith.addi %30, %c1_i32_60 : i32
    %152 = vector.broadcast %151 : i32 to vector<8x1xi32>
    %153 = arith.cmpi slt, %152, %29 : vector<8x1xi32>
    %154 = arith.addi %32, %150 : i32
    %155 = vector.broadcast %154 : i32 to vector<8x1xi32>
    %156 = arith.cmpi slt, %155, %29 : vector<8x1xi32>
    %157 = arith.index_cast %c1_i32_60 : i32 to index
    %c0_62 = arith.constant 0 : index
    %c0_63 = arith.constant 0 : index
    %158 = vector.load %arg9[%157, %c0_62, %c0_63] : memref<4x8x96xf32, #tpu.memory_space<vmem>>, vector<1x8x96xf32>
    %159 = vector.shape_cast %158 : vector<1x8x96xf32> to vector<8x96xf32>
    %160 = arith.truncf %122 : vector<8x24xf32> to vector<8x24xbf16>
    %cst_64 = arith.constant dense<0.000000e+00> : vector<8x96xf32>
    %161 = tpu.matmul %160, %26, %cst_64 {dimension_numbers = #tpu.dot_dimension_numbers<[1], [0], [0], [1], [0, 0, 1, 1], [], []>} : vector<8x24xbf16>, vector<24x96xbf16>, vector<8x96xf32> -> vector<8x96xf32>
    %162 = arith.addf %159, %161 : vector<8x96xf32>
    %163 = arith.truncf %162 : vector<8x96xf32> to vector<8x96xbf16>
    %164 = vector.extract_strided_slice %163 {offsets = [0, 0], sizes = [8, 24], strides = [1, 1]} : vector<8x96xbf16> to vector<8x24xbf16>
    %165 = arith.negf %164 : vector<8x24xbf16>
    %166 = math.exp %165 : vector<8x24xbf16>
    %cst_65 = arith.constant 1.000000e+00 : bf16
    %167 = vector.broadcast %cst_65 : bf16 to vector<8x24xbf16>
    %168 = arith.addf %167, %166 : vector<8x24xbf16>
    %169 = arith.divf %167, %168 : vector<8x24xbf16>
    %170 = arith.extf %169 : vector<8x24xbf16> to vector<8x24xf32>
    %171 = vector.extract_strided_slice %163 {offsets = [0, 24], sizes = [8, 24], strides = [1, 1]} : vector<8x96xbf16> to vector<8x24xbf16>
    %172 = arith.negf %171 : vector<8x24xbf16>
    %173 = math.exp %172 : vector<8x24xbf16>
    %cst_66 = arith.constant 1.000000e+00 : bf16
    %174 = vector.broadcast %cst_66 : bf16 to vector<8x24xbf16>
    %175 = arith.addf %174, %173 : vector<8x24xbf16>
    %176 = arith.divf %174, %175 : vector<8x24xbf16>
    %177 = arith.extf %176 : vector<8x24xbf16> to vector<8x24xf32>
    %178 = vector.extract_strided_slice %163 {offsets = [0, 48], sizes = [8, 24], strides = [1, 1]} : vector<8x96xbf16> to vector<8x24xbf16>
    %179 = math.tanh %178 : vector<8x24xbf16>
    %180 = arith.extf %179 : vector<8x24xbf16> to vector<8x24xf32>
    %181 = vector.extract_strided_slice %163 {offsets = [0, 72], sizes = [8, 24], strides = [1, 1]} : vector<8x96xbf16> to vector<8x24xbf16>
    %182 = arith.negf %181 : vector<8x24xbf16>
    %183 = math.exp %182 : vector<8x24xbf16>
    %cst_67 = arith.constant 1.000000e+00 : bf16
    %184 = vector.broadcast %cst_67 : bf16 to vector<8x24xbf16>
    %185 = arith.addf %184, %183 : vector<8x24xbf16>
    %186 = arith.divf %184, %185 : vector<8x24xbf16>
    %187 = arith.extf %186 : vector<8x24xbf16> to vector<8x24xf32>
    %188 = arith.mulf %177, %125 : vector<8x24xf32>
    %189 = arith.mulf %170, %180 : vector<8x24xf32>
    %190 = arith.addf %188, %189 : vector<8x24xf32>
    %191 = arith.truncf %190 : vector<8x24xf32> to vector<8x24xbf16>
    %192 = math.tanh %191 : vector<8x24xbf16>
    %193 = arith.extf %192 : vector<8x24xbf16> to vector<8x24xf32>
    %194 = arith.mulf %187, %193 : vector<8x24xf32>
    %195 = arith.index_cast %150 : i32 to index
    %c0_68 = arith.constant 0 : index
    %c0_69 = arith.constant 0 : index
    %196 = vector.load %arg10[%195, %c0_68, %c0_69] : memref<4x8x96xf32, #tpu.memory_space<vmem>>, vector<1x8x96xf32>
    %197 = vector.shape_cast %196 : vector<1x8x96xf32> to vector<8x96xf32>
    %198 = arith.truncf %128 : vector<8x24xf32> to vector<8x24xbf16>
    %cst_70 = arith.constant dense<0.000000e+00> : vector<8x96xf32>
    %199 = tpu.matmul %198, %28, %cst_70 {dimension_numbers = #tpu.dot_dimension_numbers<[1], [0], [0], [1], [0, 0, 1, 1], [], []>} : vector<8x24xbf16>, vector<24x96xbf16>, vector<8x96xf32> -> vector<8x96xf32>
    %200 = arith.addf %197, %199 : vector<8x96xf32>
    %201 = arith.truncf %200 : vector<8x96xf32> to vector<8x96xbf16>
    %202 = vector.extract_strided_slice %201 {offsets = [0, 0], sizes = [8, 24], strides = [1, 1]} : vector<8x96xbf16> to vector<8x24xbf16>
    %203 = arith.negf %202 : vector<8x24xbf16>
    %204 = math.exp %203 : vector<8x24xbf16>
    %cst_71 = arith.constant 1.000000e+00 : bf16
    %205 = vector.broadcast %cst_71 : bf16 to vector<8x24xbf16>
    %206 = arith.addf %205, %204 : vector<8x24xbf16>
    %207 = arith.divf %205, %206 : vector<8x24xbf16>
    %208 = arith.extf %207 : vector<8x24xbf16> to vector<8x24xf32>
    %209 = vector.extract_strided_slice %201 {offsets = [0, 24], sizes = [8, 24], strides = [1, 1]} : vector<8x96xbf16> to vector<8x24xbf16>
    %210 = arith.negf %209 : vector<8x24xbf16>
    %211 = math.exp %210 : vector<8x24xbf16>
    %cst_72 = arith.constant 1.000000e+00 : bf16
    %212 = vector.broadcast %cst_72 : bf16 to vector<8x24xbf16>
    %213 = arith.addf %212, %211 : vector<8x24xbf16>
    %214 = arith.divf %212, %213 : vector<8x24xbf16>
    %215 = arith.extf %214 : vector<8x24xbf16> to vector<8x24xf32>
    %216 = vector.extract_strided_slice %201 {offsets = [0, 48], sizes = [8, 24], strides = [1, 1]} : vector<8x96xbf16> to vector<8x24xbf16>
    %217 = math.tanh %216 : vector<8x24xbf16>
    %218 = arith.extf %217 : vector<8x24xbf16> to vector<8x24xf32>
    %219 = vector.extract_strided_slice %201 {offsets = [0, 72], sizes = [8, 24], strides = [1, 1]} : vector<8x96xbf16> to vector<8x24xbf16>
    %220 = arith.negf %219 : vector<8x24xbf16>
    %221 = math.exp %220 : vector<8x24xbf16>
    %cst_73 = arith.constant 1.000000e+00 : bf16
    %222 = vector.broadcast %cst_73 : bf16 to vector<8x24xbf16>
    %223 = arith.addf %222, %221 : vector<8x24xbf16>
    %224 = arith.divf %222, %223 : vector<8x24xbf16>
    %225 = arith.extf %224 : vector<8x24xbf16> to vector<8x24xf32>
    %226 = arith.mulf %215, %131 : vector<8x24xf32>
    %227 = arith.mulf %208, %218 : vector<8x24xf32>
    %228 = arith.addf %226, %227 : vector<8x24xf32>
    %229 = arith.truncf %228 : vector<8x24xf32> to vector<8x24xbf16>
    %230 = math.tanh %229 : vector<8x24xbf16>
    %231 = arith.extf %230 : vector<8x24xbf16> to vector<8x24xf32>
    %232 = arith.mulf %225, %231 : vector<8x24xf32>
    %233 = vector.shape_cast %153 : vector<8x1xi1> to vector<8x1xi1>
    %234 = vector.broadcast %233 : vector<8x1xi1> to vector<8x24xi1>
    %235 = arith.select %234, %194, %122 : vector<8x24xi1>, vector<8x24xf32>
    %236 = vector.shape_cast %153 : vector<8x1xi1> to vector<8x1xi1>
    %237 = vector.broadcast %236 : vector<8x1xi1> to vector<8x24xi1>
    %238 = arith.select %237, %190, %125 : vector<8x24xi1>, vector<8x24xf32>
    %239 = vector.shape_cast %156 : vector<8x1xi1> to vector<8x1xi1>
    %240 = vector.broadcast %239 : vector<8x1xi1> to vector<8x24xi1>
    %241 = arith.select %240, %232, %128 : vector<8x24xi1>, vector<8x24xf32>
    %242 = vector.shape_cast %156 : vector<8x1xi1> to vector<8x1xi1>
    %243 = vector.broadcast %242 : vector<8x1xi1> to vector<8x24xi1>
    %244 = arith.select %243, %228, %131 : vector<8x24xi1>, vector<8x24xf32>
    %cst_74 = arith.constant 0.000000e+00 : f32
    %245 = vector.shape_cast %153 : vector<8x1xi1> to vector<8x1xi1>
    %246 = vector.broadcast %245 : vector<8x1xi1> to vector<8x24xi1>
    %247 = vector.broadcast %cst_74 : f32 to vector<8x24xf32>
    %248 = arith.select %246, %235, %247 : vector<8x24xi1>, vector<8x24xf32>
    %249 = arith.truncf %248 : vector<8x24xf32> to vector<8x24xbf16>
    %250 = arith.index_cast %c1_i32_60 : i32 to index
    %c0_75 = arith.constant 0 : index
    %c0_76 = arith.constant 0 : index
    %251 = vector.load %arg7[%250, %c0_75, %c0_76] : memref<4x8x24xbf16, #tpu.memory_space<vmem>>, vector<1x8x24xbf16>
    %252 = vector.shape_cast %251 : vector<1x8x24xbf16> to vector<8x24xbf16>
    %253 = vector.shape_cast %249 : vector<8x24xbf16> to vector<1x8x24xbf16>
    tpu.vector_store %arg7[%250, %c0_75, %c0_76], %253 {strides = array<i32>} : memref<4x8x24xbf16, #tpu.memory_space<vmem>>, vector<1x8x24xbf16>,
    %cst_77 = arith.constant 0.000000e+00 : f32
    %254 = vector.shape_cast %156 : vector<8x1xi1> to vector<8x1xi1>
    %255 = vector.broadcast %254 : vector<8x1xi1> to vector<8x24xi1>
    %256 = vector.broadcast %cst_77 : f32 to vector<8x24xf32>
    %257 = arith.select %255, %241, %256 : vector<8x24xi1>, vector<8x24xf32>
    %258 = arith.truncf %257 : vector<8x24xf32> to vector<8x24xbf16>
    %259 = arith.index_cast %150 : i32 to index
    %c0_78 = arith.constant 0 : index
    %c0_79 = arith.constant 0 : index
    %260 = vector.load %arg8[%259, %c0_78, %c0_79] : memref<4x8x24xbf16, #tpu.memory_space<vmem>>, vector<1x8x24xbf16>
    %261 = vector.shape_cast %260 : vector<1x8x24xbf16> to vector<8x24xbf16>
    %262 = vector.shape_cast %258 : vector<8x24xbf16> to vector<1x8x24xbf16>
    tpu.vector_store %arg8[%259, %c0_78, %c0_79], %262 {strides = array<i32>} : memref<4x8x24xbf16, #tpu.memory_space<vmem>>, vector<1x8x24xbf16>,
    %c2_i32 = arith.constant 2 : i32
    %c3_i32_80 = arith.constant 3 : i32
    %263 = arith.subi %c3_i32_80, %c2_i32 : i32
    %264 = arith.addi %30, %c2_i32 : i32
    %265 = vector.broadcast %264 : i32 to vector<8x1xi32>
    %266 = arith.cmpi slt, %265, %29 : vector<8x1xi32>
    %267 = arith.addi %32, %263 : i32
    %268 = vector.broadcast %267 : i32 to vector<8x1xi32>
    %269 = arith.cmpi slt, %268, %29 : vector<8x1xi32>
    %270 = arith.index_cast %c2_i32 : i32 to index
    %c0_81 = arith.constant 0 : index
    %c0_82 = arith.constant 0 : index
    %271 = vector.load %arg9[%270, %c0_81, %c0_82] : memref<4x8x96xf32, #tpu.memory_space<vmem>>, vector<1x8x96xf32>
    %272 = vector.shape_cast %271 : vector<1x8x96xf32> to vector<8x96xf32>
    %273 = arith.truncf %235 : vector<8x24xf32> to vector<8x24xbf16>
    %cst_83 = arith.constant dense<0.000000e+00> : vector<8x96xf32>
    %274 = tpu.matmul %273, %26, %cst_83 {dimension_numbers = #tpu.dot_dimension_numbers<[1], [0], [0], [1], [0, 0, 1, 1], [], []>} : vector<8x24xbf16>, vector<24x96xbf16>, vector<8x96xf32> -> vector<8x96xf32>
    %275 = arith.addf %272, %274 : vector<8x96xf32>
    %276 = arith.truncf %275 : vector<8x96xf32> to vector<8x96xbf16>
    %277 = vector.extract_strided_slice %276 {offsets = [0, 0], sizes = [8, 24], strides = [1, 1]} : vector<8x96xbf16> to vector<8x24xbf16>
    %278 = arith.negf %277 : vector<8x24xbf16>
    %279 = math.exp %278 : vector<8x24xbf16>
    %cst_84 = arith.constant 1.000000e+00 : bf16
    %280 = vector.broadcast %cst_84 : bf16 to vector<8x24xbf16>
    %281 = arith.addf %280, %279 : vector<8x24xbf16>
    %282 = arith.divf %280, %281 : vector<8x24xbf16>
    %283 = arith.extf %282 : vector<8x24xbf16> to vector<8x24xf32>
    %284 = vector.extract_strided_slice %276 {offsets = [0, 24], sizes = [8, 24], strides = [1, 1]} : vector<8x96xbf16> to vector<8x24xbf16>
    %285 = arith.negf %284 : vector<8x24xbf16>
    %286 = math.exp %285 : vector<8x24xbf16>
    %cst_85 = arith.constant 1.000000e+00 : bf16
    %287 = vector.broadcast %cst_85 : bf16 to vector<8x24xbf16>
    %288 = arith.addf %287, %286 : vector<8x24xbf16>
    %289 = arith.divf %287, %288 : vector<8x24xbf16>
    %290 = arith.extf %289 : vector<8x24xbf16> to vector<8x24xf32>
    %291 = vector.extract_strided_slice %276 {offsets = [0, 48], sizes = [8, 24], strides = [1, 1]} : vector<8x96xbf16> to vector<8x24xbf16>
    %292 = math.tanh %291 : vector<8x24xbf16>
    %293 = arith.extf %292 : vector<8x24xbf16> to vector<8x24xf32>
    %294 = vector.extract_strided_slice %276 {offsets = [0, 72], sizes = [8, 24], strides = [1, 1]} : vector<8x96xbf16> to vector<8x24xbf16>
    %295 = arith.negf %294 : vector<8x24xbf16>
    %296 = math.exp %295 : vector<8x24xbf16>
    %cst_86 = arith.constant 1.000000e+00 : bf16
    %297 = vector.broadcast %cst_86 : bf16 to vector<8x24xbf16>
    %298 = arith.addf %297, %296 : vector<8x24xbf16>
    %299 = arith.divf %297, %298 : vector<8x24xbf16>
    %300 = arith.extf %299 : vector<8x24xbf16> to vector<8x24xf32>
    %301 = arith.mulf %290, %238 : vector<8x24xf32>
    %302 = arith.mulf %283, %293 : vector<8x24xf32>
    %303 = arith.addf %301, %302 : vector<8x24xf32>
    %304 = arith.truncf %303 : vector<8x24xf32> to vector<8x24xbf16>
    %305 = math.tanh %304 : vector<8x24xbf16>
    %306 = arith.extf %305 : vector<8x24xbf16> to vector<8x24xf32>
    %307 = arith.mulf %300, %306 : vector<8x24xf32>
    %308 = arith.index_cast %263 : i32 to index
    %c0_87 = arith.constant 0 : index
    %c0_88 = arith.constant 0 : index
    %309 = vector.load %arg10[%308, %c0_87, %c0_88] : memref<4x8x96xf32, #tpu.memory_space<vmem>>, vector<1x8x96xf32>
    %310 = vector.shape_cast %309 : vector<1x8x96xf32> to vector<8x96xf32>
    %311 = arith.truncf %241 : vector<8x24xf32> to vector<8x24xbf16>
    %cst_89 = arith.constant dense<0.000000e+00> : vector<8x96xf32>
    %312 = tpu.matmul %311, %28, %cst_89 {dimension_numbers = #tpu.dot_dimension_numbers<[1], [0], [0], [1], [0, 0, 1, 1], [], []>} : vector<8x24xbf16>, vector<24x96xbf16>, vector<8x96xf32> -> vector<8x96xf32>
    %313 = arith.addf %310, %312 : vector<8x96xf32>
    %314 = arith.truncf %313 : vector<8x96xf32> to vector<8x96xbf16>
    %315 = vector.extract_strided_slice %314 {offsets = [0, 0], sizes = [8, 24], strides = [1, 1]} : vector<8x96xbf16> to vector<8x24xbf16>
    %316 = arith.negf %315 : vector<8x24xbf16>
    %317 = math.exp %316 : vector<8x24xbf16>
    %cst_90 = arith.constant 1.000000e+00 : bf16
    %318 = vector.broadcast %cst_90 : bf16 to vector<8x24xbf16>
    %319 = arith.addf %318, %317 : vector<8x24xbf16>
    %320 = arith.divf %318, %319 : vector<8x24xbf16>
    %321 = arith.extf %320 : vector<8x24xbf16> to vector<8x24xf32>
    %322 = vector.extract_strided_slice %314 {offsets = [0, 24], sizes = [8, 24], strides = [1, 1]} : vector<8x96xbf16> to vector<8x24xbf16>
    %323 = arith.negf %322 : vector<8x24xbf16>
    %324 = math.exp %323 : vector<8x24xbf16>
    %cst_91 = arith.constant 1.000000e+00 : bf16
    %325 = vector.broadcast %cst_91 : bf16 to vector<8x24xbf16>
    %326 = arith.addf %325, %324 : vector<8x24xbf16>
    %327 = arith.divf %325, %326 : vector<8x24xbf16>
    %328 = arith.extf %327 : vector<8x24xbf16> to vector<8x24xf32>
    %329 = vector.extract_strided_slice %314 {offsets = [0, 48], sizes = [8, 24], strides = [1, 1]} : vector<8x96xbf16> to vector<8x24xbf16>
    %330 = math.tanh %329 : vector<8x24xbf16>
    %331 = arith.extf %330 : vector<8x24xbf16> to vector<8x24xf32>
    %332 = vector.extract_strided_slice %314 {offsets = [0, 72], sizes = [8, 24], strides = [1, 1]} : vector<8x96xbf16> to vector<8x24xbf16>
    %333 = arith.negf %332 : vector<8x24xbf16>
    %334 = math.exp %333 : vector<8x24xbf16>
    %cst_92 = arith.constant 1.000000e+00 : bf16
    %335 = vector.broadcast %cst_92 : bf16 to vector<8x24xbf16>
    %336 = arith.addf %335, %334 : vector<8x24xbf16>
    %337 = arith.divf %335, %336 : vector<8x24xbf16>
    %338 = arith.extf %337 : vector<8x24xbf16> to vector<8x24xf32>
    %339 = arith.mulf %328, %244 : vector<8x24xf32>
    %340 = arith.mulf %321, %331 : vector<8x24xf32>
    %341 = arith.addf %339, %340 : vector<8x24xf32>
    %342 = arith.truncf %341 : vector<8x24xf32> to vector<8x24xbf16>
    %343 = math.tanh %342 : vector<8x24xbf16>
    %344 = arith.extf %343 : vector<8x24xbf16> to vector<8x24xf32>
    %345 = arith.mulf %338, %344 : vector<8x24xf32>
    %346 = vector.shape_cast %266 : vector<8x1xi1> to vector<8x1xi1>
    %347 = vector.broadcast %346 : vector<8x1xi1> to vector<8x24xi1>
    %348 = arith.select %347, %307, %235 : vector<8x24xi1>, vector<8x24xf32>
    %349 = vector.shape_cast %266 : vector<8x1xi1> to vector<8x1xi1>
    %350 = vector.broadcast %349 : vector<8x1xi1> to vector<8x24xi1>
    %351 = arith.select %350, %303, %238 : vector<8x24xi1>, vector<8x24xf32>
    %352 = vector.shape_cast %269 : vector<8x1xi1> to vector<8x1xi1>
    %353 = vector.broadcast %352 : vector<8x1xi1> to vector<8x24xi1>
    %354 = arith.select %353, %345, %241 : vector<8x24xi1>, vector<8x24xf32>
    %355 = vector.shape_cast %269 : vector<8x1xi1> to vector<8x1xi1>
    %356 = vector.broadcast %355 : vector<8x1xi1> to vector<8x24xi1>
    %357 = arith.select %356, %341, %244 : vector<8x24xi1>, vector<8x24xf32>
    %cst_93 = arith.constant 0.000000e+00 : f32
    %358 = vector.shape_cast %266 : vector<8x1xi1> to vector<8x1xi1>
    %359 = vector.broadcast %358 : vector<8x1xi1> to vector<8x24xi1>
    %360 = vector.broadcast %cst_93 : f32 to vector<8x24xf32>
    %361 = arith.select %359, %348, %360 : vector<8x24xi1>, vector<8x24xf32>
    %362 = arith.truncf %361 : vector<8x24xf32> to vector<8x24xbf16>
    %363 = arith.index_cast %c2_i32 : i32 to index
    %c0_94 = arith.constant 0 : index
    %c0_95 = arith.constant 0 : index
    %364 = vector.load %arg7[%363, %c0_94, %c0_95] : memref<4x8x24xbf16, #tpu.memory_space<vmem>>, vector<1x8x24xbf16>
    %365 = vector.shape_cast %364 : vector<1x8x24xbf16> to vector<8x24xbf16>
    %366 = vector.shape_cast %362 : vector<8x24xbf16> to vector<1x8x24xbf16>
    tpu.vector_store %arg7[%363, %c0_94, %c0_95], %366 {strides = array<i32>} : memref<4x8x24xbf16, #tpu.memory_space<vmem>>, vector<1x8x24xbf16>,
    %cst_96 = arith.constant 0.000000e+00 : f32
    %367 = vector.shape_cast %269 : vector<8x1xi1> to vector<8x1xi1>
    %368 = vector.broadcast %367 : vector<8x1xi1> to vector<8x24xi1>
    %369 = vector.broadcast %cst_96 : f32 to vector<8x24xf32>
    %370 = arith.select %368, %354, %369 : vector<8x24xi1>, vector<8x24xf32>
    %371 = arith.truncf %370 : vector<8x24xf32> to vector<8x24xbf16>
    %372 = arith.index_cast %263 : i32 to index
    %c0_97 = arith.constant 0 : index
    %c0_98 = arith.constant 0 : index
    %373 = vector.load %arg8[%372, %c0_97, %c0_98] : memref<4x8x24xbf16, #tpu.memory_space<vmem>>, vector<1x8x24xbf16>
    %374 = vector.shape_cast %373 : vector<1x8x24xbf16> to vector<8x24xbf16>
    %375 = vector.shape_cast %371 : vector<8x24xbf16> to vector<1x8x24xbf16>
    tpu.vector_store %arg8[%372, %c0_97, %c0_98], %375 {strides = array<i32>} : memref<4x8x24xbf16, #tpu.memory_space<vmem>>, vector<1x8x24xbf16>,
    %c3_i32_99 = arith.constant 3 : i32
    %c3_i32_100 = arith.constant 3 : i32
    %376 = arith.subi %c3_i32_100, %c3_i32_99 : i32
    %377 = arith.addi %30, %c3_i32_99 : i32
    %378 = vector.broadcast %377 : i32 to vector<8x1xi32>
    %379 = arith.cmpi slt, %378, %29 : vector<8x1xi32>
    %380 = arith.addi %32, %376 : i32
    %381 = vector.broadcast %380 : i32 to vector<8x1xi32>
    %382 = arith.cmpi slt, %381, %29 : vector<8x1xi32>
    %383 = arith.index_cast %c3_i32_99 : i32 to index
    %c0_101 = arith.constant 0 : index
    %c0_102 = arith.constant 0 : index
    %384 = vector.load %arg9[%383, %c0_101, %c0_102] : memref<4x8x96xf32, #tpu.memory_space<vmem>>, vector<1x8x96xf32>
    %385 = vector.shape_cast %384 : vector<1x8x96xf32> to vector<8x96xf32>
    %386 = arith.truncf %348 : vector<8x24xf32> to vector<8x24xbf16>
    %cst_103 = arith.constant dense<0.000000e+00> : vector<8x96xf32>
    %387 = tpu.matmul %386, %26, %cst_103 {dimension_numbers = #tpu.dot_dimension_numbers<[1], [0], [0], [1], [0, 0, 1, 1], [], []>} : vector<8x24xbf16>, vector<24x96xbf16>, vector<8x96xf32> -> vector<8x96xf32>
    %388 = arith.addf %385, %387 : vector<8x96xf32>
    %389 = arith.truncf %388 : vector<8x96xf32> to vector<8x96xbf16>
    %390 = vector.extract_strided_slice %389 {offsets = [0, 0], sizes = [8, 24], strides = [1, 1]} : vector<8x96xbf16> to vector<8x24xbf16>
    %391 = arith.negf %390 : vector<8x24xbf16>
    %392 = math.exp %391 : vector<8x24xbf16>
    %cst_104 = arith.constant 1.000000e+00 : bf16
    %393 = vector.broadcast %cst_104 : bf16 to vector<8x24xbf16>
    %394 = arith.addf %393, %392 : vector<8x24xbf16>
    %395 = arith.divf %393, %394 : vector<8x24xbf16>
    %396 = arith.extf %395 : vector<8x24xbf16> to vector<8x24xf32>
    %397 = vector.extract_strided_slice %389 {offsets = [0, 24], sizes = [8, 24], strides = [1, 1]} : vector<8x96xbf16> to vector<8x24xbf16>
    %398 = arith.negf %397 : vector<8x24xbf16>
    %399 = math.exp %398 : vector<8x24xbf16>
    %cst_105 = arith.constant 1.000000e+00 : bf16
    %400 = vector.broadcast %cst_105 : bf16 to vector<8x24xbf16>
    %401 = arith.addf %400, %399 : vector<8x24xbf16>
    %402 = arith.divf %400, %401 : vector<8x24xbf16>
    %403 = arith.extf %402 : vector<8x24xbf16> to vector<8x24xf32>
    %404 = vector.extract_strided_slice %389 {offsets = [0, 48], sizes = [8, 24], strides = [1, 1]} : vector<8x96xbf16> to vector<8x24xbf16>
    %405 = math.tanh %404 : vector<8x24xbf16>
    %406 = arith.extf %405 : vector<8x24xbf16> to vector<8x24xf32>
    %407 = vector.extract_strided_slice %389 {offsets = [0, 72], sizes = [8, 24], strides = [1, 1]} : vector<8x96xbf16> to vector<8x24xbf16>
    %408 = arith.negf %407 : vector<8x24xbf16>
    %409 = math.exp %408 : vector<8x24xbf16>
    %cst_106 = arith.constant 1.000000e+00 : bf16
    %410 = vector.broadcast %cst_106 : bf16 to vector<8x24xbf16>
    %411 = arith.addf %410, %409 : vector<8x24xbf16>
    %412 = arith.divf %410, %411 : vector<8x24xbf16>
    %413 = arith.extf %412 : vector<8x24xbf16> to vector<8x24xf32>
    %414 = arith.mulf %403, %351 : vector<8x24xf32>
    %415 = arith.mulf %396, %406 : vector<8x24xf32>
    %416 = arith.addf %414, %415 : vector<8x24xf32>
    %417 = arith.truncf %416 : vector<8x24xf32> to vector<8x24xbf16>
    %418 = math.tanh %417 : vector<8x24xbf16>
    %419 = arith.extf %418 : vector<8x24xbf16> to vector<8x24xf32>
    %420 = arith.mulf %413, %419 : vector<8x24xf32>
    %421 = arith.index_cast %376 : i32 to index
    %c0_107 = arith.constant 0 : index
    %c0_108 = arith.constant 0 : index
    %422 = vector.load %arg10[%421, %c0_107, %c0_108] : memref<4x8x96xf32, #tpu.memory_space<vmem>>, vector<1x8x96xf32>
    %423 = vector.shape_cast %422 : vector<1x8x96xf32> to vector<8x96xf32>
    %424 = arith.truncf %354 : vector<8x24xf32> to vector<8x24xbf16>
    %cst_109 = arith.constant dense<0.000000e+00> : vector<8x96xf32>
    %425 = tpu.matmul %424, %28, %cst_109 {dimension_numbers = #tpu.dot_dimension_numbers<[1], [0], [0], [1], [0, 0, 1, 1], [], []>} : vector<8x24xbf16>, vector<24x96xbf16>, vector<8x96xf32> -> vector<8x96xf32>
    %426 = arith.addf %423, %425 : vector<8x96xf32>
    %427 = arith.truncf %426 : vector<8x96xf32> to vector<8x96xbf16>
    %428 = vector.extract_strided_slice %427 {offsets = [0, 0], sizes = [8, 24], strides = [1, 1]} : vector<8x96xbf16> to vector<8x24xbf16>
    %429 = arith.negf %428 : vector<8x24xbf16>
    %430 = math.exp %429 : vector<8x24xbf16>
    %cst_110 = arith.constant 1.000000e+00 : bf16
    %431 = vector.broadcast %cst_110 : bf16 to vector<8x24xbf16>
    %432 = arith.addf %431, %430 : vector<8x24xbf16>
    %433 = arith.divf %431, %432 : vector<8x24xbf16>
    %434 = arith.extf %433 : vector<8x24xbf16> to vector<8x24xf32>
    %435 = vector.extract_strided_slice %427 {offsets = [0, 24], sizes = [8, 24], strides = [1, 1]} : vector<8x96xbf16> to vector<8x24xbf16>
    %436 = arith.negf %435 : vector<8x24xbf16>
    %437 = math.exp %436 : vector<8x24xbf16>
    %cst_111 = arith.constant 1.000000e+00 : bf16
    %438 = vector.broadcast %cst_111 : bf16 to vector<8x24xbf16>
    %439 = arith.addf %438, %437 : vector<8x24xbf16>
    %440 = arith.divf %438, %439 : vector<8x24xbf16>
    %441 = arith.extf %440 : vector<8x24xbf16> to vector<8x24xf32>
    %442 = vector.extract_strided_slice %427 {offsets = [0, 48], sizes = [8, 24], strides = [1, 1]} : vector<8x96xbf16> to vector<8x24xbf16>
    %443 = math.tanh %442 : vector<8x24xbf16>
    %444 = arith.extf %443 : vector<8x24xbf16> to vector<8x24xf32>
    %445 = vector.extract_strided_slice %427 {offsets = [0, 72], sizes = [8, 24], strides = [1, 1]} : vector<8x96xbf16> to vector<8x24xbf16>
    %446 = arith.negf %445 : vector<8x24xbf16>
    %447 = math.exp %446 : vector<8x24xbf16>
    %cst_112 = arith.constant 1.000000e+00 : bf16
    %448 = vector.broadcast %cst_112 : bf16 to vector<8x24xbf16>
    %449 = arith.addf %448, %447 : vector<8x24xbf16>
    %450 = arith.divf %448, %449 : vector<8x24xbf16>
    %451 = arith.extf %450 : vector<8x24xbf16> to vector<8x24xf32>
    %452 = arith.mulf %441, %357 : vector<8x24xf32>
    %453 = arith.mulf %434, %444 : vector<8x24xf32>
    %454 = arith.addf %452, %453 : vector<8x24xf32>
    %455 = arith.truncf %454 : vector<8x24xf32> to vector<8x24xbf16>
    %456 = math.tanh %455 : vector<8x24xbf16>
    %457 = arith.extf %456 : vector<8x24xbf16> to vector<8x24xf32>
    %458 = arith.mulf %451, %457 : vector<8x24xf32>
    %459 = vector.shape_cast %379 : vector<8x1xi1> to vector<8x1xi1>
    %460 = vector.broadcast %459 : vector<8x1xi1> to vector<8x24xi1>
    %461 = arith.select %460, %420, %348 : vector<8x24xi1>, vector<8x24xf32>
    %462 = vector.shape_cast %379 : vector<8x1xi1> to vector<8x1xi1>
    %463 = vector.broadcast %462 : vector<8x1xi1> to vector<8x24xi1>
    %464 = arith.select %463, %416, %351 : vector<8x24xi1>, vector<8x24xf32>
    %465 = vector.shape_cast %382 : vector<8x1xi1> to vector<8x1xi1>
    %466 = vector.broadcast %465 : vector<8x1xi1> to vector<8x24xi1>
    %467 = arith.select %466, %458, %354 : vector<8x24xi1>, vector<8x24xf32>
    %468 = vector.shape_cast %382 : vector<8x1xi1> to vector<8x1xi1>
    %469 = vector.broadcast %468 : vector<8x1xi1> to vector<8x24xi1>
    %470 = arith.select %469, %454, %357 : vector<8x24xi1>, vector<8x24xf32>
    %cst_113 = arith.constant 0.000000e+00 : f32
    %471 = vector.shape_cast %379 : vector<8x1xi1> to vector<8x1xi1>
    %472 = vector.broadcast %471 : vector<8x1xi1> to vector<8x24xi1>
    %473 = vector.broadcast %cst_113 : f32 to vector<8x24xf32>
    %474 = arith.select %472, %461, %473 : vector<8x24xi1>, vector<8x24xf32>
    %475 = arith.truncf %474 : vector<8x24xf32> to vector<8x24xbf16>
    %476 = arith.index_cast %c3_i32_99 : i32 to index
    %c0_114 = arith.constant 0 : index
    %c0_115 = arith.constant 0 : index
    %477 = vector.load %arg7[%476, %c0_114, %c0_115] : memref<4x8x24xbf16, #tpu.memory_space<vmem>>, vector<1x8x24xbf16>
    %478 = vector.shape_cast %477 : vector<1x8x24xbf16> to vector<8x24xbf16>
    %479 = vector.shape_cast %475 : vector<8x24xbf16> to vector<1x8x24xbf16>
    tpu.vector_store %arg7[%476, %c0_114, %c0_115], %479 {strides = array<i32>} : memref<4x8x24xbf16, #tpu.memory_space<vmem>>, vector<1x8x24xbf16>,
    %cst_116 = arith.constant 0.000000e+00 : f32
    %480 = vector.shape_cast %382 : vector<8x1xi1> to vector<8x1xi1>
    %481 = vector.broadcast %480 : vector<8x1xi1> to vector<8x24xi1>
    %482 = vector.broadcast %cst_116 : f32 to vector<8x24xf32>
    %483 = arith.select %481, %467, %482 : vector<8x24xi1>, vector<8x24xf32>
    %484 = arith.truncf %483 : vector<8x24xf32> to vector<8x24xbf16>
    %485 = arith.index_cast %376 : i32 to index
    %c0_117 = arith.constant 0 : index
    %c0_118 = arith.constant 0 : index
    %486 = vector.load %arg8[%485, %c0_117, %c0_118] : memref<4x8x24xbf16, #tpu.memory_space<vmem>>, vector<1x8x24xbf16>
    %487 = vector.shape_cast %486 : vector<1x8x24xbf16> to vector<8x24xbf16>
    %488 = vector.shape_cast %484 : vector<8x24xbf16> to vector<1x8x24xbf16>
    tpu.vector_store %arg8[%485, %c0_117, %c0_118], %488 {strides = array<i32>} : memref<4x8x24xbf16, #tpu.memory_space<vmem>>, vector<1x8x24xbf16>,
    %c4_i32_119 = arith.constant 4 : i32
    %c0_120 = arith.constant 0 : index
    %c0_121 = arith.constant 0 : index
    %489 = vector.load %arg11[%c0_120, %c0_121] : memref<8x24xf32, #tpu.memory_space<vmem>>, vector<8x24xf32>
    tpu.vector_store %arg11[%c0_120, %c0_121], %461 {strides = array<i32>} : memref<8x24xf32, #tpu.memory_space<vmem>>, vector<8x24xf32>,
    %c0_122 = arith.constant 0 : index
    %c0_123 = arith.constant 0 : index
    %490 = vector.load %arg12[%c0_122, %c0_123] : memref<8x24xf32, #tpu.memory_space<vmem>>, vector<8x24xf32>
    tpu.vector_store %arg12[%c0_122, %c0_123], %464 {strides = array<i32>} : memref<8x24xf32, #tpu.memory_space<vmem>>, vector<8x24xf32>,
    %c0_124 = arith.constant 0 : index
    %c0_125 = arith.constant 0 : index
    %491 = vector.load %arg13[%c0_124, %c0_125] : memref<8x24xf32, #tpu.memory_space<vmem>>, vector<8x24xf32>
    tpu.vector_store %arg13[%c0_124, %c0_125], %467 {strides = array<i32>} : memref<8x24xf32, #tpu.memory_space<vmem>>, vector<8x24xf32>,
    %c0_126 = arith.constant 0 : index
    %c0_127 = arith.constant 0 : index
    %492 = vector.load %arg14[%c0_126, %c0_127] : memref<8x24xf32, #tpu.memory_space<vmem>>, vector<8x24xf32>
    tpu.vector_store %arg14[%c0_126, %c0_127], %470 {strides = array<i32>} : memref<8x24xf32, #tpu.memory_space<vmem>>, vector<8x24xf32>,
    return
  }
  func.func @transform_0(%arg0: i32) -> (i32, i32, i32) {
    %c0_i32 = arith.constant 0 : i32
    %c0_i32_0 = arith.constant 0 : i32
    %c0_i32_1 = arith.constant 0 : i32
    return %arg0, %c0_i32, %c0_i32_0 : i32, i32, i32
  }
  func.func @transform_1(%arg0: i32) -> (i32, i32, i32) {
    %c1_i32 = arith.constant 1 : i32
    %0 = arith.subi %c1_i32, %arg0 : i32
    %c0_i32 = arith.constant 0 : i32
    %c0_i32_0 = arith.constant 0 : i32
    %c0_i32_1 = arith.constant 0 : i32
    return %0, %c0_i32, %c0_i32_0 : i32, i32, i32
  }
  func.func @transform_2(%arg0: i32) -> (i32, i32) {
    %c0_i32 = arith.constant 0 : i32
    %c0_i32_0 = arith.constant 0 : i32
    %c0_i32_1 = arith.constant 0 : i32
    return %c0_i32, %c0_i32_0 : i32, i32
  }
  func.func @transform_3(%arg0: i32) -> (i32, i32, i32) {
    %c0_i32 = arith.constant 0 : i32
    %c0_i32_0 = arith.constant 0 : i32
    %c0_i32_1 = arith.constant 0 : i32
    %c0_i32_2 = arith.constant 0 : i32
    return %c0_i32, %c0_i32_0, %c0_i32_1 : i32, i32, i32
  }
  func.func @transform_4(%arg0: i32) -> (i32, i32, i32) {
    %c0_i32 = arith.constant 0 : i32
    %c0_i32_0 = arith.constant 0 : i32
    %c0_i32_1 = arith.constant 0 : i32
    %c0_i32_2 = arith.constant 0 : i32
    return %c0_i32, %c0_i32_0, %c0_i32_1 : i32, i32, i32
  }
  func.func @transform_5(%arg0: i32) -> (i32, i32, i32) {
    %c0_i32 = arith.constant 0 : i32
    %c0_i32_0 = arith.constant 0 : i32
    %c0_i32_1 = arith.constant 0 : i32
    %c0_i32_2 = arith.constant 0 : i32
    return %c0_i32, %c0_i32_0, %c0_i32_1 : i32, i32, i32
  }
  func.func @transform_6(%arg0: i32) -> (i32, i32, i32) {
    %c0_i32 = arith.constant 0 : i32
    %c0_i32_0 = arith.constant 0 : i32
    %c0_i32_1 = arith.constant 0 : i32
    return %arg0, %c0_i32, %c0_i32_0 : i32, i32, i32
  }
  func.func @transform_7(%arg0: i32) -> (i32, i32, i32) {
    %c1_i32 = arith.constant 1 : i32
    %0 = arith.subi %c1_i32, %arg0 : i32
    %c0_i32 = arith.constant 0 : i32
    %c0_i32_0 = arith.constant 0 : i32
    %c0_i32_1 = arith.constant 0 : i32
    return %0, %c0_i32, %c0_i32_0 : i32, i32, i32
  }
}

</mosaic_0001>

<llo_original>
// kernel: ct_forward.5
$region0: #{ct_forward.5}
  #allocation0 [shape = 'u32[]', space=smem, size = 0x4, offset = 0x4, fixed_abs, tag = 'smem constant byte address 0x4 - core index']
  #allocation1 [shape = 'u32[144,128]{1,0:T(1,128)}', space=vmem, size = 0x12000, scoped, tag = 'internal scratch']
  %s0 = inlined_call_operand.vmem [shape: bf16[8,8,16], index: 0, kind: input, shape index: {}]
  %s1 = inlined_call_operand.vmem [shape: bf16[8,8,16], index: 1, kind: input, shape index: {}]
  %s2 = inlined_call_operand.vmem [shape: f32[8,32], index: 2, kind: input, shape index: {}]
  %s3 = inlined_call_operand.vmem [shape: bf16[16,32], index: 3, kind: input, shape index: {}]
  %s4 = inlined_call_operand.vmem [shape: bf16[16,32], index: 4, kind: input, shape index: {}]
  %s5 = inlined_call_operand.vmem [shape: bf16[8,8,32], index: 5, kind: output, shape index: {}]
  %s6 = sld [smem:[#allocation0]]
  $region30: #{ct_forward.5} parent=0
    _
  %s8 = ssub.s32 1, %s6
  %s9 = scalar_select 0, %s8, %s6
  // Predicated region
  $region2: #{ct_forward.5} parent=0 // pred_check
    _
  $region3: #{ct_forward.5} parent=0 // pred_check_branch
    %11 = sbr.rel (0) target = $region5
  $region4: #{ct_forward.5} parent=0 // pred_region
    _
  $region5: #{ct_forward.5} parent=0 // pred_fallthru
    _
  // Predicated region
  $region6: #{ct_forward.5} parent=0 // pred_check
    _
  $region7: #{ct_forward.5} parent=0 // pred_check_branch
    %13 = sbr.rel (0) target = $region9
  $region8: #{ct_forward.5} parent=0 // pred_region
    _
  $region9: #{ct_forward.5} parent=0 // pred_fallthru
    _
  // Predicated region
  $region10: #{ct_forward.5} parent=0 // pred_check
    _
  $region11: #{ct_forward.5} parent=0 // pred_check_branch
    %15 = sbr.rel (0) target = $region13
  $region12: #{ct_forward.5} parent=0 // pred_region
    _
  $region13: #{ct_forward.5} parent=0 // pred_fallthru
    _
  // Predicated region
  $region14: #{ct_forward.5} parent=0 // pred_check
    _
  $region15: #{ct_forward.5} parent=0 // pred_check_branch
    %17 = sbr.rel (0) target = $region17
  $region16: #{ct_forward.5} parent=0 // pred_region
    _
  $region17: #{ct_forward.5} parent=0 // pred_fallthru
    _
  // Predicated region
  $region18: #{ct_forward.5} parent=0 // pred_check
    _
  $region19: #{ct_forward.5} parent=0 // pred_check_branch
    %19 = sbr.rel (0) target = $region21
  $region20: #{ct_forward.5} parent=0 // pred_region
    _
  $region21: #{ct_forward.5} parent=0 // pred_fallthru
    _
  %v21 = vld [vmem:[%s0] sm:$0xf]
  %v22 = vld [vmem:[%s0 + $0x4] sm:$0xf]
  %v23 = vld [vmem:[%s0 + $0x8] sm:$0xf]
  %v24 = vld [vmem:[%s0 + $0xc] sm:$0xf]
  %v25 = vld [vmem:[%s0 + $0x10] sm:$0xf]
  %v26 = vld [vmem:[%s0 + $0x14] sm:$0xf]
  %v27 = vld [vmem:[%s0 + $0x18] sm:$0xf]
  %v28 = vld [vmem:[%s0 + $0x1c] sm:$0xf]
  %v29 = vld [vmem:[%s1] sm:$0xf]
  %v30 = vld [vmem:[%s1 + $0x4] sm:$0xf]
  %v31 = vld [vmem:[%s1 + $0x8] sm:$0xf]
  %v32 = vld [vmem:[%s1 + $0xc] sm:$0xf]
  %v33 = vld [vmem:[%s1 + $0x10] sm:$0xf]
  %v34 = vld [vmem:[%s1 + $0x14] sm:$0xf]
  %v35 = vld [vmem:[%s1 + $0x18] sm:$0xf]
  %v36 = vld [vmem:[%s1 + $0x1c] sm:$0xf]
  %v37 = vld [vmem:[%s3] sm:$0xf]
  %v38 = vld [vmem:[%s3 + $0x4] sm:$0xf]
  %v39 = vld [vmem:[%s4] sm:$0xf]
  %v40 = vld [vmem:[%s4 + $0x4] sm:$0xf]
  %v49 = vunpack.c.l.b16 %v29
  %v50 = vunpack.c.l.b16 %v30
  %v51 = vunpack.c.l.b16 %v31
  %v52 = vunpack.c.l.b16 %v32
  %v53 = vunpack.c.l.b16 %v33
  %v54 = vunpack.c.l.b16 %v34
  %v55 = vunpack.c.l.b16 %v35
  %v56 = vunpack.c.l.b16 %v36
  %v57 = vpack.c.b16 %v50, %v49
  %v58 = vpack.c.b16 %v52, %v51
  %v59 = vpack.c.b16 %v54, %v53
  %v60 = vpack.c.b16 %v56, %v55
  %v63 = vunpack.c.l.b16 %v39
  %v64 = vunpack.c.l.b16 %v40
  %v65 = vpack.c.b16 %v64, %v63
  %vm67 = vcmask 130048
  %v69 = vsel %vm67, %v57, 0
  %v72 = vsel %vm67, %v58, 0
  %v75 = vsel %vm67, %v59, 0
  %v78 = vsel %vm67, %v60, 0
  %80 = vmatprep.subr.bf16.mxu0 0
  %81 = vmatpush1.bf16.msra.mxu0 0
  %82 = vmatprep.subr.bf16.mxu0 0
  %83 = vmatpush1.bf16.msra.mxu0 0
  %84 = vmatprep.subr.bf16.mxu0 0
  %85 = vmatpush1.bf16.msra.mxu0 0
  %86 = vmatprep.subr.bf16.mxu0 0
  %87 = vmatpush1.bf16.msra.mxu0 0
  %88 = vmatprep.subr.bf16.mxu0 0
  %89 = vmatpush1.bf16.msra.mxu0 0
  %90 = vmatprep.subr.bf16.mxu0 0
  %91 = vmatpush1.bf16.msra.mxu0 0
  %92 = vmatprep.subr.bf16.mxu0 0
  %93 = vmatpush1.bf16.msra.mxu0 0
  %94 = vmatprep.subr.bf16.mxu0 0
  %95 = vmatpush1.bf16.msra.mxu0 %v65
  %96 = vmatprep.subr.bf16.mxu0 0
  %97 = vmatpush2.bf16.msra.mxu0 0
  %98 = vmatprep.subr.bf16.mxu0 0
  %99 = vmatpush2.bf16.msra.mxu0 0
  %100 = vmatprep.subr.bf16.mxu0 0
  %101 = vmatpush2.bf16.msra.mxu0 0
  %102 = vmatprep.subr.bf16.mxu0 0
  %103 = vmatpush2.bf16.msra.mxu0 0
  %104 = vmatprep.subr.bf16.mxu0 0
  %105 = vmatpush2.bf16.msra.mxu0 0
  %106 = vmatprep.subr.bf16.mxu0 0
  %107 = vmatpush2.bf16.msra.mxu0 0
  %108 = vmatprep.subr.bf16.mxu0 0
  %109 = vmatpush2.bf16.msra.mxu0 0
  %110 = vmatprep.subr.bf16.mxu0 0
  %111 = vmatpush2.bf16.msra.mxu0 0
  %112 = vmatprep.mubr.bf16.mxu0 0
  %113 = vmatmul.mubr.bf16.gmra.mxu0 %v69
  %v114 = vpop.f32.mrf.mxu0
  %v115 = vadd.f32 0.0, %v114
  %v116 = vpop.f32.mrf.mxu0
  %v117 = vpop.f32.mrf.mxu0
  %v118 = vadd.f32 0.0, %v117
  %v119 = vpop.f32.mrf.mxu0
  %120 = vmatprep.mubr.bf16.mxu0 0
  %121 = vmatmul.mubr.bf16.gmra.mxu0 %v72
  %v122 = vpop.f32.mrf.mxu0
  %v123 = vadd.f32 0.0, %v122
  %v124 = vpop.f32.mrf.mxu0
  %v125 = vpop.f32.mrf.mxu0
  %v126 = vadd.f32 0.0, %v125
  %v127 = vpop.f32.mrf.mxu0
  %128 = vmatprep.mubr.bf16.mxu0 0
  %129 = vmatmul.mubr.bf16.gmra.mxu0 %v75
  %v130 = vpop.f32.mrf.mxu0
  %v131 = vadd.f32 0.0, %v130
  %v132 = vpop.f32.mrf.mxu0
  %v133 = vpop.f32.mrf.mxu0
  %v134 = vadd.f32 0.0, %v133
  %v135 = vpop.f32.mrf.mxu0
  %136 = vmatprep.mubr.bf16.mxu0 0
  %137 = vmatmul.mubr.bf16.gmra.mxu0 %v78
  %v138 = vpop.f32.mrf.mxu0
  %v139 = vadd.f32 0.0, %v138
  %v140 = vpop.f32.mrf.mxu0
  %v141 = vpop.f32.mrf.mxu0
  %v142 = vadd.f32 0.0, %v141
  %v143 = vpop.f32.mrf.mxu0
  %144 = vdwg.mxu0
  %v153 = vunpack.c.l.b16 %v21
  %v154 = vunpack.c.l.b16 %v22
  %v155 = vunpack.c.l.b16 %v23
  %v156 = vunpack.c.l.b16 %v24
  %v157 = vunpack.c.l.b16 %v25
  %v158 = vunpack.c.l.b16 %v26
  %v159 = vunpack.c.l.b16 %v27
  %v160 = vunpack.c.l.b16 %v28
  %v161 = vpack.c.b16 %v154, %v153
  %v162 = vpack.c.b16 %v156, %v155
  %v163 = vpack.c.b16 %v158, %v157
  %v164 = vpack.c.b16 %v160, %v159
  %v167 = vunpack.c.l.b16 %v37
  %v168 = vunpack.c.l.b16 %v38
  %v169 = vpack.c.b16 %v168, %v167
  %v172 = vsel %vm67, %v161, 0
  %v175 = vsel %vm67, %v162, 0
  %v178 = vsel %vm67, %v163, 0
  %v181 = vsel %vm67, %v164, 0
  %183 = vmatprep.subr.bf16.mxu0 0
  %184 = vmatpush1.bf16.msra.mxu0 0
  %185 = vmatprep.subr.bf16.mxu0 0
  %186 = vmatpush1.bf16.msra.mxu0 0
  %187 = vmatprep.subr.bf16.mxu0 0
  %188 = vmatpush1.bf16.msra.mxu0 0
  %189 = vmatprep.subr.bf16.mxu0 0
  %190 = vmatpush1.bf16.msra.mxu0 0
  %191 = vmatprep.subr.bf16.mxu0 0
  %192 = vmatpush1.bf16.msra.mxu0 0
  %193 = vmatprep.subr.bf16.mxu0 0
  %194 = vmatpush1.bf16.msra.mxu0 0
  %195 = vmatprep.subr.bf16.mxu0 0
  %196 = vmatpush1.bf16.msra.mxu0 0
  %197 = vmatprep.subr.bf16.mxu0 0
  %198 = vmatpush1.bf16.msra.mxu0 %v169
  %199 = vmatprep.subr.bf16.mxu0 0
  %200 = vmatpush2.bf16.msra.mxu0 0
  %201 = vmatprep.subr.bf16.mxu0 0
  %202 = vmatpush2.bf16.msra.mxu0 0
  %203 = vmatprep.subr.bf16.mxu0 0
  %204 = vmatpush2.bf16.msra.mxu0 0
  %205 = vmatprep.subr.bf16.mxu0 0
  %206 = vmatpush2.bf16.msra.mxu0 0
  %207 = vmatprep.subr.bf16.mxu0 0
  %208 = vmatpush2.bf16.msra.mxu0 0
  %209 = vmatprep.subr.bf16.mxu0 0
  %210 = vmatpush2.bf16.msra.mxu0 0
  %211 = vmatprep.subr.bf16.mxu0 0
  %212 = vmatpush2.bf16.msra.mxu0 0
  %213 = vmatprep.subr.bf16.mxu0 0
  %214 = vmatpush2.bf16.msra.mxu0 0
  %215 = vmatprep.mubr.bf16.mxu0 0
  %216 = vmatmul.mubr.bf16.gmra.mxu0 %v172
  %v217 = vpop.f32.mrf.mxu0
  %v218 = vadd.f32 %v115, %v217
  %v219 = vpop.f32.mrf.mxu0
  %v220 = vpop.f32.mrf.mxu0
  %v221 = vadd.f32 %v118, %v220
  %v222 = vpop.f32.mrf.mxu0
  %223 = vmatprep.mubr.bf16.mxu0 0
  %224 = vmatmul.mubr.bf16.gmra.mxu0 %v175
  %v225 = vpop.f32.mrf.mxu0
  %v226 = vadd.f32 %v123, %v225
  %v227 = vpop.f32.mrf.mxu0
  %v228 = vpop.f32.mrf.mxu0
  %v229 = vadd.f32 %v126, %v228
  %v230 = vpop.f32.mrf.mxu0
  %231 = vmatprep.mubr.bf16.mxu0 0
  %232 = vmatmul.mubr.bf16.gmra.mxu0 %v178
  %v233 = vpop.f32.mrf.mxu0
  %v234 = vadd.f32 %v131, %v233
  %v235 = vpop.f32.mrf.mxu0
  %v236 = vpop.f32.mrf.mxu0
  %v237 = vadd.f32 %v134, %v236
  %v238 = vpop.f32.mrf.mxu0
  %239 = vmatprep.mubr.bf16.mxu0 0
  %240 = vmatmul.mubr.bf16.gmra.mxu0 %v181
  %v241 = vpop.f32.mrf.mxu0
  %v242 = vadd.f32 %v139, %v241
  %v243 = vpop.f32.mrf.mxu0
  %v244 = vpop.f32.mrf.mxu0
  %v245 = vadd.f32 %v142, %v244
  %v246 = vpop.f32.mrf.mxu0
  %247 = vdwg.mxu0
  %v248 = vld [vmem:[%s2] sm:$0xff]
  %v249 = vadd.f32 %v218, %v248
  %v250 = vadd.f32 %v221, %v248
  %v251 = vadd.f32 %v226, %v248
  %v252 = vadd.f32 %v229, %v248
  %v253 = vadd.f32 %v234, %v248
  %v254 = vadd.f32 %v237, %v248
  %v255 = vadd.f32 %v242, %v248
  %v256 = vadd.f32 %v245, %v248
  %v257 = vpack.c.bf16 %v249, %v249
  %v258 = vpack.c.bf16 %v250, %v250
  %v259 = vpack.c.bf16 %v251, %v251
  %v260 = vpack.c.bf16 %v252, %v252
  %v261 = vpack.c.bf16 %v253, %v253
  %v262 = vpack.c.bf16 %v254, %v254
  %v263 = vpack.c.bf16 %v255, %v255
  %v264 = vpack.c.bf16 %v256, %v256
  %vm265 = vcmask 257024
  %266 = vst.msk [vmem:[%s5] sm:$0xf] %vm265, %v257
  %267 = vst.msk [vmem:[%s5 + $0x4] sm:$0xf] %vm265, %v258
  %268 = vst.msk [vmem:[%s5 + $0x8] sm:$0xf] %vm265, %v259
  %269 = vst.msk [vmem:[%s5 + $0xc] sm:$0xf] %vm265, %v260
  %270 = vst.msk [vmem:[%s5 + $0x10] sm:$0xf] %vm265, %v261
  %271 = vst.msk [vmem:[%s5 + $0x14] sm:$0xf] %vm265, %v262
  %272 = vst.msk [vmem:[%s5 + $0x18] sm:$0xf] %vm265, %v263
  %273 = vst.msk [vmem:[%s5 + $0x1c] sm:$0xf] %vm265, %v264
  // Predicated region
  $region22: #{ct_forward.5} parent=0 // pred_check
    _
  $region23: #{ct_forward.5} parent=0 // pred_check_branch
    %275 = sbr.rel (0) target = $region25
  $region24: #{ct_forward.5} parent=0 // pred_region
    _
  $region25: #{ct_forward.5} parent=0 // pred_fallthru
    _
  // Predicated region
  $region26: #{ct_forward.5} parent=0 // pred_check
    _
  $region27: #{ct_forward.5} parent=0 // pred_check_branch
    %277 = sbr.rel (0) target = $region29
  $region28: #{ct_forward.5} parent=0 // pred_region
    _
  $region29: #{ct_forward.5} parent=0 // pred_fallthru
    _

// kernel: ct_forward.7
$region0: #{ct_forward.7}
  #allocation0 [shape = 'u32[]', space=smem, size = 0x4, offset = 0x4, fixed_abs, tag = 'smem constant byte address 0x4 - core index']
  #allocation1 [shape = 'u32[144,128]{1,0:T(1,128)}', space=vmem, size = 0x12000, scoped, tag = 'internal scratch']
  %s0 = inlined_call_operand.vmem [shape: bf16[8,8,24], index: 0, kind: input, shape index: {}]
  %s1 = inlined_call_operand.vmem [shape: bf16[8,8,24], index: 1, kind: input, shape index: {}]
  %s2 = inlined_call_operand.vmem [shape: bf16[24,128], index: 2, kind: input, shape index: {}]
  %s3 = inlined_call_operand.vmem [shape: bf16[24,128], index: 3, kind: input, shape index: {}]
  %s4 = inlined_call_operand.vmem [shape: f32[8,8,128], index: 4, kind: output, shape index: {}]
  %s5 = sld [smem:[#allocation0]]
  $region26: #{ct_forward.7} parent=0
    _
  %s7 = ssub.s32 1, %s5
  %s8 = scalar_select 0, %s7, %s5
  // Predicated region
  $region2: #{ct_forward.7} parent=0 // pred_check
    _
  $region3: #{ct_forward.7} parent=0 // pred_check_branch
    %10 = sbr.rel (0) target = $region5
  $region4: #{ct_forward.7} parent=0 // pred_region
    _
  $region5: #{ct_forward.7} parent=0 // pred_fallthru
    _
  // Predicated region
  $region6: #{ct_forward.7} parent=0 // pred_check
    _
  $region7: #{ct_forward.7} parent=0 // pred_check_branch
    %12 = sbr.rel (0) target = $region9
  $region8: #{ct_forward.7} parent=0 // pred_region
    _
  $region9: #{ct_forward.7} parent=0 // pred_fallthru
    _
  // Predicated region
  $region10: #{ct_forward.7} parent=0 // pred_check
    _
  $region11: #{ct_forward.7} parent=0 // pred_check_branch
    %14 = sbr.rel (0) target = $region13
  $region12: #{ct_forward.7} parent=0 // pred_region
    _
  $region13: #{ct_forward.7} parent=0 // pred_fallthru
    _
  // Predicated region
  $region14: #{ct_forward.7} parent=0 // pred_check
    _
  $region15: #{ct_forward.7} parent=0 // pred_check_branch
    %16 = sbr.rel (0) target = $region17
  $region16: #{ct_forward.7} parent=0 // pred_region
    _
  $region17: #{ct_forward.7} parent=0 // pred_fallthru
    _
  %v18 = vld [vmem:[%s0] sm:$0xf]
  %v19 = vld [vmem:[%s0 + $0x4] sm:$0xf]
  %v20 = vld [vmem:[%s0 + $0x8] sm:$0xf]
  %v21 = vld [vmem:[%s0 + $0xc] sm:$0xf]
  %v22 = vld [vmem:[%s0 + $0x10] sm:$0xf]
  %v23 = vld [vmem:[%s0 + $0x14] sm:$0xf]
  %v24 = vld [vmem:[%s0 + $0x18] sm:$0xf]
  %v25 = vld [vmem:[%s0 + $0x1c] sm:$0xf]
  %v26 = vld [vmem:[%s1] sm:$0xf]
  %v27 = vld [vmem:[%s1 + $0x4] sm:$0xf]
  %v28 = vld [vmem:[%s1 + $0x8] sm:$0xf]
  %v29 = vld [vmem:[%s1 + $0xc] sm:$0xf]
  %v30 = vld [vmem:[%s1 + $0x10] sm:$0xf]
  %v31 = vld [vmem:[%s1 + $0x14] sm:$0xf]
  %v32 = vld [vmem:[%s1 + $0x18] sm:$0xf]
  %v33 = vld [vmem:[%s1 + $0x1c] sm:$0xf]
  %v34 = vld [vmem:[%s2] sm:$0xf]
  %v35 = vld [vmem:[%s2 + $0x4] sm:$0xf]
  %v36 = vld [vmem:[%s2 + $0x8] sm:$0xf]
  %v37 = vld [vmem:[%s3] sm:$0xf]
  %v38 = vld [vmem:[%s3 + $0x4] sm:$0xf]
  %v39 = vld [vmem:[%s3 + $0x8] sm:$0xf]
  %v48 = vunpack.c.l.b16 %v26
  %v49 = vunpack.c.l.b16 %v27
  %v50 = vunpack.c.l.b16 %v28
  %v51 = vunpack.c.l.b16 %v29
  %v52 = vunpack.c.l.b16 %v30
  %v53 = vunpack.c.l.b16 %v31
  %v54 = vunpack.c.l.b16 %v32
  %v55 = vunpack.c.l.b16 %v33
  %v56 = vpack.c.b16 %v49, %v48
  %v57 = vpack.c.b16 %v51, %v50
  %v58 = vpack.c.b16 %v53, %v52
  %v59 = vpack.c.b16 %v55, %v54
  %v63 = vunpack.c.l.b16 %v37
  %v64 = vunpack.c.l.b16 %v38
  %v65 = vunpack.c.l.b16 %v39
  %v66 = vpack.c.b16 %v64, %v63
  %v67 = vpack.c.b16 %v65, %v65
  %vm69 = vcmask 195584
  %v71 = vsel %vm69, %v56, 0
  %v74 = vsel %vm69, %v57, 0
  %v77 = vsel %vm69, %v58, 0
  %v80 = vsel %vm69, %v59, 0
  %vm82 = vcmask 1043456
  %v84 = vsel %vm82, %v67, 0
  %86 = vmatprep.subr.bf16.mxu0 0
  %87 = vmatpush1.bf16.msra.mxu0 0
  %88 = vmatprep.subr.bf16.mxu0 0
  %89 = vmatpush1.bf16.msra.mxu0 0
  %90 = vmatprep.subr.bf16.mxu0 0
  %91 = vmatpush1.bf16.msra.mxu0 0
  %92 = vmatprep.subr.bf16.mxu0 0
  %93 = vmatpush1.bf16.msra.mxu0 0
  %94 = vmatprep.subr.bf16.mxu0 0
  %95 = vmatpush1.bf16.msra.mxu0 0
  %96 = vmatprep.subr.bf16.mxu0 0
  %97 = vmatpush1.bf16.msra.mxu0 0
  %98 = vmatprep.subr.bf16.mxu0 0
  %99 = vmatpush1.bf16.msra.mxu0 %v84
  %100 = vmatprep.subr.bf16.mxu0 0
  %101 = vmatpush1.bf16.msra.mxu0 %v66
  %102 = vmatprep.subr.bf16.mxu0 0
  %103 = vmatpush2.bf16.msra.mxu0 0
  %104 = vmatprep.subr.bf16.mxu0 0
  %105 = vmatpush2.bf16.msra.mxu0 0
  %106 = vmatprep.subr.bf16.mxu0 0
  %107 = vmatpush2.bf16.msra.mxu0 0
  %108 = vmatprep.subr.bf16.mxu0 0
  %109 = vmatpush2.bf16.msra.mxu0 0
  %110 = vmatprep.subr.bf16.mxu0 0
  %111 = vmatpush2.bf16.msra.mxu0 0
  %112 = vmatprep.subr.bf16.mxu0 0
  %113 = vmatpush2.bf16.msra.mxu0 0
  %114 = vmatprep.subr.bf16.mxu0 0
  %115 = vmatpush2.bf16.msra.mxu0 0
  %116 = vmatprep.subr.bf16.mxu0 0
  %117 = vmatpush2.bf16.msra.mxu0 0
  %118 = vmatprep.mubr.bf16.mxu0 0
  %119 = vmatmul.mubr.bf16.gmra.mxu0 %v71
  %v120 = vpop.f32.mrf.mxu0
  %v121 = vadd.f32 0.0, %v120
  %v122 = vpop.f32.mrf.mxu0
  %v123 = vpop.f32.mrf.mxu0
  %v124 = vadd.f32 0.0, %v123
  %v125 = vpop.f32.mrf.mxu0
  %126 = vmatprep.mubr.bf16.mxu0 0
  %127 = vmatmul.mubr.bf16.gmra.mxu0 %v74
  %v128 = vpop.f32.mrf.mxu0
  %v129 = vadd.f32 0.0, %v128
  %v130 = vpop.f32.mrf.mxu0
  %v131 = vpop.f32.mrf.mxu0
  %v132 = vadd.f32 0.0, %v131
  %v133 = vpop.f32.mrf.mxu0
  %134 = vmatprep.mubr.bf16.mxu0 0
  %135 = vmatmul.mubr.bf16.gmra.mxu0 %v77
  %v136 = vpop.f32.mrf.mxu0
  %v137 = vadd.f32 0.0, %v136
  %v138 = vpop.f32.mrf.mxu0
  %v139 = vpop.f32.mrf.mxu0
  %v140 = vadd.f32 0.0, %v139
  %v141 = vpop.f32.mrf.mxu0
  %142 = vmatprep.mubr.bf16.mxu0 0
  %143 = vmatmul.mubr.bf16.gmra.mxu0 %v80
  %v144 = vpop.f32.mrf.mxu0
  %v145 = vadd.f32 0.0, %v144
  %v146 = vpop.f32.mrf.mxu0
  %v147 = vpop.f32.mrf.mxu0
  %v148 = vadd.f32 0.0, %v147
  %v149 = vpop.f32.mrf.mxu0
  %150 = vdwg.mxu0
  %v159 = vunpack.c.l.b16 %v18
  %v160 = vunpack.c.l.b16 %v19
  %v161 = vunpack.c.l.b16 %v20
  %v162 = vunpack.c.l.b16 %v21
  %v163 = vunpack.c.l.b16 %v22
  %v164 = vunpack.c.l.b16 %v23
  %v165 = vunpack.c.l.b16 %v24
  %v166 = vunpack.c.l.b16 %v25
  %v167 = vpack.c.b16 %v160, %v159
  %v168 = vpack.c.b16 %v162, %v161
  %v169 = vpack.c.b16 %v164, %v163
  %v170 = vpack.c.b16 %v166, %v165
  %v174 = vunpack.c.l.b16 %v34
  %v175 = vunpack.c.l.b16 %v35
  %v176 = vunpack.c.l.b16 %v36
  %v177 = vpack.c.b16 %v175, %v174
  %v178 = vpack.c.b16 %v176, %v176
  %v181 = vsel %vm69, %v167, 0
  %v184 = vsel %vm69, %v168, 0
  %v187 = vsel %vm69, %v169, 0
  %v190 = vsel %vm69, %v170, 0
  %v193 = vsel %vm82, %v178, 0
  %195 = vmatprep.subr.bf16.mxu0 0
  %196 = vmatpush1.bf16.msra.mxu0 0
  %197 = vmatprep.subr.bf16.mxu0 0
  %198 = vmatpush1.bf16.msra.mxu0 0
  %199 = vmatprep.subr.bf16.mxu0 0
  %200 = vmatpush1.bf16.msra.mxu0 0
  %201 = vmatprep.subr.bf16.mxu0 0
  %202 = vmatpush1.bf16.msra.mxu0 0
  %203 = vmatprep.subr.bf16.mxu0 0
  %204 = vmatpush1.bf16.msra.mxu0 0
  %205 = vmatprep.subr.bf16.mxu0 0
  %206 = vmatpush1.bf16.msra.mxu0 0
  %207 = vmatprep.subr.bf16.mxu0 0
  %208 = vmatpush1.bf16.msra.mxu0 %v193
  %209 = vmatprep.subr.bf16.mxu0 0
  %210 = vmatpush1.bf16.msra.mxu0 %v177
  %211 = vmatprep.subr.bf16.mxu0 0
  %212 = vmatpush2.bf16.msra.mxu0 0
  %213 = vmatprep.subr.bf16.mxu0 0
  %214 = vmatpush2.bf16.msra.mxu0 0
  %215 = vmatprep.subr.bf16.mxu0 0
  %216 = vmatpush2.bf16.msra.mxu0 0
  %217 = vmatprep.subr.bf16.mxu0 0
  %218 = vmatpush2.bf16.msra.mxu0 0
  %219 = vmatprep.subr.bf16.mxu0 0
  %220 = vmatpush2.bf16.msra.mxu0 0
  %221 = vmatprep.subr.bf16.mxu0 0
  %222 = vmatpush2.bf16.msra.mxu0 0
  %223 = vmatprep.subr.bf16.mxu0 0
  %224 = vmatpush2.bf16.msra.mxu0 0
  %225 = vmatprep.subr.bf16.mxu0 0
  %226 = vmatpush2.bf16.msra.mxu0 0
  %227 = vmatprep.mubr.bf16.mxu0 0
  %228 = vmatmul.mubr.bf16.gmra.mxu0 %v181
  %v229 = vpop.f32.mrf.mxu0
  %v230 = vadd.f32 %v121, %v229
  %v231 = vpop.f32.mrf.mxu0
  %v232 = vpop.f32.mrf.mxu0
  %v233 = vadd.f32 %v124, %v232
  %v234 = vpop.f32.mrf.mxu0
  %235 = vmatprep.mubr.bf16.mxu0 0
  %236 = vmatmul.mubr.bf16.gmra.mxu0 %v184
  %v237 = vpop.f32.mrf.mxu0
  %v238 = vadd.f32 %v129, %v237
  %v239 = vpop.f32.mrf.mxu0
  %v240 = vpop.f32.mrf.mxu0
  %v241 = vadd.f32 %v132, %v240
  %v242 = vpop.f32.mrf.mxu0
  %243 = vmatprep.mubr.bf16.mxu0 0
  %244 = vmatmul.mubr.bf16.gmra.mxu0 %v187
  %v245 = vpop.f32.mrf.mxu0
  %v246 = vadd.f32 %v137, %v245
  %v247 = vpop.f32.mrf.mxu0
  %v248 = vpop.f32.mrf.mxu0
  %v249 = vadd.f32 %v140, %v248
  %v250 = vpop.f32.mrf.mxu0
  %251 = vmatprep.mubr.bf16.mxu0 0
  %252 = vmatmul.mubr.bf16.gmra.mxu0 %v190
  %v253 = vpop.f32.mrf.mxu0
  %v254 = vadd.f32 %v145, %v253
  %v255 = vpop.f32.mrf.mxu0
  %v256 = vpop.f32.mrf.mxu0
  %v257 = vadd.f32 %v148, %v256
  %v258 = vpop.f32.mrf.mxu0
  %259 = vdwg.mxu0
  %v260 = vlaneseq
  %v261 = vand.u32 %v260, 127
  %vm262 = vcmp.lt.s32.totalorder %v261, 3
  %v263 = vsel %vm262, %v230, -1e+30
  %v264 = vsel %vm262, %v233, -1e+30
  %v265 = vsel %vm262, %v238, -1e+30
  %v266 = vsel %vm262, %v241, -1e+30
  %v267 = vsel %vm262, %v246, -1e+30
  %v268 = vsel %vm262, %v249, -1e+30
  %v269 = vsel %vm262, %v254, -1e+30
  %v270 = vsel %vm262, %v257, -1e+30
  %271 = vmax.xlane.f32.xlu0 %v263
  %v272 = vpop.xlane.xlu0 %271
  %273 = vmax.xlane.f32.xlu0 %v264
  %v274 = vpop.xlane.xlu0 %273
  %275 = vmax.xlane.f32.xlu0 %v265
  %v276 = vpop.xlane.xlu0 %275
  %277 = vmax.xlane.f32.xlu0 %v266
  %v278 = vpop.xlane.xlu0 %277
  %279 = vmax.xlane.f32.xlu0 %v267
  %v280 = vpop.xlane.xlu0 %279
  %281 = vmax.xlane.f32.xlu0 %v268
  %v282 = vpop.xlane.xlu0 %281
  %283 = vmax.xlane.f32.xlu0 %v269
  %v284 = vpop.xlane.xlu0 %283
  %285 = vmax.xlane.f32.xlu0 %v270
  %v286 = vpop.xlane.xlu0 %285
  %v287 = vsub.f32 %v263, %v272
  %v288 = vsub.f32 %v264, %v274
  %v289 = vsub.f32 %v265, %v276
  %v290 = vsub.f32 %v266, %v278
  %v291 = vsub.f32 %v267, %v280
  %v292 = vsub.f32 %v268, %v282
  %v293 = vsub.f32 %v269, %v284
  %v294 = vsub.f32 %v270, %v286
  %v295 = vmul.f32 %v287, 1.442695
  %v296 = vpow.pop %v295
  %v297 = vmul.f32 %v288, 1.442695
  %v298 = vpow.pop %v297
  %v299 = vmul.f32 %v289, 1.442695
  %v300 = vpow.pop %v299
  %v301 = vmul.f32 %v290, 1.442695
  %v302 = vpow.pop %v301
  %v303 = vmul.f32 %v291, 1.442695
  %v304 = vpow.pop %v303
  %v305 = vmul.f32 %v292, 1.442695
  %v306 = vpow.pop %v305
  %v307 = vmul.f32 %v293, 1.442695
  %v308 = vpow.pop %v307
  %v309 = vmul.f32 %v294, 1.442695
  %v310 = vpow.pop %v309
  %311 = vadd.xlane.f32.xlu0 %v296
  %v312 = vpop.xlane.xlu0 %311
  %313 = vadd.xlane.f32.xlu0 %v298
  %v314 = vpop.xlane.xlu0 %313
  %315 = vadd.xlane.f32.xlu0 %v300
  %v316 = vpop.xlane.xlu0 %315
  %317 = vadd.xlane.f32.xlu0 %v302
  %v318 = vpop.xlane.xlu0 %317
  %319 = vadd.xlane.f32.xlu0 %v304
  %v320 = vpop.xlane.xlu0 %319
  %321 = vadd.xlane.f32.xlu0 %v306
  %v322 = vpop.xlane.xlu0 %321
  %323 = vadd.xlane.f32.xlu0 %v308
  %v324 = vpop.xlane.xlu0 %323
  %325 = vadd.xlane.f32.xlu0 %v310
  %v326 = vpop.xlane.xlu0 %325
  %v327 = vrcp.pop %v312
  %v328 = vrcp.pop %v314
  %v329 = vrcp.pop %v316
  %v330 = vrcp.pop %v318
  %v331 = vrcp.pop %v320
  %v332 = vrcp.pop %v322
  %v333 = vrcp.pop %v324
  %v334 = vrcp.pop %v326
  %v335 = vmul.f32 %v296, %v327
  %v336 = vmul.f32 %v298, %v328
  %v337 = vmul.f32 %v300, %v329
  %v338 = vmul.f32 %v302, %v330
  %v339 = vmul.f32 %v304, %v331
  %v340 = vmul.f32 %v306, %v332
  %v341 = vmul.f32 %v308, %v333
  %v342 = vmul.f32 %v310, %v334
  %343 = vst [vmem:[%s4] sm:$0xff] %v335
  %344 = vst [vmem:[%s4 + $0x8] sm:$0xff] %v336
  %345 = vst [vmem:[%s4 + $0x10] sm:$0xff] %v337
  %346 = vst [vmem:[%s4 + $0x18] sm:$0xff] %v338
  %347 = vst [vmem:[%s4 + $0x20] sm:$0xff] %v339
  %348 = vst [vmem:[%s4 + $0x28] sm:$0xff] %v340
  %349 = vst [vmem:[%s4 + $0x30] sm:$0xff] %v341
  %350 = vst [vmem:[%s4 + $0x38] sm:$0xff] %v342
  // Predicated region
  $region18: #{ct_forward.7} parent=0 // pred_check
    _
  $region19: #{ct_forward.7} parent=0 // pred_check_branch
    %352 = sbr.rel (0) target = $region21
  $region20: #{ct_forward.7} parent=0 // pred_region
    _
  $region21: #{ct_forward.7} parent=0 // pred_fallthru
    _
  // Predicated region
  $region22: #{ct_forward.7} parent=0 // pred_check
    _
  $region23: #{ct_forward.7} parent=0 // pred_check_branch
    %354 = sbr.rel (0) target = $region25
  $region24: #{ct_forward.7} parent=0 // pred_region
    _
  $region25: #{ct_forward.7} parent=0 // pred_fallthru
    _

// kernel: ct_forward.4
$region0: #{ct_forward.4}
  #allocation0 [shape = 'u32[]', space=smem, size = 0x4, offset = 0x4, fixed_abs, tag = 'smem constant byte address 0x4 - core index']
  #allocation1 [shape = 'u32[144,128]{1,0:T(1,128)}', space=vmem, size = 0x12000, scoped, tag = 'internal scratch']
  #allocation2 [shape = 'f32[4,8,64]{2,1,0:T(8,128)}', space=vmem, size = 0x4000, scoped, tag = 'scratch operand']
  #allocation3 [shape = 'f32[4,8,64]{2,1,0:T(8,128)}', space=vmem, size = 0x4000, scoped, tag = 'scratch operand']
  #allocation4 [shape = 'f32[8,16]{1,0:T(8,128)}', space=vmem, size = 0x1000, scoped, tag = 'scratch operand']
  #allocation5 [shape = 'f32[8,16]{1,0:T(8,128)}', space=vmem, size = 0x1000, scoped, tag = 'scratch operand']
  #allocation6 [shape = 'f32[8,16]{1,0:T(8,128)}', space=vmem, size = 0x1000, scoped, tag = 'scratch operand']
  #allocation7 [shape = 'f32[8,16]{1,0:T(8,128)}', space=vmem, size = 0x1000, scoped, tag = 'scratch operand']
  %s0 = inlined_call_operand.vmem [shape: bf16[8,8,16], index: 0, kind: input, shape index: {}, may-alias: {0,1}]
  %s1 = inlined_call_operand.vmem [shape: bf16[8,8,16], index: 1, kind: input, shape index: {}, may-alias: {0,1}]
  %s2 = inlined_call_operand.vmem [shape: s32[8,1], index: 2, kind: input, shape index: {}]
  %s3 = inlined_call_operand.vmem [shape: bf16[2,16,64], index: 3, kind: input, shape index: {}]
  %s4 = inlined_call_operand.vmem [shape: f32[2,1,64], index: 4, kind: input, shape index: {}]
  %s5 = inlined_call_operand.vmem [shape: bf16[2,16,64], index: 5, kind: input, shape index: {}]
  %s6 = inlined_call_operand.vmem [shape: bf16[8,8,16], index: 6, kind: output, shape index: {0}]
  %s7 = inlined_call_operand.vmem [shape: bf16[8,8,16], index: 7, kind: output, shape index: {1}]
  %8 = xla_tuple %s6, %s7
  %s9 = sld [smem:[#allocation0]]
  $region69: #{ct_forward.4} parent=0
    _
  %s11 = ssub.s32 1, %s9
  %s12 = scalar_select 0, %s11, %s9
  loop: start=0, step=1, limit=4
  $region2: #{ct_forward.4} parent=0 // loop_pre_header
    _
  $region3: #{ct_forward.4} parent=0 // loop_header
    %s14 = sphi 0, %s18
    %p15 = scmp.ge.s32.totalorder %s14, 4
    %s24 = sphi 0, %s26
    %s27 = sphi 0, %s24
    %s28 = sphi 0, %s27
    %s44 = sphi 0, %s28
    %s52 = sphi 0, %s54
    %s55 = sphi 0, %s52
    %s56 = sphi 0, %s55
    %s72 = sphi 0, %s56
    %s76 = sphi 0, %s76
    %s78 = sphi 0, %s76
    %s79 = sphi 0, %s78
    %s93 = sphi 0, %s79
    %s97 = sphi 0, %s97
    %s99 = sphi 0, %s97
    %s100 = sphi 0, %s99
    %s114 = sphi 0, %s100
    %s118 = sphi 0, %s118
    %s120 = sphi 0, %s118
    %s121 = sphi 0, %s120
    %s135 = sphi 0, %s121
    %s139 = sphi 0, %s139
    %s141 = sphi 0, %s139
    %s142 = sphi 0, %s141
    %s156 = sphi 0, %s142
    %s162 = sphi 0, %s164
    %s165 = sphi 0, %s162
    %s166 = sphi 0, %s165
    %s182 = sphi 0, %s166
    %s190 = sphi 0, %s192
    %s193 = sphi 0, %s190
    %s194 = sphi 0, %s193
    %s210 = sphi 0, %s194
  $region4: #{ct_forward.4} parent=0 // loop_header_branch
    %17 = sbr.rel (%p15) target = $region8
  $region5: #{ct_forward.4} parent=0 // loop_body
    %s19 = ssub.s32 %s14, 1
    %s20 = ssub.s32 %s14, 2
    %s21 = sadd.s32 %s14, 1
    %s22 = ssub.s32 %s14, %s21
    %p23 = scmp.eq.s32.totalorder %s22, 0
    %s25 = sadd.s32 %s24, 1
    %s26 = scalar_select %p23, %s24, %s25
    %p29 = pneg %p23
    %p30 = scmp.eq.s32.totalorder %s14, 1
    %p31 = por %p29, %p30
    %p32 = scmp.ne.s32.totalorder %s24, %s27
    %p33 = scmp.eq.s32.totalorder %s14, 0
    %p34 = por %p32, %p33
    %p35 = scmp.ne.s32.totalorder %s24, %s27
    %p36 = scmp.eq.s32.totalorder %s19, 1
    %p37 = por %p35, %p36
    %p38 = scmp.ne.s32.totalorder %s27, %s28
    %p39 = scmp.eq.s32.totalorder %s19, 0
    %p40 = por %p38, %p39
    %p41 = scmp.ne.s32.totalorder %s27, %s28
    %p42 = scmp.eq.s32.totalorder %s20, 1
    %p43 = por %p41, %p42
    %p45 = scmp.ne.s32.totalorder %s28, %s44
    %p46 = scmp.eq.s32.totalorder %s20, 0
    %p47 = por %p45, %p46
    %s48 = ssub.s32 1, %s14
    %s49 = ssub.s32 1, %s21
    %s50 = ssub.s32 %s48, %s49
    %p51 = scmp.eq.s32.totalorder %s50, 0
    %s53 = sadd.s32 %s52, 1
    %s54 = scalar_select %p51, %s52, %s53
    %p57 = pneg %p51
    %p58 = scmp.eq.s32.totalorder %s14, 1
    %p59 = por %p57, %p58
    %p60 = scmp.ne.s32.totalorder %s52, %s55
    %p61 = scmp.eq.s32.totalorder %s14, 0
    %p62 = por %p60, %p61
    %p63 = scmp.ne.s32.totalorder %s52, %s55
    %p64 = scmp.eq.s32.totalorder %s19, 1
    %p65 = por %p63, %p64
    %p66 = scmp.ne.s32.totalorder %s55, %s56
    %p67 = scmp.eq.s32.totalorder %s19, 0
    %p68 = por %p66, %p67
    %p69 = scmp.ne.s32.totalorder %s55, %s56
    %p70 = scmp.eq.s32.totalorder %s20, 1
    %p71 = por %p69, %p70
    %p73 = scmp.ne.s32.totalorder %s56, %s72
    %p74 = scmp.eq.s32.totalorder %s20, 0
    %p75 = por %p73, %p74
    %s77 = sadd.s32 %s76, 1
    %p80 = scmp.eq.s32.totalorder %s14, 1
    %p81 = scmp.ne.s32.totalorder %s76, %s78
    %p82 = scmp.eq.s32.totalorder %s14, 0
    %p83 = por %p81, %p82
    %p84 = scmp.ne.s32.totalorder %s76, %s78
    %p85 = scmp.eq.s32.totalorder %s19, 1
    %p86 = por %p84, %p85
    %p87 = scmp.ne.s32.totalorder %s78, %s79
    %p88 = scmp.eq.s32.totalorder %s19, 0
    %p89 = por %p87, %p88
    %p90 = scmp.ne.s32.totalorder %s78, %s79
    %p91 = scmp.eq.s32.totalorder %s20, 1
    %p92 = por %p90, %p91
    %p94 = scmp.ne.s32.totalorder %s79, %s93
    %p95 = scmp.eq.s32.totalorder %s20, 0
    %p96 = por %p94, %p95
    %s98 = sadd.s32 %s97, 1
    %p101 = scmp.eq.s32.totalorder %s14, 1
    %p102 = scmp.ne.s32.totalorder %s97, %s99
    %p103 = scmp.eq.s32.totalorder %s14, 0
    %p104 = por %p102, %p103
    %p105 = scmp.ne.s32.totalorder %s97, %s99
    %p106 = scmp.eq.s32.totalorder %s19, 1
    %p107 = por %p105, %p106
    %p108 = scmp.ne.s32.totalorder %s99, %s100
    %p109 = scmp.eq.s32.totalorder %s19, 0
    %p110 = por %p108, %p109
    %p111 = scmp.ne.s32.totalorder %s99, %s100
    %p112 = scmp.eq.s32.totalorder %s20, 1
    %p113 = por %p111, %p112
    %p115 = scmp.ne.s32.totalorder %s100, %s114
    %p116 = scmp.eq.s32.totalorder %s20, 0
    %p117 = por %p115, %p116
    %s119 = sadd.s32 %s118, 1
    %p122 = scmp.eq.s32.totalorder %s14, 1
    %p123 = scmp.ne.s32.totalorder %s118, %s120
    %p124 = scmp.eq.s32.totalorder %s14, 0
    %p125 = por %p123, %p124
    %p126 = scmp.ne.s32.totalorder %s118, %s120
    %p127 = scmp.eq.s32.totalorder %s19, 1
    %p128 = por %p126, %p127
    %p129 = scmp.ne.s32.totalorder %s120, %s121
    %p130 = scmp.eq.s32.totalorder %s19, 0
    %p131 = por %p129, %p130
    %p132 = scmp.ne.s32.totalorder %s120, %s121
    %p133 = scmp.eq.s32.totalorder %s20, 1
    %p134 = por %p132, %p133
    %p136 = scmp.ne.s32.totalorder %s121, %s135
    %p137 = scmp.eq.s32.totalorder %s20, 0
    %p138 = por %p136, %p137
    %s140 = sadd.s32 %s139, 1
    %p143 = scmp.eq.s32.totalorder %s14, 1
    %p144 = scmp.ne.s32.totalorder %s139, %s141
    %p145 = scmp.eq.s32.totalorder %s14, 0
    %p146 = por %p144, %p145
    %p147 = scmp.ne.s32.totalorder %s139, %s141
    %p148 = scmp.eq.s32.totalorder %s19, 1
    %p149 = por %p147, %p148
    %p150 = scmp.ne.s32.totalorder %s141, %s142
    %p151 = scmp.eq.s32.totalorder %s19, 0
    %p152 = por %p150, %p151
    %p153 = scmp.ne.s32.totalorder %s141, %s142
    %p154 = scmp.eq.s32.totalorder %s20, 1
    %p155 = por %p153, %p154
    %p157 = scmp.ne.s32.totalorder %s142, %s156
    %p158 = scmp.eq.s32.totalorder %s20, 0
    %p159 = por %p157, %p158
    %s160 = ssub.s32 %s14, %s21
    %p161 = scmp.eq.s32.totalorder %s160, 0
    %s163 = sadd.s32 %s162, 1
    %s164 = scalar_select %p161, %s162, %s163
    %p167 = pneg %p161
    %p168 = scmp.eq.s32.totalorder %s14, 1
    %p169 = por %p167, %p168
    %p170 = scmp.ne.s32.totalorder %s162, %s165
    %p171 = scmp.eq.s32.totalorder %s14, 0
    %p172 = por %p170, %p171
    %p173 = scmp.ne.s32.totalorder %s162, %s165
    %p174 = scmp.eq.s32.totalorder %s19, 1
    %p175 = por %p173, %p174
    %p176 = scmp.ne.s32.totalorder %s165, %s166
    %p177 = scmp.eq.s32.totalorder %s19, 0
    %p178 = por %p176, %p177
    %p179 = scmp.ne.s32.totalorder %s165, %s166
    %p180 = scmp.eq.s32.totalorder %s20, 1
    %p181 = por %p179, %p180
    %p183 = scmp.ne.s32.totalorder %s166, %s182
    %p184 = scmp.eq.s32.totalorder %s20, 0
    %p185 = por %p183, %p184
    %s186 = ssub.s32 1, %s14
    %s187 = ssub.s32 1, %s21
    %s188 = ssub.s32 %s186, %s187
    %p189 = scmp.eq.s32.totalorder %s188, 0
    %s191 = sadd.s32 %s190, 1
    %s192 = scalar_select %p189, %s190, %s191
    %p195 = pneg %p189
    %p196 = scmp.eq.s32.totalorder %s14, 1
    %p197 = por %p195, %p196
    %p198 = scmp.ne.s32.totalorder %s190, %s193
    %p199 = scmp.eq.s32.totalorder %s14, 0
    %p200 = por %p198, %p199
    %p201 = scmp.ne.s32.totalorder %s190, %s193
    %p202 = scmp.eq.s32.totalorder %s19, 1
    %p203 = por %p201, %p202
    %p204 = scmp.ne.s32.totalorder %s193, %s194
    %p205 = scmp.eq.s32.totalorder %s19, 0
    %p206 = por %p204, %p205
    %p207 = scmp.ne.s32.totalorder %s193, %s194
    %p208 = scmp.eq.s32.totalorder %s20, 1
    %p209 = por %p207, %p208
    %p211 = scmp.ne.s32.totalorder %s194, %s210
    %p212 = scmp.eq.s32.totalorder %s20, 0
    %p213 = por %p211, %p212
    %p214 = scmp.le.s32.totalorder 1, %s14
    %p215 = scmp.lt.s32.totalorder %s14, 3
    %p216 = pnand %p214, %p215
    %p217 = pneg %p216
    // Predicated region
    $region9: #{ct_forward.4} parent=5 // pred_check
      _
    $region10: #{ct_forward.4} parent=5 // pred_check_branch
      %219 = sbr.rel (%p216) target = $region12
    $region11: #{ct_forward.4} parent=5 // pred_region
      %s220 = ssub.s32 %s14, 1
      // Predicated region
      $region13: #{ct_forward.4} parent=11 // pred_check
        %p221 = pneg %p89
      $region14: #{ct_forward.4} parent=11 // pred_check_branch
        %223 = sbr.rel (%p221) target = $region16
      $region15: #{ct_forward.4} parent=11 // pred_region
        _
      $region16: #{ct_forward.4} parent=11 // pred_fallthru
        _
      // Predicated region
      $region17: #{ct_forward.4} parent=11 // pred_check
        %p224 = pneg %p110
      $region18: #{ct_forward.4} parent=11 // pred_check_branch
        %226 = sbr.rel (%p224) target = $region20
      $region19: #{ct_forward.4} parent=11 // pred_region
        _
      $region20: #{ct_forward.4} parent=11 // pred_fallthru
        _
      // Predicated region
      $region21: #{ct_forward.4} parent=11 // pred_check
        %p227 = pneg %p131
      $region22: #{ct_forward.4} parent=11 // pred_check_branch
        %229 = sbr.rel (%p227) target = $region24
      $region23: #{ct_forward.4} parent=11 // pred_region
        _
      $region24: #{ct_forward.4} parent=11 // pred_fallthru
        _
      // Predicated region
      $region25: #{ct_forward.4} parent=11 // pred_check
        %p230 = pneg %p152
      $region26: #{ct_forward.4} parent=11 // pred_check_branch
        %232 = sbr.rel (%p230) target = $region28
      $region27: #{ct_forward.4} parent=11 // pred_region
        _
      $region28: #{ct_forward.4} parent=11 // pred_fallthru
        _
    $region12: #{ct_forward.4} parent=5 // pred_fallthru
      _
    %p233 = scmp.lt.s32.totalorder %s14, 2
    // Predicated region
    $region29: #{ct_forward.4} parent=5 // pred_check
      %p234 = pneg %p233
    $region30: #{ct_forward.4} parent=5 // pred_check_branch
      %236 = sbr.rel (%p234) target = $region32
    $region31: #{ct_forward.4} parent=5 // pred_region
      // Predicated region
      $region33: #{ct_forward.4} parent=31 // pred_check
        %p237 = pneg %p34
      $region34: #{ct_forward.4} parent=31 // pred_check_branch
        %239 = sbr.rel (%p237) target = $region36
      $region35: #{ct_forward.4} parent=31 // pred_region
        %s240 = smul.u32 4, %s14
        %p241 = scmp.lt.s32.totalorder %s240, 7
        %s242 = scalar_select %p241, %s240, 7
        %s243 = smul.addr %s242, 4
        %s244 = scalar_lea.vmem %s0, %s243
        %s245 = smul.u32 4, %s14
      $region36: #{ct_forward.4} parent=31 // pred_fallthru
        _
      // Predicated region
      $region37: #{ct_forward.4} parent=31 // pred_check
        %p246 = pneg %p62
      $region38: #{ct_forward.4} parent=31 // pred_check_branch
        %248 = sbr.rel (%p246) target = $region40
      $region39: #{ct_forward.4} parent=31 // pred_region
        %s249 = ssub.s32 1, %s14
        %s250 = smul.u32 4, %s249
        %p251 = scmp.lt.s32.totalorder %s250, 7
        %s252 = scalar_select %p251, %s250, 7
        %s253 = smul.addr %s252, 4
        %s254 = scalar_lea.vmem %s1, %s253
        %s255 = ssub.s32 1, %s14
        %s256 = smul.u32 4, %s255
      $region40: #{ct_forward.4} parent=31 // pred_fallthru
        _
    $region32: #{ct_forward.4} parent=5 // pred_fallthru
      _
    %p257 = scmp.le.s32.totalorder 1, %s14
    %p258 = scmp.lt.s32.totalorder %s14, 3
    %p259 = pnand %p257, %p258
    %p260 = pneg %p259
    // Predicated region
    $region41: #{ct_forward.4} parent=5 // pred_check
      _
    $region42: #{ct_forward.4} parent=5 // pred_check_branch
      %262 = sbr.rel (%p259) target = $region44
    $region43: #{ct_forward.4} parent=5 // pred_region
      %s263 = ssub.s32 %s14, 1
      %s264 = smul.u32 4, %s19
      %p265 = scmp.lt.s32.totalorder %s264, 7
      %s266 = scalar_select %p265, %s264, 7
      %s267 = smul.addr %s266, 4
      %s268 = scalar_lea.vmem %s0, %s267
      %p269 = pneg %p40
      %p270 = pneg %p37
      %s271 = ssub.s32 1, %s19
      %s272 = smul.u32 4, %s271
      %p273 = scmp.lt.s32.totalorder %s272, 7
      %s274 = scalar_select %p273, %s272, 7
      %s275 = smul.addr %s274, 4
      %s276 = scalar_lea.vmem %s1, %s275
      %p277 = pneg %p68
      %p278 = pneg %p65
      %p279 = pneg %p89
      %p280 = pneg %p86
      %p281 = pneg %p110
      %p282 = pneg %p107
      %p283 = pneg %p131
      %p284 = pneg %p128
      %p285 = pneg %p152
      %p286 = pneg %p149
      %p287 = pneg %p178
      %p288 = pneg %p175
      %s289 = smul.u32 4, %s19
      %p290 = scmp.lt.s32.totalorder %s289, 7
      %s291 = scalar_select %p290, %s289, 7
      %s292 = smul.addr %s291, 4
      %s293 = scalar_lea.vmem %s6, %s292
      %p294 = pneg %p206
      %p295 = pneg %p203
      %s296 = ssub.s32 1, %s19
      %s297 = smul.u32 4, %s296
      %p298 = scmp.lt.s32.totalorder %s297, 7
      %s299 = scalar_select %p298, %s297, 7
      %s300 = smul.addr %s299, 4
      %s301 = scalar_lea.vmem %s7, %s300
      %s302 = smul.u32 4, %s19
      %p303 = scmp.lt.s32.totalorder %s302, 7
      %s304 = scalar_select %p303, %s302, 7
      %s305 = smul.addr %s304, 4
      %s306 = scalar_lea.vmem %s0, %s305
      %s307 = smul.u32 4, %s19
      %s308 = ssub.s32 1, %s19
      %s309 = smul.u32 4, %s308
      %p310 = scmp.lt.s32.totalorder %s309, 7
      %s311 = scalar_select %p310, %s309, 7
      %s312 = smul.addr %s311, 4
      %s313 = scalar_lea.vmem %s1, %s312
      %s314 = ssub.s32 1, %s19
      %s315 = smul.u32 4, %s314
      %s316 = smul.u32 4, %s19
      %p317 = scmp.lt.s32.totalorder %s316, 7
      %s318 = scalar_select %p317, %s316, 7
      %s319 = smul.addr %s318, 4
      %s320 = scalar_lea.vmem %s6, %s319
      %s321 = smul.u32 4, %s19
      %s322 = ssub.s32 1, %s19
      %s323 = smul.u32 4, %s322
      %p324 = scmp.lt.s32.totalorder %s323, 7
      %s325 = scalar_select %p324, %s323, 7
      %s326 = smul.addr %s325, 4
      %s327 = scalar_lea.vmem %s7, %s326
      %s328 = ssub.s32 1, %s19
      %s329 = smul.u32 4, %s328
      %p332 = scmp.eq.s32.totalorder %s19, 0
      // Predicated region
      $region45: #{ct_forward.4} parent=43 // pred_check
        %p333 = pneg %p332
      $region46: #{ct_forward.4} parent=43 // pred_check_branch
        %335 = sbr.rel (%p333) target = $region48
      $region47: #{ct_forward.4} parent=43 // pred_region
        %vm336 = vcmask 130048
        %337 = vst.msk [vmem:[#allocation4] sm:$0xff] %vm336, 0.0
        %338 = vst.msk [vmem:[#allocation5] sm:$0xff] %vm336, 0.0
        %339 = vst.msk [vmem:[#allocation6] sm:$0xff] %vm336, 0.0
        %340 = vst.msk [vmem:[#allocation7] sm:$0xff] %vm336, 0.0
      $region48: #{ct_forward.4} parent=43 // pred_fallthru
        _
      %v341 = vld [vmem:[%s306] sm:$0xf]
      %v342 = vld [vmem:[%s306 + $0x4] sm:$0xf]
      %v343 = vld [vmem:[%s306 + $0x8] sm:$0xf]
      %v344 = vld [vmem:[%s306 + $0xc] sm:$0xf]
      %v345 = vld [vmem:[%s313] sm:$0xf]
      %v346 = vld [vmem:[%s313 + $0x4] sm:$0xf]
      %v347 = vld [vmem:[%s313 + $0x8] sm:$0xf]
      %v348 = vld [vmem:[%s313 + $0xc] sm:$0xf]
      %v349 = vld [vmem:[%s3] sm:$0xf]
      %v350 = vld [vmem:[%s3 + $0x4] sm:$0xf]
      %v351 = vld [vmem:[%s4] sm:$0x1]
      %v353 = vlaneseq
      %v354 = vshrl.u32 %v353, 7
      %v355 = vsub.s32 0, %v354
      %v356 = vrot.slane %v351, %v355
      %v362 = vunpack.c.l.b16 %v341
      %v363 = vunpack.c.l.b16 %v342
      %v364 = vunpack.c.l.b16 %v343
      %v365 = vunpack.c.l.b16 %v344
      %v366 = vpack.c.b16 %v363, %v362
      %v367 = vpack.c.b16 %v365, %v364
      %v370 = vunpack.c.l.b16 %v349
      %v371 = vunpack.c.l.b16 %v350
      %v372 = vpack.c.b16 %v371, %v370
      %vm374 = vcmask 130048
      %v376 = vsel %vm374, %v366, 0
      %v379 = vsel %vm374, %v367, 0
      %381 = vmatprep.subr.bf16.mxu0 0
      %382 = vmatpush1.bf16.msra.mxu0 0
      %383 = vmatprep.subr.bf16.mxu0 0
      %384 = vmatpush1.bf16.msra.mxu0 0
      %385 = vmatprep.subr.bf16.mxu0 0
      %386 = vmatpush1.bf16.msra.mxu0 0
      %387 = vmatprep.subr.bf16.mxu0 0
      %388 = vmatpush1.bf16.msra.mxu0 0
      %389 = vmatprep.subr.bf16.mxu0 0
      %390 = vmatpush1.bf16.msra.mxu0 0
      %391 = vmatprep.subr.bf16.mxu0 0
      %392 = vmatpush1.bf16.msra.mxu0 0
      %393 = vmatprep.subr.bf16.mxu0 0
      %394 = vmatpush1.bf16.msra.mxu0 0
      %395 = vmatprep.subr.bf16.mxu0 0
      %396 = vmatpush1.bf16.msra.mxu0 %v372
      %397 = vmatprep.subr.bf16.mxu0 0
      %398 = vmatpush2.bf16.msra.mxu0 0
      %399 = vmatprep.subr.bf16.mxu0 0
      %400 = vmatpush2.bf16.msra.mxu0 0
      %401 = vmatprep.subr.bf16.mxu0 0
      %402 = vmatpush2.bf16.msra.mxu0 0
      %403 = vmatprep.subr.bf16.mxu0 0
      %404 = vmatpush2.bf16.msra.mxu0 0
      %405 = vmatprep.subr.bf16.mxu0 0
      %406 = vmatpush2.bf16.msra.mxu0 0
      %407 = vmatprep.subr.bf16.mxu0 0
      %408 = vmatpush2.bf16.msra.mxu0 0
      %409 = vmatprep.subr.bf16.mxu0 0
      %410 = vmatpush2.bf16.msra.mxu0 0
      %411 = vmatprep.subr.bf16.mxu0 0
      %412 = vmatpush2.bf16.msra.mxu0 0
      %413 = vmatprep.mubr.bf16.mxu0 0
      %414 = vmatmul.mubr.bf16.gmra.mxu0 %v376
      %v415 = vpop.f32.mrf.mxu0
      %v416 = vadd.f32 %v356, %v415
      %v417 = vpop.f32.mrf.mxu0
      %v418 = vpop.f32.mrf.mxu0
      %v419 = vadd.f32 %v356, %v418
      %v420 = vpop.f32.mrf.mxu0
      %421 = vmatprep.mubr.bf16.mxu0 0
      %422 = vmatmul.mubr.bf16.gmra.mxu0 %v379
      %v423 = vpop.f32.mrf.mxu0
      %v424 = vadd.f32 %v356, %v423
      %v425 = vpop.f32.mrf.mxu0
      %v426 = vpop.f32.mrf.mxu0
      %v427 = vadd.f32 %v356, %v426
      %v428 = vpop.f32.mrf.mxu0
      %429 = vdwg.mxu0
      %vm430 = vcmask 523264
      %431 = vst.msk [vmem:[#allocation2] sm:$0xff] %vm430, %v416
      %432 = vst.msk [vmem:[#allocation2 + $0x8] sm:$0xff] %vm430, %v419
      %433 = vst.msk [vmem:[#allocation2 + $0x10] sm:$0xff] %vm430, %v424
      %434 = vst.msk [vmem:[#allocation2 + $0x18] sm:$0xff] %vm430, %v427
      %s435 = scalar_lea.vmem %s3, 8
      %v436 = vld [vmem:[%s435] sm:$0xf]
      %v437 = vld [vmem:[%s435 + $0x4] sm:$0xf]
      %s438 = scalar_lea.vmem %s4, 1
      %v439 = vld [vmem:[%s438] sm:$0x1]
      %v441 = vlaneseq
      %v442 = vshrl.u32 %v441, 7
      %v443 = vsub.s32 0, %v442
      %v444 = vrot.slane %v439, %v443
      %v450 = vunpack.c.l.b16 %v345
      %v451 = vunpack.c.l.b16 %v346
      %v452 = vunpack.c.l.b16 %v347
      %v453 = vunpack.c.l.b16 %v348
      %v454 = vpack.c.b16 %v451, %v450
      %v455 = vpack.c.b16 %v453, %v452
      %v458 = vunpack.c.l.b16 %v436
      %v459 = vunpack.c.l.b16 %v437
      %v460 = vpack.c.b16 %v459, %v458
      %v463 = vsel %vm374, %v454, 0
      %v466 = vsel %vm374, %v455, 0
      %468 = vmatprep.subr.bf16.mxu0 0
      %469 = vmatpush1.bf16.msra.mxu0 0
      %470 = vmatprep.subr.bf16.mxu0 0
      %471 = vmatpush1.bf16.msra.mxu0 0
      %472 = vmatprep.subr.bf16.mxu0 0
      %473 = vmatpush1.bf16.msra.mxu0 0
      %474 = vmatprep.subr.bf16.mxu0 0
      %475 = vmatpush1.bf16.msra.mxu0 0
      %476 = vmatprep.subr.bf16.mxu0 0
      %477 = vmatpush1.bf16.msra.mxu0 0
      %478 = vmatprep.subr.bf16.mxu0 0
      %479 = vmatpush1.bf16.msra.mxu0 0
      %480 = vmatprep.subr.bf16.mxu0 0
      %481 = vmatpush1.bf16.msra.mxu0 0
      %482 = vmatprep.subr.bf16.mxu0 0
      %483 = vmatpush1.bf16.msra.mxu0 %v460
      %484 = vmatprep.subr.bf16.mxu0 0
      %485 = vmatpush2.bf16.msra.mxu0 0
      %486 = vmatprep.subr.bf16.mxu0 0
      %487 = vmatpush2.bf16.msra.mxu0 0
      %488 = vmatprep.subr.bf16.mxu0 0
      %489 = vmatpush2.bf16.msra.mxu0 0
      %490 = vmatprep.subr.bf16.mxu0 0
      %491 = vmatpush2.bf16.msra.mxu0 0
      %492 = vmatprep.subr.bf16.mxu0 0
      %493 = vmatpush2.bf16.msra.mxu0 0
      %494 = vmatprep.subr.bf16.mxu0 0
      %495 = vmatpush2.bf16.msra.mxu0 0
      %496 = vmatprep.subr.bf16.mxu0 0
      %497 = vmatpush2.bf16.msra.mxu0 0
      %498 = vmatprep.subr.bf16.mxu0 0
      %499 = vmatpush2.bf16.msra.mxu0 0
      %500 = vmatprep.mubr.bf16.mxu0 0
      %501 = vmatmul.mubr.bf16.gmra.mxu0 %v463
      %v502 = vpop.f32.mrf.mxu0
      %v503 = vadd.f32 %v444, %v502
      %v504 = vpop.f32.mrf.mxu0
      %v505 = vpop.f32.mrf.mxu0
      %v506 = vadd.f32 %v444, %v505
      %v507 = vpop.f32.mrf.mxu0
      %508 = vmatprep.mubr.bf16.mxu0 0
      %509 = vmatmul.mubr.bf16.gmra.mxu0 %v466
      %v510 = vpop.f32.mrf.mxu0
      %v511 = vadd.f32 %v444, %v510
      %v512 = vpop.f32.mrf.mxu0
      %v513 = vpop.f32.mrf.mxu0
      %v514 = vadd.f32 %v444, %v513
      %v515 = vpop.f32.mrf.mxu0
      %516 = vdwg.mxu0
      %517 = vst.msk [vmem:[#allocation3] sm:$0xff] %vm430, %v503
      %518 = vst.msk [vmem:[#allocation3 + $0x8] sm:$0xff] %vm430, %v506
      %519 = vst.msk [vmem:[#allocation3 + $0x10] sm:$0xff] %vm430, %v511
      %520 = vst.msk [vmem:[#allocation3 + $0x18] sm:$0xff] %vm430, %v514
      %v521 = vld [vmem:[%s5] sm:$0xf]
      %v522 = vld [vmem:[%s5 + $0x4] sm:$0xf]
      %s523 = scalar_lea.vmem %s5, 8
      %v524 = vld [vmem:[%s523] sm:$0xf]
      %v525 = vld [vmem:[%s523 + $0x4] sm:$0xf]
      %v526 = vld [vmem:[%s2] sm:$0xff]
      %s527 = smul.u32 %s19, 4
      %s528 = ssub.s32 1, %s19
      %s529 = smul.u32 %s528, 4
      %v530 = vld [vmem:[#allocation4] sm:$0xff]
      %v531 = vld [vmem:[#allocation5] sm:$0xff]
      %v532 = vld [vmem:[#allocation6] sm:$0xff]
      %v533 = vld [vmem:[#allocation7] sm:$0xff]
      %v534 = vstv %s527
      %vm535 = vcmp.lt.s32.totalorder %v534, %v526
      %s536 = sadd.s32 %s529, 3
      %v537 = vstv %s536
      %vm538 = vcmp.lt.s32.totalorder %v537, %v526
      %v539 = vld [vmem:[#allocation2] sm:$0xff]
      %v540 = vpack.c.bf16 %v530, %v530
      %v543 = vunpack.c.l.b16 %v521
      %v544 = vunpack.c.l.b16 %v522
      %v545 = vpack.c.b16 %v544, %v543
      %v548 = vsel %vm374, %v540, 0
      %550 = vmatprep.subr.bf16.mxu0 0
      %551 = vmatpush1.bf16.msra.mxu0 0
      %552 = vmatprep.subr.bf16.mxu0 0
      %553 = vmatpush1.bf16.msra.mxu0 0
      %554 = vmatprep.subr.bf16.mxu0 0
      %555 = vmatpush1.bf16.msra.mxu0 0
      %556 = vmatprep.subr.bf16.mxu0 0
      %557 = vmatpush1.bf16.msra.mxu0 0
      %558 = vmatprep.subr.bf16.mxu0 0
      %559 = vmatpush1.bf16.msra.mxu0 0
      %560 = vmatprep.subr.bf16.mxu0 0
      %561 = vmatpush1.bf16.msra.mxu0 0
      %562 = vmatprep.subr.bf16.mxu0 0
      %563 = vmatpush1.bf16.msra.mxu0 0
      %564 = vmatprep.subr.bf16.mxu0 0
      %565 = vmatpush1.bf16.msra.mxu0 %v545
      %566 = vmatprep.subr.bf16.mxu0 0
      %567 = vmatpush2.bf16.msra.mxu0 0
      %568 = vmatprep.subr.bf16.mxu0 0
      %569 = vmatpush2.bf16.msra.mxu0 0
      %570 = vmatprep.subr.bf16.mxu0 0
      %571 = vmatpush2.bf16.msra.mxu0 0
      %572 = vmatprep.subr.bf16.mxu0 0
      %573 = vmatpush2.bf16.msra.mxu0 0
      %574 = vmatprep.subr.bf16.mxu0 0
      %575 = vmatpush2.bf16.msra.mxu0 0
      %576 = vmatprep.subr.bf16.mxu0 0
      %577 = vmatpush2.bf16.msra.mxu0 0
      %578 = vmatprep.subr.bf16.mxu0 0
      %579 = vmatpush2.bf16.msra.mxu0 0
      %580 = vmatprep.subr.bf16.mxu0 0
      %581 = vmatpush2.bf16.msra.mxu0 0
      %582 = vmatprep.mubr.bf16.mxu0 0
      %583 = vmatmul.mubr.bf16.gmra.mxu0 %v548
      %v584 = vpop.f32.mrf.mxu0
      %v585 = vadd.f32 0.0, %v584
      %v586 = vpop.f32.mrf.mxu0
      %v587 = vpop.f32.mrf.mxu0
      %v588 = vpop.f32.mrf.mxu0
      %589 = vdwg.mxu0
      %v590 = vadd.f32 %v539, %v585
      %v591 = vpack.c.bf16 %v590, %v590
      %v592 = vxor.u32 %v591, 2147516416
      %v594 = vmul.bf16 %v592, 1069105081
      %v595 = vpow.bf16.pop %v594
      %v596 = vadd.bf16 %v595, 1065369472
      %v597 = vrcp.bf16.pop %v596
      %v598 = vmul.bf16 1065369472, %v597
      %v599 = vunpack.c.l.bf16 %v598
      %v600 = vtanh.bf16.pop %v591
      %v601 = vunpack.c.l.bf16 %v600
      %603 = vrot.lane.b32.xlu0 %v531, 16
      %v604 = vpop.permute.xlu0 %603
      %v606 = vmul.f32 %v599, %v604
      %608 = vrot.lane.b32.xlu0 %v601, 96
      %v609 = vpop.permute.xlu0 %608
      %v611 = vmul.f32 %v599, %v609
      %613 = vrot.lane.b32.xlu0 %v611, 16
      %v614 = vpop.permute.xlu0 %613
      %v616 = vadd.f32 %v606, %v614
      %v617 = vpack.c.bf16 %v616, %v616
      %v618 = vtanh.bf16.pop %v617
      %v619 = vunpack.c.l.bf16 %v618
      %621 = vrot.lane.b32.xlu0 %v619, 32
      %v622 = vpop.permute.xlu0 %621
      %v624 = vmul.f32 %v599, %v622
      %s625 = scalar_lea.vmem [#allocation3], 24
      %v626 = vld [vmem:[%s625] sm:$0xff]
      %v627 = vpack.c.bf16 %v532, %v532
      %v630 = vunpack.c.l.b16 %v524
      %v631 = vunpack.c.l.b16 %v525
      %v632 = vpack.c.b16 %v631, %v630
      %v635 = vsel %vm374, %v627, 0
      %637 = vmatprep.subr.bf16.mxu0 0
      %638 = vmatpush1.bf16.msra.mxu0 0
      %639 = vmatprep.subr.bf16.mxu0 0
      %640 = vmatpush1.bf16.msra.mxu0 0
      %641 = vmatprep.subr.bf16.mxu0 0
      %642 = vmatpush1.bf16.msra.mxu0 0
      %643 = vmatprep.subr.bf16.mxu0 0
      %644 = vmatpush1.bf16.msra.mxu0 0
      %645 = vmatprep.subr.bf16.mxu0 0
      %646 = vmatpush1.bf16.msra.mxu0 0
      %647 = vmatprep.subr.bf16.mxu0 0
      %648 = vmatpush1.bf16.msra.mxu0 0
      %649 = vmatprep.subr.bf16.mxu0 0
      %650 = vmatpush1.bf16.msra.mxu0 0
      %651 = vmatprep.subr.bf16.mxu0 0
      %652 = vmatpush1.bf16.msra.mxu0 %v632
      %653 = vmatprep.subr.bf16.mxu0 0
      %654 = vmatpush2.bf16.msra.mxu0 0
      %655 = vmatprep.subr.bf16.mxu0 0
      %656 = vmatpush2.bf16.msra.mxu0 0
      %657 = vmatprep.subr.bf16.mxu0 0
      %658 = vmatpush2.bf16.msra.mxu0 0
      %659 = vmatprep.subr.bf16.mxu0 0
      %660 = vmatpush2.bf16.msra.mxu0 0
      %661 = vmatprep.subr.bf16.mxu0 0
      %662 = vmatpush2.bf16.msra.mxu0 0
      %663 = vmatprep.subr.bf16.mxu0 0
      %664 = vmatpush2.bf16.msra.mxu0 0
      %665 = vmatprep.subr.bf16.mxu0 0
      %666 = vmatpush2.bf16.msra.mxu0 0
      %667 = vmatprep.subr.bf16.mxu0 0
      %668 = vmatpush2.bf16.msra.mxu0 0
      %669 = vmatprep.mubr.bf16.mxu0 0
      %670 = vmatmul.mubr.bf16.gmra.mxu0 %v635
      %v671 = vpop.f32.mrf.mxu0
      %v672 = vadd.f32 0.0, %v671
      %v673 = vpop.f32.mrf.mxu0
      %v674 = vpop.f32.mrf.mxu0
      %v675 = vpop.f32.mrf.mxu0
      %676 = vdwg.mxu0
      %v677 = vadd.f32 %v626, %v672
      %v678 = vpack.c.bf16 %v677, %v677
      %v679 = vxor.u32 %v678, 2147516416
      %v681 = vmul.bf16 %v679, 1069105081
      %v682 = vpow.bf16.pop %v681
      %v683 = vadd.bf16 %v682, 1065369472
      %v684 = vrcp.bf16.pop %v683
      %v685 = vmul.bf16 1065369472, %v684
      %v686 = vunpack.c.l.bf16 %v685
      %v687 = vtanh.bf16.pop %v678
      %v688 = vunpack.c.l.bf16 %v687
      %690 = vrot.lane.b32.xlu0 %v533, 16
      %v691 = vpop.permute.xlu0 %690
      %v693 = vmul.f32 %v686, %v691
      %695 = vrot.lane.b32.xlu0 %v688, 96
      %v696 = vpop.permute.xlu0 %695
      %v698 = vmul.f32 %v686, %v696
      %700 = vrot.lane.b32.xlu0 %v698, 16
      %v701 = vpop.permute.xlu0 %700
      %v703 = vadd.f32 %v693, %v701
      %v704 = vpack.c.bf16 %v703, %v703
      %v705 = vtanh.bf16.pop %v704
      %v706 = vunpack.c.l.bf16 %v705
      %708 = vrot.lane.b32.xlu0 %v706, 32
      %v709 = vpop.permute.xlu0 %708
      %v711 = vmul.f32 %v686, %v709
      %v712 = vsel %vm535, 1, 0
      %713 = vset.pattern.permute.xlu0 0
      %714 = vperm.xlu0 %713, %v712
      %v715 = vpop.permute.xlu0 %714
      %vm716 = vcmp.eq.s32.totalorder %v715, 1
      %718 = vrot.lane.b32.xlu0 %v530, 48
      %v719 = vpop.permute.xlu0 %718
      %v721 = vsel %vm716, %v624, %v719
      %v722 = vsel %vm716, %v616, %v604
      %v723 = vsel %vm538, 1, 0
      %724 = vset.pattern.permute.xlu0 0
      %725 = vperm.xlu0 %724, %v723
      %v726 = vpop.permute.xlu0 %725
      %vm727 = vcmp.eq.s32.totalorder %v726, 1
      %729 = vrot.lane.b32.xlu0 %v532, 48
      %v730 = vpop.permute.xlu0 %729
      %v732 = vsel %vm727, %v711, %v730
      %v733 = vsel %vm727, %v703, %v691
      %v734 = vsel %vm716, %v624, 0.0
      %v735 = vpack.c.bf16 %v734, %v734
      %v737 = vunpack.c.l.b16 %v735
      %v738 = vpack.c.b16 %v737, %v737
      %739 = vrot.lane.b32.xlu0 %v738, 80
      %v740 = vpop.permute.xlu0 %739
      %vm742 = vcmask 125952
      %743 = vst.msk [vmem:[%s320] sm:$0xf] %vm742, %v740
      %v744 = vsel %vm727, %v711, 0.0
      %v745 = vpack.c.bf16 %v744, %v744
      %v747 = vunpack.c.l.b16 %v745
      %v748 = vpack.c.b16 %v747, %v747
      %749 = vrot.lane.b32.xlu0 %v748, 80
      %v750 = vpop.permute.xlu0 %749
      %s752 = scalar_lea.vmem %s327, 12
      %753 = vst.msk [vmem:[%s752] sm:$0xf] %vm742, %v750
      %s754 = sadd.s32 %s527, 1
      %v755 = vstv %s754
      %vm756 = vcmp.lt.s32.totalorder %v755, %v526
      %s757 = sadd.s32 %s529, 2
      %v758 = vstv %s757
      %vm759 = vcmp.lt.s32.totalorder %v758, %v526
      %s760 = scalar_lea.vmem [#allocation2], 8
      %v761 = vld [vmem:[%s760] sm:$0xff]
      %v762 = vpack.c.bf16 %v721, %v721
      %764 = vrot.lane.b32.xlu0 %v762, 80
      %v765 = vpop.permute.xlu0 %764
      %v767 = vsel %vm374, %v765, 0
      %769 = vmatprep.subr.bf16.mxu0 0
      %770 = vmatpush1.bf16.msra.mxu0 0
      %771 = vmatprep.subr.bf16.mxu0 0
      %772 = vmatpush1.bf16.msra.mxu0 0
      %773 = vmatprep.subr.bf16.mxu0 0
      %774 = vmatpush1.bf16.msra.mxu0 0
      %775 = vmatprep.subr.bf16.mxu0 0
      %776 = vmatpush1.bf16.msra.mxu0 0
      %777 = vmatprep.subr.bf16.mxu0 0
      %778 = vmatpush1.bf16.msra.mxu0 0
      %779 = vmatprep.subr.bf16.mxu0 0
      %780 = vmatpush1.bf16.msra.mxu0 0
      %781 = vmatprep.subr.bf16.mxu0 0
      %782 = vmatpush1.bf16.msra.mxu0 0
      %783 = vmatprep.subr.bf16.mxu0 0
      %784 = vmatpush1.bf16.msra.mxu0 %v545
      %785 = vmatprep.subr.bf16.mxu0 0
      %786 = vmatpush2.bf16.msra.mxu0 0
      %787 = vmatprep.subr.bf16.mxu0 0
      %788 = vmatpush2.bf16.msra.mxu0 0
      %789 = vmatprep.subr.bf16.mxu0 0
      %790 = vmatpush2.bf16.msra.mxu0 0
      %791 = vmatprep.subr.bf16.mxu0 0
      %792 = vmatpush2.bf16.msra.mxu0 0
      %793 = vmatprep.subr.bf16.mxu0 0
      %794 = vmatpush2.bf16.msra.mxu0 0
      %795 = vmatprep.subr.bf16.mxu0 0
      %796 = vmatpush2.bf16.msra.mxu0 0
      %797 = vmatprep.subr.bf16.mxu0 0
      %798 = vmatpush2.bf16.msra.mxu0 0
      %799 = vmatprep.subr.bf16.mxu0 0
      %800 = vmatpush2.bf16.msra.mxu0 0
      %801 = vmatprep.mubr.bf16.mxu0 0
      %802 = vmatmul.mubr.bf16.gmra.mxu0 %v767
      %v803 = vpop.f32.mrf.mxu0
      %v804 = vadd.f32 0.0, %v803
      %v805 = vpop.f32.mrf.mxu0
      %v806 = vpop.f32.mrf.mxu0
      %v807 = vpop.f32.mrf.mxu0
      %808 = vdwg.mxu0
      %v809 = vadd.f32 %v761, %v804
      %v810 = vpack.c.bf16 %v809, %v809
      %v811 = vxor.u32 %v810, 2147516416
      %v813 = vmul.bf16 %v811, 1069105081
      %v814 = vpow.bf16.pop %v813
      %v815 = vadd.bf16 %v814, 1065369472
      %v816 = vrcp.bf16.pop %v815
      %v817 = vmul.bf16 1065369472, %v816
      %v818 = vunpack.c.l.bf16 %v817
      %v819 = vtanh.bf16.pop %v810
      %v820 = vunpack.c.l.bf16 %v819
      %v821 = vmul.f32 %v818, %v722
      %823 = vrot.lane.b32.xlu0 %v820, 96
      %v824 = vpop.permute.xlu0 %823
      %v826 = vmul.f32 %v818, %v824
      %828 = vrot.lane.b32.xlu0 %v826, 16
      %v829 = vpop.permute.xlu0 %828
      %v831 = vadd.f32 %v821, %v829
      %v832 = vpack.c.bf16 %v831, %v831
      %v833 = vtanh.bf16.pop %v832
      %v834 = vunpack.c.l.bf16 %v833
      %836 = vrot.lane.b32.xlu0 %v834, 32
      %v837 = vpop.permute.xlu0 %836
      %v839 = vmul.f32 %v818, %v837
      %s840 = scalar_lea.vmem [#allocation3], 16
      %v841 = vld [vmem:[%s840] sm:$0xff]
      %v842 = vpack.c.bf16 %v732, %v732
      %844 = vrot.lane.b32.xlu0 %v842, 80
      %v845 = vpop.permute.xlu0 %844
      %v847 = vsel %vm374, %v845, 0
      %849 = vmatprep.subr.bf16.mxu0 0
      %850 = vmatpush1.bf16.msra.mxu0 0
      %851 = vmatprep.subr.bf16.mxu0 0
      %852 = vmatpush1.bf16.msra.mxu0 0
      %853 = vmatprep.subr.bf16.mxu0 0
      %854 = vmatpush1.bf16.msra.mxu0 0
      %855 = vmatprep.subr.bf16.mxu0 0
      %856 = vmatpush1.bf16.msra.mxu0 0
      %857 = vmatprep.subr.bf16.mxu0 0
      %858 = vmatpush1.bf16.msra.mxu0 0
      %859 = vmatprep.subr.bf16.mxu0 0
      %860 = vmatpush1.bf16.msra.mxu0 0
      %861 = vmatprep.subr.bf16.mxu0 0
      %862 = vmatpush1.bf16.msra.mxu0 0
      %863 = vmatprep.subr.bf16.mxu0 0
      %864 = vmatpush1.bf16.msra.mxu0 %v632
      %865 = vmatprep.subr.bf16.mxu0 0
      %866 = vmatpush2.bf16.msra.mxu0 0
      %867 = vmatprep.subr.bf16.mxu0 0
      %868 = vmatpush2.bf16.msra.mxu0 0
      %869 = vmatprep.subr.bf16.mxu0 0
      %870 = vmatpush2.bf16.msra.mxu0 0
      %871 = vmatprep.subr.bf16.mxu0 0
      %872 = vmatpush2.bf16.msra.mxu0 0
      %873 = vmatprep.subr.bf16.mxu0 0
      %874 = vmatpush2.bf16.msra.mxu0 0
      %875 = vmatprep.subr.bf16.mxu0 0
      %876 = vmatpush2.bf16.msra.mxu0 0
      %877 = vmatprep.subr.bf16.mxu0 0
      %878 = vmatpush2.bf16.msra.mxu0 0
      %879 = vmatprep.subr.bf16.mxu0 0
      %880 = vmatpush2.bf16.msra.mxu0 0
      %881 = vmatprep.mubr.bf16.mxu0 0
      %882 = vmatmul.mubr.bf16.gmra.mxu0 %v847
      %v883 = vpop.f32.mrf.mxu0
      %v884 = vadd.f32 0.0, %v883
      %v885 = vpop.f32.mrf.mxu0
      %v886 = vpop.f32.mrf.mxu0
      %v887 = vpop.f32.mrf.mxu0
      %888 = vdwg.mxu0
      %v889 = vadd.f32 %v841, %v884
      %v890 = vpack.c.bf16 %v889, %v889
      %v891 = vxor.u32 %v890, 2147516416
      %v893 = vmul.bf16 %v891, 1069105081
      %v894 = vpow.bf16.pop %v893
      %v895 = vadd.bf16 %v894, 1065369472
      %v896 = vrcp.bf16.pop %v895
      %v897 = vmul.bf16 1065369472, %v896
      %v898 = vunpack.c.l.bf16 %v897
      %v899 = vtanh.bf16.pop %v890
      %v900 = vunpack.c.l.bf16 %v899
      %v901 = vmul.f32 %v898, %v733
      %903 = vrot.lane.b32.xlu0 %v900, 96
      %v904 = vpop.permute.xlu0 %903
      %v906 = vmul.f32 %v898, %v904
      %908 = vrot.lane.b32.xlu0 %v906, 16
      %v909 = vpop.permute.xlu0 %908
      %v911 = vadd.f32 %v901, %v909
      %v912 = vpack.c.bf16 %v911, %v911
      %v913 = vtanh.bf16.pop %v912
      %v914 = vunpack.c.l.bf16 %v913
      %916 = vrot.lane.b32.xlu0 %v914, 32
      %v917 = vpop.permute.xlu0 %916
      %v919 = vmul.f32 %v898, %v917
      %v920 = vsel %vm756, 1, 0
      %921 = vset.pattern.permute.xlu0 0
      %922 = vperm.xlu0 %921, %v920
      %v923 = vpop.permute.xlu0 %922
      %vm924 = vcmp.eq.s32.totalorder %v923, 1
      %v925 = vsel %vm924, %v839, %v721
      %v926 = vsel %vm924, %v831, %v722
      %v927 = vsel %vm759, 1, 0
      %928 = vset.pattern.permute.xlu0 0
      %929 = vperm.xlu0 %928, %v927
      %v930 = vpop.permute.xlu0 %929
      %vm931 = vcmp.eq.s32.totalorder %v930, 1
      %v932 = vsel %vm931, %v919, %v732
      %v933 = vsel %vm931, %v911, %v733
      %v934 = vsel %vm924, %v839, 0.0
      %v935 = vpack.c.bf16 %v934, %v934
      %v937 = vunpack.c.l.b16 %v935
      %v938 = vpack.c.b16 %v937, %v937
      %939 = vrot.lane.b32.xlu0 %v938, 80
      %v940 = vpop.permute.xlu0 %939
      %s942 = scalar_lea.vmem %s320, 4
      %943 = vst.msk [vmem:[%s942] sm:$0xf] %vm742, %v940
      %v944 = vsel %vm931, %v919, 0.0
      %v945 = vpack.c.bf16 %v944, %v944
      %v947 = vunpack.c.l.b16 %v945
      %v948 = vpack.c.b16 %v947, %v947
      %949 = vrot.lane.b32.xlu0 %v948, 80
      %v950 = vpop.permute.xlu0 %949
      %s952 = scalar_lea.vmem %s327, 8
      %953 = vst.msk [vmem:[%s952] sm:$0xf] %vm742, %v950
      %s954 = sadd.s32 %s527, 2
      %v955 = vstv %s954
      %vm956 = vcmp.lt.s32.totalorder %v955, %v526
      %s957 = sadd.s32 %s529, 1
      %v958 = vstv %s957
      %vm959 = vcmp.lt.s32.totalorder %v958, %v526
      %s960 = scalar_lea.vmem [#allocation2], 16
      %v961 = vld [vmem:[%s960] sm:$0xff]
      %v962 = vpack.c.bf16 %v925, %v925
      %964 = vrot.lane.b32.xlu0 %v962, 80
      %v965 = vpop.permute.xlu0 %964
      %v967 = vsel %vm374, %v965, 0
      %969 = vmatprep.subr.bf16.mxu0 0
      %970 = vmatpush1.bf16.msra.mxu0 0
      %971 = vmatprep.subr.bf16.mxu0 0
      %972 = vmatpush1.bf16.msra.mxu0 0
      %973 = vmatprep.subr.bf16.mxu0 0
      %974 = vmatpush1.bf16.msra.mxu0 0
      %975 = vmatprep.subr.bf16.mxu0 0
      %976 = vmatpush1.bf16.msra.mxu0 0
      %977 = vmatprep.subr.bf16.mxu0 0
      %978 = vmatpush1.bf16.msra.mxu0 0
      %979 = vmatprep.subr.bf16.mxu0 0
      %980 = vmatpush1.bf16.msra.mxu0 0
      %981 = vmatprep.subr.bf16.mxu0 0
      %982 = vmatpush1.bf16.msra.mxu0 0
      %983 = vmatprep.subr.bf16.mxu0 0
      %984 = vmatpush1.bf16.msra.mxu0 %v545
      %985 = vmatprep.subr.bf16.mxu0 0
      %986 = vmatpush2.bf16.msra.mxu0 0
      %987 = vmatprep.subr.bf16.mxu0 0
      %988 = vmatpush2.bf16.msra.mxu0 0
      %989 = vmatprep.subr.bf16.mxu0 0
      %990 = vmatpush2.bf16.msra.mxu0 0
      %991 = vmatprep.subr.bf16.mxu0 0
      %992 = vmatpush2.bf16.msra.mxu0 0
      %993 = vmatprep.subr.bf16.mxu0 0
      %994 = vmatpush2.bf16.msra.mxu0 0
      %995 = vmatprep.subr.bf16.mxu0 0
      %996 = vmatpush2.bf16.msra.mxu0 0
      %997 = vmatprep.subr.bf16.mxu0 0
      %998 = vmatpush2.bf16.msra.mxu0 0
      %999 = vmatprep.subr.bf16.mxu0 0
      %1000 = vmatpush2.bf16.msra.mxu0 0
      %1001 = vmatprep.mubr.bf16.mxu0 0
      %1002 = vmatmul.mubr.bf16.gmra.mxu0 %v967
      %v1003 = vpop.f32.mrf.mxu0
      %v1004 = vadd.f32 0.0, %v1003
      %v1005 = vpop.f32.mrf.mxu0
      %v1006 = vpop.f32.mrf.mxu0
      %v1007 = vpop.f32.mrf.mxu0
      %1008 = vdwg.mxu0
      %v1009 = vadd.f32 %v961, %v1004
      %v1010 = vpack.c.bf16 %v1009, %v1009
      %v1011 = vxor.u32 %v1010, 2147516416
      %v1013 = vmul.bf16 %v1011, 1069105081
      %v1014 = vpow.bf16.pop %v1013
      %v1015 = vadd.bf16 %v1014, 1065369472
      %v1016 = vrcp.bf16.pop %v1015
      %v1017 = vmul.bf16 1065369472, %v1016
      %v1018 = vunpack.c.l.bf16 %v1017
      %v1019 = vtanh.bf16.pop %v1010
      %v1020 = vunpack.c.l.bf16 %v1019
      %v1021 = vmul.f32 %v1018, %v926
      %1023 = vrot.lane.b32.xlu0 %v1020, 96
      %v1024 = vpop.permute.xlu0 %1023
      %v1026 = vmul.f32 %v1018, %v1024
      %1028 = vrot.lane.b32.xlu0 %v1026, 16
      %v1029 = vpop.permute.xlu0 %1028
      %v1031 = vadd.f32 %v1021, %v1029
      %v1032 = vpack.c.bf16 %v1031, %v1031
      %v1033 = vtanh.bf16.pop %v1032
      %v1034 = vunpack.c.l.bf16 %v1033
      %1036 = vrot.lane.b32.xlu0 %v1034, 32
      %v1037 = vpop.permute.xlu0 %1036
      %v1039 = vmul.f32 %v1018, %v1037
      %s1040 = scalar_lea.vmem [#allocation3], 8
      %v1041 = vld [vmem:[%s1040] sm:$0xff]
      %v1042 = vpack.c.bf16 %v932, %v932
      %1044 = vrot.lane.b32.xlu0 %v1042, 80
      %v1045 = vpop.permute.xlu0 %1044
      %v1047 = vsel %vm374, %v1045, 0
      %1049 = vmatprep.subr.bf16.mxu0 0
      %1050 = vmatpush1.bf16.msra.mxu0 0
      %1051 = vmatprep.subr.bf16.mxu0 0
      %1052 = vmatpush1.bf16.msra.mxu0 0
      %1053 = vmatprep.subr.bf16.mxu0 0
      %1054 = vmatpush1.bf16.msra.mxu0 0
      %1055 = vmatprep.subr.bf16.mxu0 0
      %1056 = vmatpush1.bf16.msra.mxu0 0
      %1057 = vmatprep.subr.bf16.mxu0 0
      %1058 = vmatpush1.bf16.msra.mxu0 0
      %1059 = vmatprep.subr.bf16.mxu0 0
      %1060 = vmatpush1.bf16.msra.mxu0 0
      %1061 = vmatprep.subr.bf16.mxu0 0
      %1062 = vmatpush1.bf16.msra.mxu0 0
      %1063 = vmatprep.subr.bf16.mxu0 0
      %1064 = vmatpush1.bf16.msra.mxu0 %v632
      %1065 = vmatprep.subr.bf16.mxu0 0
      %1066 = vmatpush2.bf16.msra.mxu0 0
      %1067 = vmatprep.subr.bf16.mxu0 0
      %1068 = vmatpush2.bf16.msra.mxu0 0
      %1069 = vmatprep.subr.bf16.mxu0 0
      %1070 = vmatpush2.bf16.msra.mxu0 0
      %1071 = vmatprep.subr.bf16.mxu0 0
      %1072 = vmatpush2.bf16.msra.mxu0 0
      %1073 = vmatprep.subr.bf16.mxu0 0
      %1074 = vmatpush2.bf16.msra.mxu0 0
      %1075 = vmatprep.subr.bf16.mxu0 0
      %1076 = vmatpush2.bf16.msra.mxu0 0
      %1077 = vmatprep.subr.bf16.mxu0 0
      %1078 = vmatpush2.bf16.msra.mxu0 0
      %1079 = vmatprep.subr.bf16.mxu0 0
      %1080 = vmatpush2.bf16.msra.mxu0 0
      %1081 = vmatprep.mubr.bf16.mxu0 0
      %1082 = vmatmul.mubr.bf16.gmra.mxu0 %v1047
      %v1083 = vpop.f32.mrf.mxu0
      %v1084 = vadd.f32 0.0, %v1083
      %v1085 = vpop.f32.mrf.mxu0
      %v1086 = vpop.f32.mrf.mxu0
      %v1087 = vpop.f32.mrf.mxu0
      %1088 = vdwg.mxu0
      %v1089 = vadd.f32 %v1041, %v1084
      %v1090 = vpack.c.bf16 %v1089, %v1089
      %v1091 = vxor.u32 %v1090, 2147516416
      %v1093 = vmul.bf16 %v1091, 1069105081
      %v1094 = vpow.bf16.pop %v1093
      %v1095 = vadd.bf16 %v1094, 1065369472
      %v1096 = vrcp.bf16.pop %v1095
      %v1097 = vmul.bf16 1065369472, %v1096
      %v1098 = vunpack.c.l.bf16 %v1097
      %v1099 = vtanh.bf16.pop %v1090
      %v1100 = vunpack.c.l.bf16 %v1099
      %v1101 = vmul.f32 %v1098, %v933
      %1103 = vrot.lane.b32.xlu0 %v1100, 96
      %v1104 = vpop.permute.xlu0 %1103
      %v1106 = vmul.f32 %v1098, %v1104
      %1108 = vrot.lane.b32.xlu0 %v1106, 16
      %v1109 = vpop.permute.xlu0 %1108
      %v1111 = vadd.f32 %v1101, %v1109
      %v1112 = vpack.c.bf16 %v1111, %v1111
      %v1113 = vtanh.bf16.pop %v1112
      %v1114 = vunpack.c.l.bf16 %v1113
      %1116 = vrot.lane.b32.xlu0 %v1114, 32
      %v1117 = vpop.permute.xlu0 %1116
      %v1119 = vmul.f32 %v1098, %v1117
      %v1120 = vsel %vm956, 1, 0
      %1121 = vset.pattern.permute.xlu0 0
      %1122 = vperm.xlu0 %1121, %v1120
      %v1123 = vpop.permute.xlu0 %1122
      %vm1124 = vcmp.eq.s32.totalorder %v1123, 1
      %v1125 = vsel %vm1124, %v1039, %v925
      %v1126 = vsel %vm1124, %v1031, %v926
      %v1127 = vsel %vm959, 1, 0
      %1128 = vset.pattern.permute.xlu0 0
      %1129 = vperm.xlu0 %1128, %v1127
      %v1130 = vpop.permute.xlu0 %1129
      %vm1131 = vcmp.eq.s32.totalorder %v1130, 1
      %v1132 = vsel %vm1131, %v1119, %v932
      %v1133 = vsel %vm1131, %v1111, %v933
      %v1134 = vsel %vm1124, %v1039, 0.0
      %v1135 = vpack.c.bf16 %v1134, %v1134
      %v1137 = vunpack.c.l.b16 %v1135
      %v1138 = vpack.c.b16 %v1137, %v1137
      %1139 = vrot.lane.b32.xlu0 %v1138, 80
      %v1140 = vpop.permute.xlu0 %1139
      %s1142 = scalar_lea.vmem %s320, 8
      %1143 = vst.msk [vmem:[%s1142] sm:$0xf] %vm742, %v1140
      %v1144 = vsel %vm1131, %v1119, 0.0
      %v1145 = vpack.c.bf16 %v1144, %v1144
      %v1147 = vunpack.c.l.b16 %v1145
      %v1148 = vpack.c.b16 %v1147, %v1147
      %1149 = vrot.lane.b32.xlu0 %v1148, 80
      %v1150 = vpop.permute.xlu0 %1149
      %s1152 = scalar_lea.vmem %s327, 4
      %1153 = vst.msk [vmem:[%s1152] sm:$0xf] %vm742, %v1150
      %s1154 = sadd.s32 %s527, 3
      %v1155 = vstv %s1154
      %vm1156 = vcmp.lt.s32.totalorder %v1155, %v526
      %v1157 = vstv %s529
      %vm1158 = vcmp.lt.s32.totalorder %v1157, %v526
      %s1159 = scalar_lea.vmem [#allocation2], 24
      %v1160 = vld [vmem:[%s1159] sm:$0xff]
      %v1161 = vpack.c.bf16 %v1125, %v1125
      %1163 = vrot.lane.b32.xlu0 %v1161, 80
      %v1164 = vpop.permute.xlu0 %1163
      %v1166 = vsel %vm374, %v1164, 0
      %1168 = vmatprep.subr.bf16.mxu0 0
      %1169 = vmatpush1.bf16.msra.mxu0 0
      %1170 = vmatprep.subr.bf16.mxu0 0
      %1171 = vmatpush1.bf16.msra.mxu0 0
      %1172 = vmatprep.subr.bf16.mxu0 0
      %1173 = vmatpush1.bf16.msra.mxu0 0
      %1174 = vmatprep.subr.bf16.mxu0 0
      %1175 = vmatpush1.bf16.msra.mxu0 0
      %1176 = vmatprep.subr.bf16.mxu0 0
      %1177 = vmatpush1.bf16.msra.mxu0 0
      %1178 = vmatprep.subr.bf16.mxu0 0
      %1179 = vmatpush1.bf16.msra.mxu0 0
      %1180 = vmatprep.subr.bf16.mxu0 0
      %1181 = vmatpush1.bf16.msra.mxu0 0
      %1182 = vmatprep.subr.bf16.mxu0 0
      %1183 = vmatpush1.bf16.msra.mxu0 %v545
      %1184 = vmatprep.subr.bf16.mxu0 0
      %1185 = vmatpush2.bf16.msra.mxu0 0
      %1186 = vmatprep.subr.bf16.mxu0 0
      %1187 = vmatpush2.bf16.msra.mxu0 0
      %1188 = vmatprep.subr.bf16.mxu0 0
      %1189 = vmatpush2.bf16.msra.mxu0 0
      %1190 = vmatprep.subr.bf16.mxu0 0
      %1191 = vmatpush2.bf16.msra.mxu0 0
      %1192 = vmatprep.subr.bf16.mxu0 0
      %1193 = vmatpush2.bf16.msra.mxu0 0
      %1194 = vmatprep.subr.bf16.mxu0 0
      %1195 = vmatpush2.bf16.msra.mxu0 0
      %1196 = vmatprep.subr.bf16.mxu0 0
      %1197 = vmatpush2.bf16.msra.mxu0 0
      %1198 = vmatprep.subr.bf16.mxu0 0
      %1199 = vmatpush2.bf16.msra.mxu0 0
      %1200 = vmatprep.mubr.bf16.mxu0 0
      %1201 = vmatmul.mubr.bf16.gmra.mxu0 %v1166
      %v1202 = vpop.f32.mrf.mxu0
      %v1203 = vadd.f32 0.0, %v1202
      %v1204 = vpop.f32.mrf.mxu0
      %v1205 = vpop.f32.mrf.mxu0
      %v1206 = vpop.f32.mrf.mxu0
      %1207 = vdwg.mxu0
      %v1208 = vadd.f32 %v1160, %v1203
      %v1209 = vpack.c.bf16 %v1208, %v1208
      %v1210 = vxor.u32 %v1209, 2147516416
      %v1212 = vmul.bf16 %v1210, 1069105081
      %v1213 = vpow.bf16.pop %v1212
      %v1214 = vadd.bf16 %v1213, 1065369472
      %v1215 = vrcp.bf16.pop %v1214
      %v1216 = vmul.bf16 1065369472, %v1215
      %v1217 = vunpack.c.l.bf16 %v1216
      %v1218 = vtanh.bf16.pop %v1209
      %v1219 = vunpack.c.l.bf16 %v1218
      %v1220 = vmul.f32 %v1217, %v1126
      %1222 = vrot.lane.b32.xlu0 %v1219, 96
      %v1223 = vpop.permute.xlu0 %1222
      %v1225 = vmul.f32 %v1217, %v1223
      %1227 = vrot.lane.b32.xlu0 %v1225, 16
      %v1228 = vpop.permute.xlu0 %1227
      %v1230 = vadd.f32 %v1220, %v1228
      %v1231 = vpack.c.bf16 %v1230, %v1230
      %v1232 = vtanh.bf16.pop %v1231
      %v1233 = vunpack.c.l.bf16 %v1232
      %1235 = vrot.lane.b32.xlu0 %v1233, 32
      %v1236 = vpop.permute.xlu0 %1235
      %v1238 = vmul.f32 %v1217, %v1236
      %v1239 = vld [vmem:[#allocation3] sm:$0xff]
      %v1240 = vpack.c.bf16 %v1132, %v1132
      %1242 = vrot.lane.b32.xlu0 %v1240, 80
      %v1243 = vpop.permute.xlu0 %1242
      %v1245 = vsel %vm374, %v1243, 0
      %1247 = vmatprep.subr.bf16.mxu0 0
      %1248 = vmatpush1.bf16.msra.mxu0 0
      %1249 = vmatprep.subr.bf16.mxu0 0
      %1250 = vmatpush1.bf16.msra.mxu0 0
      %1251 = vmatprep.subr.bf16.mxu0 0
      %1252 = vmatpush1.bf16.msra.mxu0 0
      %1253 = vmatprep.subr.bf16.mxu0 0
      %1254 = vmatpush1.bf16.msra.mxu0 0
      %1255 = vmatprep.subr.bf16.mxu0 0
      %1256 = vmatpush1.bf16.msra.mxu0 0
      %1257 = vmatprep.subr.bf16.mxu0 0
      %1258 = vmatpush1.bf16.msra.mxu0 0
      %1259 = vmatprep.subr.bf16.mxu0 0
      %1260 = vmatpush1.bf16.msra.mxu0 0
      %1261 = vmatprep.subr.bf16.mxu0 0
      %1262 = vmatpush1.bf16.msra.mxu0 %v632
      %1263 = vmatprep.subr.bf16.mxu0 0
      %1264 = vmatpush2.bf16.msra.mxu0 0
      %1265 = vmatprep.subr.bf16.mxu0 0
      %1266 = vmatpush2.bf16.msra.mxu0 0
      %1267 = vmatprep.subr.bf16.mxu0 0
      %1268 = vmatpush2.bf16.msra.mxu0 0
      %1269 = vmatprep.subr.bf16.mxu0 0
      %1270 = vmatpush2.bf16.msra.mxu0 0
      %1271 = vmatprep.subr.bf16.mxu0 0
      %1272 = vmatpush2.bf16.msra.mxu0 0
      %1273 = vmatprep.subr.bf16.mxu0 0
      %1274 = vmatpush2.bf16.msra.mxu0 0
      %1275 = vmatprep.subr.bf16.mxu0 0
      %1276 = vmatpush2.bf16.msra.mxu0 0
      %1277 = vmatprep.subr.bf16.mxu0 0
      %1278 = vmatpush2.bf16.msra.mxu0 0
      %1279 = vmatprep.mubr.bf16.mxu0 0
      %1280 = vmatmul.mubr.bf16.gmra.mxu0 %v1245
      %v1281 = vpop.f32.mrf.mxu0
      %v1282 = vadd.f32 0.0, %v1281
      %v1283 = vpop.f32.mrf.mxu0
      %v1284 = vpop.f32.mrf.mxu0
      %v1285 = vpop.f32.mrf.mxu0
      %1286 = vdwg.mxu0
      %v1287 = vadd.f32 %v1239, %v1282
      %v1288 = vpack.c.bf16 %v1287, %v1287
      %v1289 = vxor.u32 %v1288, 2147516416
      %v1291 = vmul.bf16 %v1289, 1069105081
      %v1292 = vpow.bf16.pop %v1291
      %v1293 = vadd.bf16 %v1292, 1065369472
      %v1294 = vrcp.bf16.pop %v1293
      %v1295 = vmul.bf16 1065369472, %v1294
      %v1296 = vunpack.c.l.bf16 %v1295
      %v1297 = vtanh.bf16.pop %v1288
      %v1298 = vunpack.c.l.bf16 %v1297
      %v1299 = vmul.f32 %v1296, %v1133
      %1301 = vrot.lane.b32.xlu0 %v1298, 96
      %v1302 = vpop.permute.xlu0 %1301
      %v1304 = vmul.f32 %v1296, %v1302
      %1306 = vrot.lane.b32.xlu0 %v1304, 16
      %v1307 = vpop.permute.xlu0 %1306
      %v1309 = vadd.f32 %v1299, %v1307
      %v1310 = vpack.c.bf16 %v1309, %v1309
      %v1311 = vtanh.bf16.pop %v1310
      %v1312 = vunpack.c.l.bf16 %v1311
      %1314 = vrot.lane.b32.xlu0 %v1312, 32
      %v1315 = vpop.permute.xlu0 %1314
      %v1317 = vmul.f32 %v1296, %v1315
      %v1318 = vsel %vm1156, 1, 0
      %1319 = vset.pattern.permute.xlu0 0
      %1320 = vperm.xlu0 %1319, %v1318
      %v1321 = vpop.permute.xlu0 %1320
      %vm1322 = vcmp.eq.s32.totalorder %v1321, 1
      %v1323 = vsel %vm1322, %v1238, %v1125
      %v1324 = vsel %vm1322, %v1230, %v1126
      %v1325 = vsel %vm1158, 1, 0
      %1326 = vset.pattern.permute.xlu0 0
      %1327 = vperm.xlu0 %1326, %v1325
      %v1328 = vpop.permute.xlu0 %1327
      %vm1329 = vcmp.eq.s32.totalorder %v1328, 1
      %v1330 = vsel %vm1329, %v1317, %v1132
      %v1331 = vsel %vm1329, %v1309, %v1133
      %v1332 = vsel %vm1322, %v1238, 0.0
      %v1333 = vpack.c.bf16 %v1332, %v1332
      %v1335 = vunpack.c.l.b16 %v1333
      %v1336 = vpack.c.b16 %v1335, %v1335
      %1337 = vrot.lane.b32.xlu0 %v1336, 80
      %v1338 = vpop.permute.xlu0 %1337
      %s1340 = scalar_lea.vmem %s320, 12
      %1341 = vst.msk [vmem:[%s1340] sm:$0xf] %vm742, %v1338
      %v1342 = vsel %vm1329, %v1317, 0.0
      %v1343 = vpack.c.bf16 %v1342, %v1342
      %v1345 = vunpack.c.l.b16 %v1343
      %v1346 = vpack.c.b16 %v1345, %v1345
      %1347 = vrot.lane.b32.xlu0 %v1346, 80
      %v1348 = vpop.permute.xlu0 %1347
      %1350 = vst.msk [vmem:[%s327] sm:$0xf] %vm742, %v1348
      %1352 = vrot.lane.b32.xlu0 %v1323, 80
      %v1353 = vpop.permute.xlu0 %1352
      %1355 = vst.msk [vmem:[#allocation4] sm:$0xff] %vm374, %v1353
      %1357 = vrot.lane.b32.xlu0 %v1324, 112
      %v1358 = vpop.permute.xlu0 %1357
      %1360 = vst.msk [vmem:[#allocation5] sm:$0xff] %vm374, %v1358
      %1362 = vrot.lane.b32.xlu0 %v1330, 80
      %v1363 = vpop.permute.xlu0 %1362
      %1365 = vst.msk [vmem:[#allocation6] sm:$0xff] %vm374, %v1363
      %1367 = vrot.lane.b32.xlu0 %v1331, 112
      %v1368 = vpop.permute.xlu0 %1367
      %1370 = vst.msk [vmem:[#allocation7] sm:$0xff] %vm374, %v1368
      %s1371 = smul.u32 4, %s19
      %p1372 = scmp.lt.s32.totalorder %s1371, 7
      %s1373 = scalar_select %p1372, %s1371, 7
      %s1374 = smul.addr %s1373, 4
      %s1375 = scalar_lea.vmem %s6, %s1374
      %s1376 = ssub.s32 1, %s19
      %s1377 = smul.u32 4, %s1376
      %p1378 = scmp.lt.s32.totalorder %s1377, 7
      %s1379 = scalar_select %p1378, %s1377, 7
      %s1380 = smul.addr %s1379, 4
      %s1381 = scalar_lea.vmem %s7, %s1380
      // Predicated region
      $region49: #{ct_forward.4} parent=43 // pred_check
        %p1382 = pneg %p175
      $region50: #{ct_forward.4} parent=43 // pred_check_branch
        %1384 = sbr.rel (%p1382) target = $region52
      $region51: #{ct_forward.4} parent=43 // pred_region
        %s1385 = smul.u32 4, %s19
      $region52: #{ct_forward.4} parent=43 // pred_fallthru
        _
      // Predicated region
      $region53: #{ct_forward.4} parent=43 // pred_check
        %p1386 = pneg %p203
      $region54: #{ct_forward.4} parent=43 // pred_check_branch
        %1388 = sbr.rel (%p1386) target = $region56
      $region55: #{ct_forward.4} parent=43 // pred_region
        %s1389 = ssub.s32 1, %s19
        %s1390 = smul.u32 4, %s1389
      $region56: #{ct_forward.4} parent=43 // pred_fallthru
        _
    $region44: #{ct_forward.4} parent=5 // pred_fallthru
      _
    %p1391 = scmp.le.s32.totalorder 2, %s14
    // Predicated region
    $region57: #{ct_forward.4} parent=5 // pred_check
      %p1392 = pneg %p1391
    $region58: #{ct_forward.4} parent=5 // pred_check_branch
      %1394 = sbr.rel (%p1392) target = $region60
    $region59: #{ct_forward.4} parent=5 // pred_region
      %s1395 = ssub.s32 %s14, 2
      // Predicated region
      $region61: #{ct_forward.4} parent=59 // pred_check
        %p1396 = pneg %p181
      $region62: #{ct_forward.4} parent=59 // pred_check_branch
        %1398 = sbr.rel (%p1396) target = $region64
      $region63: #{ct_forward.4} parent=59 // pred_region
        %s1399 = smul.u32 4, %s20
        %p1400 = scmp.lt.s32.totalorder %s1399, 7
        %s1401 = scalar_select %p1400, %s1399, 7
        %s1402 = smul.addr %s1401, 4
        %s1403 = scalar_lea.vmem %s6, %s1402
      $region64: #{ct_forward.4} parent=59 // pred_fallthru
        _
      // Predicated region
      $region65: #{ct_forward.4} parent=59 // pred_check
        %p1404 = pneg %p209
      $region66: #{ct_forward.4} parent=59 // pred_check_branch
        %1406 = sbr.rel (%p1404) target = $region68
      $region67: #{ct_forward.4} parent=59 // pred_region
        %s1407 = ssub.s32 1, %s20
        %s1408 = smul.u32 4, %s1407
        %p1409 = scmp.lt.s32.totalorder %s1408, 7
        %s1410 = scalar_select %p1409, %s1408, 7
        %s1411 = smul.addr %s1410, 4
        %s1412 = scalar_lea.vmem %s7, %s1411
      $region68: #{ct_forward.4} parent=59 // pred_fallthru
        _
    $region60: #{ct_forward.4} parent=5 // pred_fallthru
      _
  $region6: #{ct_forward.4} parent=0 // loop_footer
    %s18 = sadd.s32 1, %s14
  $region7: #{ct_forward.4} parent=0 // loop_footer_branch
    %13 = sbr.rel target = $region3
  $region8: #{ct_forward.4} parent=0 // loop_exit
    _

// kernel: ct_forward.6
$region0: #{ct_forward.6}
  #allocation0 [shape = 'u32[]', space=smem, size = 0x4, offset = 0x4, fixed_abs, tag = 'smem constant byte address 0x4 - core index']
  #allocation1 [shape = 'u32[144,128]{1,0:T(1,128)}', space=vmem, size = 0x12000, scoped, tag = 'internal scratch']
  #allocation2 [shape = 'f32[4,8,96]{2,1,0:T(8,128)}', space=vmem, size = 0x4000, scoped, tag = 'scratch operand']
  #allocation3 [shape = 'f32[4,8,96]{2,1,0:T(8,128)}', space=vmem, size = 0x4000, scoped, tag = 'scratch operand']
  #allocation4 [shape = 'f32[8,24]{1,0:T(8,128)}', space=vmem, size = 0x1000, scoped, tag = 'scratch operand']
  #allocation5 [shape = 'f32[8,24]{1,0:T(8,128)}', space=vmem, size = 0x1000, scoped, tag = 'scratch operand']
  #allocation6 [shape = 'f32[8,24]{1,0:T(8,128)}', space=vmem, size = 0x1000, scoped, tag = 'scratch operand']
  #allocation7 [shape = 'f32[8,24]{1,0:T(8,128)}', space=vmem, size = 0x1000, scoped, tag = 'scratch operand']
  %s0 = inlined_call_operand.vmem [shape: bf16[8,8,32], index: 0, kind: input, shape index: {}, may-alias: {0,1}]
  %s1 = inlined_call_operand.vmem [shape: bf16[8,8,32], index: 1, kind: input, shape index: {}, may-alias: {0,1}]
  %s2 = inlined_call_operand.vmem [shape: s32[8,1], index: 2, kind: input, shape index: {}]
  %s3 = inlined_call_operand.vmem [shape: bf16[2,32,96], index: 3, kind: input, shape index: {}]
  %s4 = inlined_call_operand.vmem [shape: f32[2,1,96], index: 4, kind: input, shape index: {}]
  %s5 = inlined_call_operand.vmem [shape: bf16[2,24,96], index: 5, kind: input, shape index: {}]
  %s6 = inlined_call_operand.vmem [shape: bf16[8,8,24], index: 6, kind: output, shape index: {0}]
  %s7 = inlined_call_operand.vmem [shape: bf16[8,8,24], index: 7, kind: output, shape index: {1}]
  %8 = xla_tuple %s6, %s7
  %s9 = sld [smem:[#allocation0]]
  $region69: #{ct_forward.6} parent=0
    _
  %s11 = ssub.s32 1, %s9
  %s12 = scalar_select 0, %s11, %s9
  loop: start=0, step=1, limit=4
  $region2: #{ct_forward.6} parent=0 // loop_pre_header
    _
  $region3: #{ct_forward.6} parent=0 // loop_header
    %s14 = sphi 0, %s18
    %p15 = scmp.ge.s32.totalorder %s14, 4
    %s24 = sphi 0, %s26
    %s27 = sphi 0, %s24
    %s28 = sphi 0, %s27
    %s44 = sphi 0, %s28
    %s52 = sphi 0, %s54
    %s55 = sphi 0, %s52
    %s56 = sphi 0, %s55
    %s72 = sphi 0, %s56
    %s76 = sphi 0, %s76
    %s78 = sphi 0, %s76
    %s79 = sphi 0, %s78
    %s93 = sphi 0, %s79
    %s97 = sphi 0, %s97
    %s99 = sphi 0, %s97
    %s100 = sphi 0, %s99
    %s114 = sphi 0, %s100
    %s118 = sphi 0, %s118
    %s120 = sphi 0, %s118
    %s121 = sphi 0, %s120
    %s135 = sphi 0, %s121
    %s139 = sphi 0, %s139
    %s141 = sphi 0, %s139
    %s142 = sphi 0, %s141
    %s156 = sphi 0, %s142
    %s162 = sphi 0, %s164
    %s165 = sphi 0, %s162
    %s166 = sphi 0, %s165
    %s182 = sphi 0, %s166
    %s190 = sphi 0, %s192
    %s193 = sphi 0, %s190
    %s194 = sphi 0, %s193
    %s210 = sphi 0, %s194
  $region4: #{ct_forward.6} parent=0 // loop_header_branch
    %17 = sbr.rel (%p15) target = $region8
  $region5: #{ct_forward.6} parent=0 // loop_body
    %s19 = ssub.s32 %s14, 1
    %s20 = ssub.s32 %s14, 2
    %s21 = sadd.s32 %s14, 1
    %s22 = ssub.s32 %s14, %s21
    %p23 = scmp.eq.s32.totalorder %s22, 0
    %s25 = sadd.s32 %s24, 1
    %s26 = scalar_select %p23, %s24, %s25
    %p29 = pneg %p23
    %p30 = scmp.eq.s32.totalorder %s14, 1
    %p31 = por %p29, %p30
    %p32 = scmp.ne.s32.totalorder %s24, %s27
    %p33 = scmp.eq.s32.totalorder %s14, 0
    %p34 = por %p32, %p33
    %p35 = scmp.ne.s32.totalorder %s24, %s27
    %p36 = scmp.eq.s32.totalorder %s19, 1
    %p37 = por %p35, %p36
    %p38 = scmp.ne.s32.totalorder %s27, %s28
    %p39 = scmp.eq.s32.totalorder %s19, 0
    %p40 = por %p38, %p39
    %p41 = scmp.ne.s32.totalorder %s27, %s28
    %p42 = scmp.eq.s32.totalorder %s20, 1
    %p43 = por %p41, %p42
    %p45 = scmp.ne.s32.totalorder %s28, %s44
    %p46 = scmp.eq.s32.totalorder %s20, 0
    %p47 = por %p45, %p46
    %s48 = ssub.s32 1, %s14
    %s49 = ssub.s32 1, %s21
    %s50 = ssub.s32 %s48, %s49
    %p51 = scmp.eq.s32.totalorder %s50, 0
    %s53 = sadd.s32 %s52, 1
    %s54 = scalar_select %p51, %s52, %s53
    %p57 = pneg %p51
    %p58 = scmp.eq.s32.totalorder %s14, 1
    %p59 = por %p57, %p58
    %p60 = scmp.ne.s32.totalorder %s52, %s55
    %p61 = scmp.eq.s32.totalorder %s14, 0
    %p62 = por %p60, %p61
    %p63 = scmp.ne.s32.totalorder %s52, %s55
    %p64 = scmp.eq.s32.totalorder %s19, 1
    %p65 = por %p63, %p64
    %p66 = scmp.ne.s32.totalorder %s55, %s56
    %p67 = scmp.eq.s32.totalorder %s19, 0
    %p68 = por %p66, %p67
    %p69 = scmp.ne.s32.totalorder %s55, %s56
    %p70 = scmp.eq.s32.totalorder %s20, 1
    %p71 = por %p69, %p70
    %p73 = scmp.ne.s32.totalorder %s56, %s72
    %p74 = scmp.eq.s32.totalorder %s20, 0
    %p75 = por %p73, %p74
    %s77 = sadd.s32 %s76, 1
    %p80 = scmp.eq.s32.totalorder %s14, 1
    %p81 = scmp.ne.s32.totalorder %s76, %s78
    %p82 = scmp.eq.s32.totalorder %s14, 0
    %p83 = por %p81, %p82
    %p84 = scmp.ne.s32.totalorder %s76, %s78
    %p85 = scmp.eq.s32.totalorder %s19, 1
    %p86 = por %p84, %p85
    %p87 = scmp.ne.s32.totalorder %s78, %s79
    %p88 = scmp.eq.s32.totalorder %s19, 0
    %p89 = por %p87, %p88
    %p90 = scmp.ne.s32.totalorder %s78, %s79
    %p91 = scmp.eq.s32.totalorder %s20, 1
    %p92 = por %p90, %p91
    %p94 = scmp.ne.s32.totalorder %s79, %s93
    %p95 = scmp.eq.s32.totalorder %s20, 0
    %p96 = por %p94, %p95
    %s98 = sadd.s32 %s97, 1
    %p101 = scmp.eq.s32.totalorder %s14, 1
    %p102 = scmp.ne.s32.totalorder %s97, %s99
    %p103 = scmp.eq.s32.totalorder %s14, 0
    %p104 = por %p102, %p103
    %p105 = scmp.ne.s32.totalorder %s97, %s99
    %p106 = scmp.eq.s32.totalorder %s19, 1
    %p107 = por %p105, %p106
    %p108 = scmp.ne.s32.totalorder %s99, %s100
    %p109 = scmp.eq.s32.totalorder %s19, 0
    %p110 = por %p108, %p109
    %p111 = scmp.ne.s32.totalorder %s99, %s100
    %p112 = scmp.eq.s32.totalorder %s20, 1
    %p113 = por %p111, %p112
    %p115 = scmp.ne.s32.totalorder %s100, %s114
    %p116 = scmp.eq.s32.totalorder %s20, 0
    %p117 = por %p115, %p116
    %s119 = sadd.s32 %s118, 1
    %p122 = scmp.eq.s32.totalorder %s14, 1
    %p123 = scmp.ne.s32.totalorder %s118, %s120
    %p124 = scmp.eq.s32.totalorder %s14, 0
    %p125 = por %p123, %p124
    %p126 = scmp.ne.s32.totalorder %s118, %s120
    %p127 = scmp.eq.s32.totalorder %s19, 1
    %p128 = por %p126, %p127
    %p129 = scmp.ne.s32.totalorder %s120, %s121
    %p130 = scmp.eq.s32.totalorder %s19, 0
    %p131 = por %p129, %p130
    %p132 = scmp.ne.s32.totalorder %s120, %s121
    %p133 = scmp.eq.s32.totalorder %s20, 1
    %p134 = por %p132, %p133
    %p136 = scmp.ne.s32.totalorder %s121, %s135
    %p137 = scmp.eq.s32.totalorder %s20, 0
    %p138 = por %p136, %p137
    %s140 = sadd.s32 %s139, 1
    %p143 = scmp.eq.s32.totalorder %s14, 1
    %p144 = scmp.ne.s32.totalorder %s139, %s141
    %p145 = scmp.eq.s32.totalorder %s14, 0
    %p146 = por %p144, %p145
    %p147 = scmp.ne.s32.totalorder %s139, %s141
    %p148 = scmp.eq.s32.totalorder %s19, 1
    %p149 = por %p147, %p148
    %p150 = scmp.ne.s32.totalorder %s141, %s142
    %p151 = scmp.eq.s32.totalorder %s19, 0
    %p152 = por %p150, %p151
    %p153 = scmp.ne.s32.totalorder %s141, %s142
    %p154 = scmp.eq.s32.totalorder %s20, 1
    %p155 = por %p153, %p154
    %p157 = scmp.ne.s32.totalorder %s142, %s156
    %p158 = scmp.eq.s32.totalorder %s20, 0
    %p159 = por %p157, %p158
    %s160 = ssub.s32 %s14, %s21
    %p161 = scmp.eq.s32.totalorder %s160, 0
    %s163 = sadd.s32 %s162, 1
    %s164 = scalar_select %p161, %s162, %s163
    %p167 = pneg %p161
    %p168 = scmp.eq.s32.totalorder %s14, 1
    %p169 = por %p167, %p168
    %p170 = scmp.ne.s32.totalorder %s162, %s165
    %p171 = scmp.eq.s32.totalorder %s14, 0
    %p172 = por %p170, %p171
    %p173 = scmp.ne.s32.totalorder %s162, %s165
    %p174 = scmp.eq.s32.totalorder %s19, 1
    %p175 = por %p173, %p174
    %p176 = scmp.ne.s32.totalorder %s165, %s166
    %p177 = scmp.eq.s32.totalorder %s19, 0
    %p178 = por %p176, %p177
    %p179 = scmp.ne.s32.totalorder %s165, %s166
    %p180 = scmp.eq.s32.totalorder %s20, 1
    %p181 = por %p179, %p180
    %p183 = scmp.ne.s32.totalorder %s166, %s182
    %p184 = scmp.eq.s32.totalorder %s20, 0
    %p185 = por %p183, %p184
    %s186 = ssub.s32 1, %s14
    %s187 = ssub.s32 1, %s21
    %s188 = ssub.s32 %s186, %s187
    %p189 = scmp.eq.s32.totalorder %s188, 0
    %s191 = sadd.s32 %s190, 1
    %s192 = scalar_select %p189, %s190, %s191
    %p195 = pneg %p189
    %p196 = scmp.eq.s32.totalorder %s14, 1
    %p197 = por %p195, %p196
    %p198 = scmp.ne.s32.totalorder %s190, %s193
    %p199 = scmp.eq.s32.totalorder %s14, 0
    %p200 = por %p198, %p199
    %p201 = scmp.ne.s32.totalorder %s190, %s193
    %p202 = scmp.eq.s32.totalorder %s19, 1
    %p203 = por %p201, %p202
    %p204 = scmp.ne.s32.totalorder %s193, %s194
    %p205 = scmp.eq.s32.totalorder %s19, 0
    %p206 = por %p204, %p205
    %p207 = scmp.ne.s32.totalorder %s193, %s194
    %p208 = scmp.eq.s32.totalorder %s20, 1
    %p209 = por %p207, %p208
    %p211 = scmp.ne.s32.totalorder %s194, %s210
    %p212 = scmp.eq.s32.totalorder %s20, 0
    %p213 = por %p211, %p212
    %p214 = scmp.le.s32.totalorder 1, %s14
    %p215 = scmp.lt.s32.totalorder %s14, 3
    %p216 = pnand %p214, %p215
    %p217 = pneg %p216
    // Predicated region
    $region9: #{ct_forward.6} parent=5 // pred_check
      _
    $region10: #{ct_forward.6} parent=5 // pred_check_branch
      %219 = sbr.rel (%p216) target = $region12
    $region11: #{ct_forward.6} parent=5 // pred_region
      %s220 = ssub.s32 %s14, 1
      // Predicated region
      $region13: #{ct_forward.6} parent=11 // pred_check
        %p221 = pneg %p89
      $region14: #{ct_forward.6} parent=11 // pred_check_branch
        %223 = sbr.rel (%p221) target = $region16
      $region15: #{ct_forward.6} parent=11 // pred_region
        _
      $region16: #{ct_forward.6} parent=11 // pred_fallthru
        _
      // Predicated region
      $region17: #{ct_forward.6} parent=11 // pred_check
        %p224 = pneg %p110
      $region18: #{ct_forward.6} parent=11 // pred_check_branch
        %226 = sbr.rel (%p224) target = $region20
      $region19: #{ct_forward.6} parent=11 // pred_region
        _
      $region20: #{ct_forward.6} parent=11 // pred_fallthru
        _
      // Predicated region
      $region21: #{ct_forward.6} parent=11 // pred_check
        %p227 = pneg %p131
      $region22: #{ct_forward.6} parent=11 // pred_check_branch
        %229 = sbr.rel (%p227) target = $region24
      $region23: #{ct_forward.6} parent=11 // pred_region
        _
      $region24: #{ct_forward.6} parent=11 // pred_fallthru
        _
      // Predicated region
      $region25: #{ct_forward.6} parent=11 // pred_check
        %p230 = pneg %p152
      $region26: #{ct_forward.6} parent=11 // pred_check_branch
        %232 = sbr.rel (%p230) target = $region28
      $region27: #{ct_forward.6} parent=11 // pred_region
        _
      $region28: #{ct_forward.6} parent=11 // pred_fallthru
        _
    $region12: #{ct_forward.6} parent=5 // pred_fallthru
      _
    %p233 = scmp.lt.s32.totalorder %s14, 2
    // Predicated region
    $region29: #{ct_forward.6} parent=5 // pred_check
      %p234 = pneg %p233
    $region30: #{ct_forward.6} parent=5 // pred_check_branch
      %236 = sbr.rel (%p234) target = $region32
    $region31: #{ct_forward.6} parent=5 // pred_region
      // Predicated region
      $region33: #{ct_forward.6} parent=31 // pred_check
        %p237 = pneg %p34
      $region34: #{ct_forward.6} parent=31 // pred_check_branch
        %239 = sbr.rel (%p237) target = $region36
      $region35: #{ct_forward.6} parent=31 // pred_region
        %s240 = smul.u32 4, %s14
        %p241 = scmp.lt.s32.totalorder %s240, 7
        %s242 = scalar_select %p241, %s240, 7
        %s243 = smul.addr %s242, 4
        %s244 = scalar_lea.vmem %s0, %s243
        %s245 = smul.u32 4, %s14
      $region36: #{ct_forward.6} parent=31 // pred_fallthru
        _
      // Predicated region
      $region37: #{ct_forward.6} parent=31 // pred_check
        %p246 = pneg %p62
      $region38: #{ct_forward.6} parent=31 // pred_check_branch
        %248 = sbr.rel (%p246) target = $region40
      $region39: #{ct_forward.6} parent=31 // pred_region
        %s249 = ssub.s32 1, %s14
        %s250 = smul.u32 4, %s249
        %p251 = scmp.lt.s32.totalorder %s250, 7
        %s252 = scalar_select %p251, %s250, 7
        %s253 = smul.addr %s252, 4
        %s254 = scalar_lea.vmem %s1, %s253
        %s255 = ssub.s32 1, %s14
        %s256 = smul.u32 4, %s255
      $region40: #{ct_forward.6} parent=31 // pred_fallthru
        _
    $region32: #{ct_forward.6} parent=5 // pred_fallthru
      _
    %p257 = scmp.le.s32.totalorder 1, %s14
    %p258 = scmp.lt.s32.totalorder %s14, 3
    %p259 = pnand %p257, %p258
    %p260 = pneg %p259
    // Predicated region
    $region41: #{ct_forward.6} parent=5 // pred_check
      _
    $region42: #{ct_forward.6} parent=5 // pred_check_branch
      %262 = sbr.rel (%p259) target = $region44
    $region43: #{ct_forward.6} parent=5 // pred_region
      %s263 = ssub.s32 %s14, 1
      %s264 = smul.u32 4, %s19
      %p265 = scmp.lt.s32.totalorder %s264, 7
      %s266 = scalar_select %p265, %s264, 7
      %s267 = smul.addr %s266, 4
      %s268 = scalar_lea.vmem %s0, %s267
      %p269 = pneg %p40
      %p270 = pneg %p37
      %s271 = ssub.s32 1, %s19
      %s272 = smul.u32 4, %s271
      %p273 = scmp.lt.s32.totalorder %s272, 7
      %s274 = scalar_select %p273, %s272, 7
      %s275 = smul.addr %s274, 4
      %s276 = scalar_lea.vmem %s1, %s275
      %p277 = pneg %p68
      %p278 = pneg %p65
      %p279 = pneg %p89
      %p280 = pneg %p86
      %p281 = pneg %p110
      %p282 = pneg %p107
      %p283 = pneg %p131
      %p284 = pneg %p128
      %p285 = pneg %p152
      %p286 = pneg %p149
      %p287 = pneg %p178
      %p288 = pneg %p175
      %s289 = smul.u32 4, %s19
      %p290 = scmp.lt.s32.totalorder %s289, 7
      %s291 = scalar_select %p290, %s289, 7
      %s292 = smul.addr %s291, 4
      %s293 = scalar_lea.vmem %s6, %s292
      %p294 = pneg %p206
      %p295 = pneg %p203
      %s296 = ssub.s32 1, %s19
      %s297 = smul.u32 4, %s296
      %p298 = scmp.lt.s32.totalorder %s297, 7
      %s299 = scalar_select %p298, %s297, 7
      %s300 = smul.addr %s299, 4
      %s301 = scalar_lea.vmem %s7, %s300
      %s302 = smul.u32 4, %s19
      %p303 = scmp.lt.s32.totalorder %s302, 7
      %s304 = scalar_select %p303, %s302, 7
      %s305 = smul.addr %s304, 4
      %s306 = scalar_lea.vmem %s0, %s305
      %s307 = smul.u32 4, %s19
      %s308 = ssub.s32 1, %s19
      %s309 = smul.u32 4, %s308
      %p310 = scmp.lt.s32.totalorder %s309, 7
      %s311 = scalar_select %p310, %s309, 7
      %s312 = smul.addr %s311, 4
      %s313 = scalar_lea.vmem %s1, %s312
      %s314 = ssub.s32 1, %s19
      %s315 = smul.u32 4, %s314
      %s316 = smul.u32 4, %s19
      %p317 = scmp.lt.s32.totalorder %s316, 7
      %s318 = scalar_select %p317, %s316, 7
      %s319 = smul.addr %s318, 4
      %s320 = scalar_lea.vmem %s6, %s319
      %s321 = smul.u32 4, %s19
      %s322 = ssub.s32 1, %s19
      %s323 = smul.u32 4, %s322
      %p324 = scmp.lt.s32.totalorder %s323, 7
      %s325 = scalar_select %p324, %s323, 7
      %s326 = smul.addr %s325, 4
      %s327 = scalar_lea.vmem %s7, %s326
      %s328 = ssub.s32 1, %s19
      %s329 = smul.u32 4, %s328
      %p332 = scmp.eq.s32.totalorder %s19, 0
      // Predicated region
      $region45: #{ct_forward.6} parent=43 // pred_check
        %p333 = pneg %p332
      $region46: #{ct_forward.6} parent=43 // pred_check_branch
        %335 = sbr.rel (%p333) target = $region48
      $region47: #{ct_forward.6} parent=43 // pred_region
        %vm336 = vcmask 195584
        %337 = vst.msk [vmem:[#allocation4] sm:$0xff] %vm336, 0.0
        %338 = vst.msk [vmem:[#allocation5] sm:$0xff] %vm336, 0.0
        %339 = vst.msk [vmem:[#allocation6] sm:$0xff] %vm336, 0.0
        %340 = vst.msk [vmem:[#allocation7] sm:$0xff] %vm336, 0.0
      $region48: #{ct_forward.6} parent=43 // pred_fallthru
        _
      %v341 = vld [vmem:[%s306] sm:$0xf]
      %v342 = vld [vmem:[%s306 + $0x4] sm:$0xf]
      %v343 = vld [vmem:[%s306 + $0x8] sm:$0xf]
      %v344 = vld [vmem:[%s306 + $0xc] sm:$0xf]
      %v345 = vld [vmem:[%s313] sm:$0xf]
      %v346 = vld [vmem:[%s313 + $0x4] sm:$0xf]
      %v347 = vld [vmem:[%s313 + $0x8] sm:$0xf]
      %v348 = vld [vmem:[%s313 + $0xc] sm:$0xf]
      %v349 = vld [vmem:[%s3] sm:$0xf]
      %v350 = vld [vmem:[%s3 + $0x4] sm:$0xf]
      %v351 = vld [vmem:[%s3 + $0x8] sm:$0xf]
      %v352 = vld [vmem:[%s3 + $0xc] sm:$0xf]
      %v353 = vld [vmem:[%s4] sm:$0x1]
      %v355 = vlaneseq
      %v356 = vshrl.u32 %v355, 7
      %v357 = vsub.s32 0, %v356
      %v358 = vrot.slane %v353, %v357
      %v364 = vunpack.c.l.b16 %v341
      %v365 = vunpack.c.l.b16 %v342
      %v366 = vunpack.c.l.b16 %v343
      %v367 = vunpack.c.l.b16 %v344
      %v368 = vpack.c.b16 %v365, %v364
      %v369 = vpack.c.b16 %v367, %v366
      %v374 = vunpack.c.l.b16 %v349
      %v375 = vunpack.c.l.b16 %v350
      %v376 = vunpack.c.l.b16 %v351
      %v377 = vunpack.c.l.b16 %v352
      %v378 = vpack.c.b16 %v375, %v374
      %v379 = vpack.c.b16 %v377, %v376
      %vm382 = vcmask 261120
      %v384 = vsel %vm382, %v368, 0
      %v387 = vsel %vm382, %v369, 0
      %389 = vmatprep.subr.bf16.mxu0 0
      %390 = vmatpush1.bf16.msra.mxu0 0
      %391 = vmatprep.subr.bf16.mxu0 0
      %392 = vmatpush1.bf16.msra.mxu0 0
      %393 = vmatprep.subr.bf16.mxu0 0
      %394 = vmatpush1.bf16.msra.mxu0 0
      %395 = vmatprep.subr.bf16.mxu0 0
      %396 = vmatpush1.bf16.msra.mxu0 0
      %397 = vmatprep.subr.bf16.mxu0 0
      %398 = vmatpush1.bf16.msra.mxu0 0
      %399 = vmatprep.subr.bf16.mxu0 0
      %400 = vmatpush1.bf16.msra.mxu0 0
      %401 = vmatprep.subr.bf16.mxu0 0
      %402 = vmatpush1.bf16.msra.mxu0 %v379
      %403 = vmatprep.subr.bf16.mxu0 0
      %404 = vmatpush1.bf16.msra.mxu0 %v378
      %405 = vmatprep.subr.bf16.mxu0 0
      %406 = vmatpush2.bf16.msra.mxu0 0
      %407 = vmatprep.subr.bf16.mxu0 0
      %408 = vmatpush2.bf16.msra.mxu0 0
      %409 = vmatprep.subr.bf16.mxu0 0
      %410 = vmatpush2.bf16.msra.mxu0 0
      %411 = vmatprep.subr.bf16.mxu0 0
      %412 = vmatpush2.bf16.msra.mxu0 0
      %413 = vmatprep.subr.bf16.mxu0 0
      %414 = vmatpush2.bf16.msra.mxu0 0
      %415 = vmatprep.subr.bf16.mxu0 0
      %416 = vmatpush2.bf16.msra.mxu0 0
      %417 = vmatprep.subr.bf16.mxu0 0
      %418 = vmatpush2.bf16.msra.mxu0 0
      %419 = vmatprep.subr.bf16.mxu0 0
      %420 = vmatpush2.bf16.msra.mxu0 0
      %421 = vmatprep.mubr.bf16.mxu0 0
      %422 = vmatmul.mubr.bf16.gmra.mxu0 %v384
      %v423 = vpop.f32.mrf.mxu0
      %v424 = vadd.f32 %v358, %v423
      %v425 = vpop.f32.mrf.mxu0
      %v426 = vpop.f32.mrf.mxu0
      %v427 = vadd.f32 %v358, %v426
      %v428 = vpop.f32.mrf.mxu0
      %429 = vmatprep.mubr.bf16.mxu0 0
      %430 = vmatmul.mubr.bf16.gmra.mxu0 %v387
      %v431 = vpop.f32.mrf.mxu0
      %v432 = vadd.f32 %v358, %v431
      %v433 = vpop.f32.mrf.mxu0
      %v434 = vpop.f32.mrf.mxu0
      %v435 = vadd.f32 %v358, %v434
      %v436 = vpop.f32.mrf.mxu0
      %437 = vdwg.mxu0
      %vm438 = vcmask 785408
      %439 = vst.msk [vmem:[#allocation2] sm:$0xff] %vm438, %v424
      %440 = vst.msk [vmem:[#allocation2 + $0x8] sm:$0xff] %vm438, %v427
      %441 = vst.msk [vmem:[#allocation2 + $0x10] sm:$0xff] %vm438, %v432
      %442 = vst.msk [vmem:[#allocation2 + $0x18] sm:$0xff] %vm438, %v435
      %s443 = scalar_lea.vmem %s3, 16
      %v444 = vld [vmem:[%s443] sm:$0xf]
      %v445 = vld [vmem:[%s443 + $0x4] sm:$0xf]
      %v446 = vld [vmem:[%s443 + $0x8] sm:$0xf]
      %v447 = vld [vmem:[%s443 + $0xc] sm:$0xf]
      %s448 = scalar_lea.vmem %s4, 1
      %v449 = vld [vmem:[%s448] sm:$0x1]
      %v451 = vlaneseq
      %v452 = vshrl.u32 %v451, 7
      %v453 = vsub.s32 0, %v452
      %v454 = vrot.slane %v449, %v453
      %v460 = vunpack.c.l.b16 %v345
      %v461 = vunpack.c.l.b16 %v346
      %v462 = vunpack.c.l.b16 %v347
      %v463 = vunpack.c.l.b16 %v348
      %v464 = vpack.c.b16 %v461, %v460
      %v465 = vpack.c.b16 %v463, %v462
      %v470 = vunpack.c.l.b16 %v444
      %v471 = vunpack.c.l.b16 %v445
      %v472 = vunpack.c.l.b16 %v446
      %v473 = vunpack.c.l.b16 %v447
      %v474 = vpack.c.b16 %v471, %v470
      %v475 = vpack.c.b16 %v473, %v472
      %v479 = vsel %vm382, %v464, 0
      %v482 = vsel %vm382, %v465, 0
      %484 = vmatprep.subr.bf16.mxu0 0
      %485 = vmatpush1.bf16.msra.mxu0 0
      %486 = vmatprep.subr.bf16.mxu0 0
      %487 = vmatpush1.bf16.msra.mxu0 0
      %488 = vmatprep.subr.bf16.mxu0 0
      %489 = vmatpush1.bf16.msra.mxu0 0
      %490 = vmatprep.subr.bf16.mxu0 0
      %491 = vmatpush1.bf16.msra.mxu0 0
      %492 = vmatprep.subr.bf16.mxu0 0
      %493 = vmatpush1.bf16.msra.mxu0 0
      %494 = vmatprep.subr.bf16.mxu0 0
      %495 = vmatpush1.bf16.msra.mxu0 0
      %496 = vmatprep.subr.bf16.mxu0 0
      %497 = vmatpush1.bf16.msra.mxu0 %v475
      %498 = vmatprep.subr.bf16.mxu0 0
      %499 = vmatpush1.bf16.msra.mxu0 %v474
      %500 = vmatprep.subr.bf16.mxu0 0
      %501 = vmatpush2.bf16.msra.mxu0 0
      %502 = vmatprep.subr.bf16.mxu0 0
      %503 = vmatpush2.bf16.msra.mxu0 0
      %504 = vmatprep.subr.bf16.mxu0 0
      %505 = vmatpush2.bf16.msra.mxu0 0
      %506 = vmatprep.subr.bf16.mxu0 0
      %507 = vmatpush2.bf16.msra.mxu0 0
      %508 = vmatprep.subr.bf16.mxu0 0
      %509 = vmatpush2.bf16.msra.mxu0 0
      %510 = vmatprep.subr.bf16.mxu0 0
      %511 = vmatpush2.bf16.msra.mxu0 0
      %512 = vmatprep.subr.bf16.mxu0 0
      %513 = vmatpush2.bf16.msra.mxu0 0
      %514 = vmatprep.subr.bf16.mxu0 0
      %515 = vmatpush2.bf16.msra.mxu0 0
      %516 = vmatprep.mubr.bf16.mxu0 0
      %517 = vmatmul.mubr.bf16.gmra.mxu0 %v479
      %v518 = vpop.f32.mrf.mxu0
      %v519 = vadd.f32 %v454, %v518
      %v520 = vpop.f32.mrf.mxu0
      %v521 = vpop.f32.mrf.mxu0
      %v522 = vadd.f32 %v454, %v521
      %v523 = vpop.f32.mrf.mxu0
      %524 = vmatprep.mubr.bf16.mxu0 0
      %525 = vmatmul.mubr.bf16.gmra.mxu0 %v482
      %v526 = vpop.f32.mrf.mxu0
      %v527 = vadd.f32 %v454, %v526
      %v528 = vpop.f32.mrf.mxu0
      %v529 = vpop.f32.mrf.mxu0
      %v530 = vadd.f32 %v454, %v529
      %v531 = vpop.f32.mrf.mxu0
      %532 = vdwg.mxu0
      %533 = vst.msk [vmem:[#allocation3] sm:$0xff] %vm438, %v519
      %534 = vst.msk [vmem:[#allocation3 + $0x8] sm:$0xff] %vm438, %v522
      %535 = vst.msk [vmem:[#allocation3 + $0x10] sm:$0xff] %vm438, %v527
      %536 = vst.msk [vmem:[#allocation3 + $0x18] sm:$0xff] %vm438, %v530
      %v537 = vld [vmem:[%s5] sm:$0xf]
      %v538 = vld [vmem:[%s5 + $0x4] sm:$0xf]
      %v539 = vld [vmem:[%s5 + $0x8] sm:$0xf]
      %s540 = scalar_lea.vmem %s5, 12
      %v541 = vld [vmem:[%s540] sm:$0xf]
      %v542 = vld [vmem:[%s540 + $0x4] sm:$0xf]
      %v543 = vld [vmem:[%s540 + $0x8] sm:$0xf]
      %v544 = vld [vmem:[%s2] sm:$0xff]
      %s545 = smul.u32 %s19, 4
      %s546 = ssub.s32 1, %s19
      %s547 = smul.u32 %s546, 4
      %v548 = vld [vmem:[#allocation4] sm:$0xff]
      %v549 = vld [vmem:[#allocation5] sm:$0xff]
      %v550 = vld [vmem:[#allocation6] sm:$0xff]
      %v551 = vld [vmem:[#allocation7] sm:$0xff]
      %v552 = vstv %s545
      %vm553 = vcmp.lt.s32.totalorder %v552, %v544
      %s554 = sadd.s32 %s547, 3
      %v555 = vstv %s554
      %vm556 = vcmp.lt.s32.totalorder %v555, %v544
      %v557 = vld [vmem:[#allocation2] sm:$0xff]
      %v558 = vpack.c.bf16 %v548, %v548
      %v562 = vunpack.c.l.b16 %v537
      %v563 = vunpack.c.l.b16 %v538
      %v564 = vunpack.c.l.b16 %v539
      %v565 = vpack.c.b16 %v563, %v562
      %v566 = vpack.c.b16 %v564, %v564
      %vm568 = vcmask 195584
      %v570 = vsel %vm568, %v558, 0
      %vm572 = vcmask 1043456
      %v574 = vsel %vm572, %v566, 0
      %576 = vmatprep.subr.bf16.mxu0 0
      %577 = vmatpush1.bf16.msra.mxu0 0
      %578 = vmatprep.subr.bf16.mxu0 0
      %579 = vmatpush1.bf16.msra.mxu0 0
      %580 = vmatprep.subr.bf16.mxu0 0
      %581 = vmatpush1.bf16.msra.mxu0 0
      %582 = vmatprep.subr.bf16.mxu0 0
      %583 = vmatpush1.bf16.msra.mxu0 0
      %584 = vmatprep.subr.bf16.mxu0 0
      %585 = vmatpush1.bf16.msra.mxu0 0
      %586 = vmatprep.subr.bf16.mxu0 0
      %587 = vmatpush1.bf16.msra.mxu0 0
      %588 = vmatprep.subr.bf16.mxu0 0
      %589 = vmatpush1.bf16.msra.mxu0 %v574
      %590 = vmatprep.subr.bf16.mxu0 0
      %591 = vmatpush1.bf16.msra.mxu0 %v565
      %592 = vmatprep.subr.bf16.mxu0 0
      %593 = vmatpush2.bf16.msra.mxu0 0
      %594 = vmatprep.subr.bf16.mxu0 0
      %595 = vmatpush2.bf16.msra.mxu0 0
      %596 = vmatprep.subr.bf16.mxu0 0
      %597 = vmatpush2.bf16.msra.mxu0 0
      %598 = vmatprep.subr.bf16.mxu0 0
      %599 = vmatpush2.bf16.msra.mxu0 0
      %600 = vmatprep.subr.bf16.mxu0 0
      %601 = vmatpush2.bf16.msra.mxu0 0
      %602 = vmatprep.subr.bf16.mxu0 0
      %603 = vmatpush2.bf16.msra.mxu0 0
      %604 = vmatprep.subr.bf16.mxu0 0
      %605 = vmatpush2.bf16.msra.mxu0 0
      %606 = vmatprep.subr.bf16.mxu0 0
      %607 = vmatpush2.bf16.msra.mxu0 0
      %608 = vmatprep.mubr.bf16.mxu0 0
      %609 = vmatmul.mubr.bf16.gmra.mxu0 %v570
      %v610 = vpop.f32.mrf.mxu0
      %v611 = vadd.f32 0.0, %v610
      %v612 = vpop.f32.mrf.mxu0
      %v613 = vpop.f32.mrf.mxu0
      %v614 = vpop.f32.mrf.mxu0
      %615 = vdwg.mxu0
      %v616 = vadd.f32 %v557, %v611
      %v617 = vpack.c.bf16 %v616, %v616
      %v618 = vxor.u32 %v617, 2147516416
      %v620 = vmul.bf16 %v618, 1069105081
      %v621 = vpow.bf16.pop %v620
      %v622 = vadd.bf16 %v621, 1065369472
      %v623 = vrcp.bf16.pop %v622
      %v624 = vmul.bf16 1065369472, %v623
      %v625 = vunpack.c.l.bf16 %v624
      %v626 = vtanh.bf16.pop %v617
      %v627 = vunpack.c.l.bf16 %v626
      %629 = vrot.lane.b32.xlu0 %v549, 24
      %v630 = vpop.permute.xlu0 %629
      %v632 = vmul.f32 %v625, %v630
      %634 = vrot.lane.b32.xlu0 %v627, 80
      %v635 = vpop.permute.xlu0 %634
      %v637 = vmul.f32 %v625, %v635
      %639 = vrot.lane.b32.xlu0 %v637, 24
      %v640 = vpop.permute.xlu0 %639
      %v642 = vadd.f32 %v632, %v640
      %v643 = vpack.c.bf16 %v642, %v642
      %v644 = vtanh.bf16.pop %v643
      %v645 = vunpack.c.l.bf16 %v644
      %647 = vrot.lane.b32.xlu0 %v645, 48
      %v648 = vpop.permute.xlu0 %647
      %v650 = vmul.f32 %v625, %v648
      %s651 = scalar_lea.vmem [#allocation3], 24
      %v652 = vld [vmem:[%s651] sm:$0xff]
      %v653 = vpack.c.bf16 %v550, %v550
      %v657 = vunpack.c.l.b16 %v541
      %v658 = vunpack.c.l.b16 %v542
      %v659 = vunpack.c.l.b16 %v543
      %v660 = vpack.c.b16 %v658, %v657
      %v661 = vpack.c.b16 %v659, %v659
      %v664 = vsel %vm568, %v653, 0
      %v667 = vsel %vm572, %v661, 0
      %669 = vmatprep.subr.bf16.mxu0 0
      %670 = vmatpush1.bf16.msra.mxu0 0
      %671 = vmatprep.subr.bf16.mxu0 0
      %672 = vmatpush1.bf16.msra.mxu0 0
      %673 = vmatprep.subr.bf16.mxu0 0
      %674 = vmatpush1.bf16.msra.mxu0 0
      %675 = vmatprep.subr.bf16.mxu0 0
      %676 = vmatpush1.bf16.msra.mxu0 0
      %677 = vmatprep.subr.bf16.mxu0 0
      %678 = vmatpush1.bf16.msra.mxu0 0
      %679 = vmatprep.subr.bf16.mxu0 0
      %680 = vmatpush1.bf16.msra.mxu0 0
      %681 = vmatprep.subr.bf16.mxu0 0
      %682 = vmatpush1.bf16.msra.mxu0 %v667
      %683 = vmatprep.subr.bf16.mxu0 0
      %684 = vmatpush1.bf16.msra.mxu0 %v660
      %685 = vmatprep.subr.bf16.mxu0 0
      %686 = vmatpush2.bf16.msra.mxu0 0
      %687 = vmatprep.subr.bf16.mxu0 0
      %688 = vmatpush2.bf16.msra.mxu0 0
      %689 = vmatprep.subr.bf16.mxu0 0
      %690 = vmatpush2.bf16.msra.mxu0 0
      %691 = vmatprep.subr.bf16.mxu0 0
      %692 = vmatpush2.bf16.msra.mxu0 0
      %693 = vmatprep.subr.bf16.mxu0 0
      %694 = vmatpush2.bf16.msra.mxu0 0
      %695 = vmatprep.subr.bf16.mxu0 0
      %696 = vmatpush2.bf16.msra.mxu0 0
      %697 = vmatprep.subr.bf16.mxu0 0
      %698 = vmatpush2.bf16.msra.mxu0 0
      %699 = vmatprep.subr.bf16.mxu0 0
      %700 = vmatpush2.bf16.msra.mxu0 0
      %701 = vmatprep.mubr.bf16.mxu0 0
      %702 = vmatmul.mubr.bf16.gmra.mxu0 %v664
      %v703 = vpop.f32.mrf.mxu0
      %v704 = vadd.f32 0.0, %v703
      %v705 = vpop.f32.mrf.mxu0
      %v706 = vpop.f32.mrf.mxu0
      %v707 = vpop.f32.mrf.mxu0
      %708 = vdwg.mxu0
      %v709 = vadd.f32 %v652, %v704
      %v710 = vpack.c.bf16 %v709, %v709
      %v711 = vxor.u32 %v710, 2147516416
      %v713 = vmul.bf16 %v711, 1069105081
      %v714 = vpow.bf16.pop %v713
      %v715 = vadd.bf16 %v714, 1065369472
      %v716 = vrcp.bf16.pop %v715
      %v717 = vmul.bf16 1065369472, %v716
      %v718 = vunpack.c.l.bf16 %v717
      %v719 = vtanh.bf16.pop %v710
      %v720 = vunpack.c.l.bf16 %v719
      %722 = vrot.lane.b32.xlu0 %v551, 24
      %v723 = vpop.permute.xlu0 %722
      %v725 = vmul.f32 %v718, %v723
      %727 = vrot.lane.b32.xlu0 %v720, 80
      %v728 = vpop.permute.xlu0 %727
      %v730 = vmul.f32 %v718, %v728
      %732 = vrot.lane.b32.xlu0 %v730, 24
      %v733 = vpop.permute.xlu0 %732
      %v735 = vadd.f32 %v725, %v733
      %v736 = vpack.c.bf16 %v735, %v735
      %v737 = vtanh.bf16.pop %v736
      %v738 = vunpack.c.l.bf16 %v737
      %740 = vrot.lane.b32.xlu0 %v738, 48
      %v741 = vpop.permute.xlu0 %740
      %v743 = vmul.f32 %v718, %v741
      %v744 = vsel %vm553, 1, 0
      %745 = vset.pattern.permute.xlu0 0
      %746 = vperm.xlu0 %745, %v744
      %v747 = vpop.permute.xlu0 %746
      %vm748 = vcmp.eq.s32.totalorder %v747, 1
      %750 = vrot.lane.b32.xlu0 %v548, 72
      %v751 = vpop.permute.xlu0 %750
      %v753 = vsel %vm748, %v650, %v751
      %v754 = vsel %vm748, %v642, %v630
      %v755 = vsel %vm556, 1, 0
      %756 = vset.pattern.permute.xlu0 0
      %757 = vperm.xlu0 %756, %v755
      %v758 = vpop.permute.xlu0 %757
      %vm759 = vcmp.eq.s32.totalorder %v758, 1
      %761 = vrot.lane.b32.xlu0 %v550, 72
      %v762 = vpop.permute.xlu0 %761
      %v764 = vsel %vm759, %v743, %v762
      %v765 = vsel %vm759, %v735, %v723
      %v766 = vsel %vm748, %v650, 0.0
      %v767 = vpack.c.bf16 %v766, %v766
      %v769 = vunpack.c.l.b16 %v767
      %v770 = vpack.c.b16 %v769, %v769
      %771 = vrot.lane.b32.xlu0 %v770, 56
      %v772 = vpop.permute.xlu0 %771
      %vm774 = vcmask 191488
      %775 = vst.msk [vmem:[%s320] sm:$0xf] %vm774, %v772
      %v776 = vsel %vm759, %v743, 0.0
      %v777 = vpack.c.bf16 %v776, %v776
      %v779 = vunpack.c.l.b16 %v777
      %v780 = vpack.c.b16 %v779, %v779
      %781 = vrot.lane.b32.xlu0 %v780, 56
      %v782 = vpop.permute.xlu0 %781
      %s784 = scalar_lea.vmem %s327, 12
      %785 = vst.msk [vmem:[%s784] sm:$0xf] %vm774, %v782
      %s786 = sadd.s32 %s545, 1
      %v787 = vstv %s786
      %vm788 = vcmp.lt.s32.totalorder %v787, %v544
      %s789 = sadd.s32 %s547, 2
      %v790 = vstv %s789
      %vm791 = vcmp.lt.s32.totalorder %v790, %v544
      %s792 = scalar_lea.vmem [#allocation2], 8
      %v793 = vld [vmem:[%s792] sm:$0xff]
      %v794 = vpack.c.bf16 %v753, %v753
      %796 = vrot.lane.b32.xlu0 %v794, 56
      %v797 = vpop.permute.xlu0 %796
      %v799 = vsel %vm568, %v797, 0
      %801 = vmatprep.subr.bf16.mxu0 0
      %802 = vmatpush1.bf16.msra.mxu0 0
      %803 = vmatprep.subr.bf16.mxu0 0
      %804 = vmatpush1.bf16.msra.mxu0 0
      %805 = vmatprep.subr.bf16.mxu0 0
      %806 = vmatpush1.bf16.msra.mxu0 0
      %807 = vmatprep.subr.bf16.mxu0 0
      %808 = vmatpush1.bf16.msra.mxu0 0
      %809 = vmatprep.subr.bf16.mxu0 0
      %810 = vmatpush1.bf16.msra.mxu0 0
      %811 = vmatprep.subr.bf16.mxu0 0
      %812 = vmatpush1.bf16.msra.mxu0 0
      %813 = vmatprep.subr.bf16.mxu0 0
      %814 = vmatpush1.bf16.msra.mxu0 %v574
      %815 = vmatprep.subr.bf16.mxu0 0
      %816 = vmatpush1.bf16.msra.mxu0 %v565
      %817 = vmatprep.subr.bf16.mxu0 0
      %818 = vmatpush2.bf16.msra.mxu0 0
      %819 = vmatprep.subr.bf16.mxu0 0
      %820 = vmatpush2.bf16.msra.mxu0 0
      %821 = vmatprep.subr.bf16.mxu0 0
      %822 = vmatpush2.bf16.msra.mxu0 0
      %823 = vmatprep.subr.bf16.mxu0 0
      %824 = vmatpush2.bf16.msra.mxu0 0
      %825 = vmatprep.subr.bf16.mxu0 0
      %826 = vmatpush2.bf16.msra.mxu0 0
      %827 = vmatprep.subr.bf16.mxu0 0
      %828 = vmatpush2.bf16.msra.mxu0 0
      %829 = vmatprep.subr.bf16.mxu0 0
      %830 = vmatpush2.bf16.msra.mxu0 0
      %831 = vmatprep.subr.bf16.mxu0 0
      %832 = vmatpush2.bf16.msra.mxu0 0
      %833 = vmatprep.mubr.bf16.mxu0 0
      %834 = vmatmul.mubr.bf16.gmra.mxu0 %v799
      %v835 = vpop.f32.mrf.mxu0
      %v836 = vadd.f32 0.0, %v835
      %v837 = vpop.f32.mrf.mxu0
      %v838 = vpop.f32.mrf.mxu0
      %v839 = vpop.f32.mrf.mxu0
      %840 = vdwg.mxu0
      %v841 = vadd.f32 %v793, %v836
      %v842 = vpack.c.bf16 %v841, %v841
      %v843 = vxor.u32 %v842, 2147516416
      %v845 = vmul.bf16 %v843, 1069105081
      %v846 = vpow.bf16.pop %v845
      %v847 = vadd.bf16 %v846, 1065369472
      %v848 = vrcp.bf16.pop %v847
      %v849 = vmul.bf16 1065369472, %v848
      %v850 = vunpack.c.l.bf16 %v849
      %v851 = vtanh.bf16.pop %v842
      %v852 = vunpack.c.l.bf16 %v851
      %v853 = vmul.f32 %v850, %v754
      %855 = vrot.lane.b32.xlu0 %v852, 80
      %v856 = vpop.permute.xlu0 %855
      %v858 = vmul.f32 %v850, %v856
      %860 = vrot.lane.b32.xlu0 %v858, 24
      %v861 = vpop.permute.xlu0 %860
      %v863 = vadd.f32 %v853, %v861
      %v864 = vpack.c.bf16 %v863, %v863
      %v865 = vtanh.bf16.pop %v864
      %v866 = vunpack.c.l.bf16 %v865
      %868 = vrot.lane.b32.xlu0 %v866, 48
      %v869 = vpop.permute.xlu0 %868
      %v871 = vmul.f32 %v850, %v869
      %s872 = scalar_lea.vmem [#allocation3], 16
      %v873 = vld [vmem:[%s872] sm:$0xff]
      %v874 = vpack.c.bf16 %v764, %v764
      %876 = vrot.lane.b32.xlu0 %v874, 56
      %v877 = vpop.permute.xlu0 %876
      %v879 = vsel %vm568, %v877, 0
      %881 = vmatprep.subr.bf16.mxu0 0
      %882 = vmatpush1.bf16.msra.mxu0 0
      %883 = vmatprep.subr.bf16.mxu0 0
      %884 = vmatpush1.bf16.msra.mxu0 0
      %885 = vmatprep.subr.bf16.mxu0 0
      %886 = vmatpush1.bf16.msra.mxu0 0
      %887 = vmatprep.subr.bf16.mxu0 0
      %888 = vmatpush1.bf16.msra.mxu0 0
      %889 = vmatprep.subr.bf16.mxu0 0
      %890 = vmatpush1.bf16.msra.mxu0 0
      %891 = vmatprep.subr.bf16.mxu0 0
      %892 = vmatpush1.bf16.msra.mxu0 0
      %893 = vmatprep.subr.bf16.mxu0 0
      %894 = vmatpush1.bf16.msra.mxu0 %v667
      %895 = vmatprep.subr.bf16.mxu0 0
      %896 = vmatpush1.bf16.msra.mxu0 %v660
      %897 = vmatprep.subr.bf16.mxu0 0
      %898 = vmatpush2.bf16.msra.mxu0 0
      %899 = vmatprep.subr.bf16.mxu0 0
      %900 = vmatpush2.bf16.msra.mxu0 0
      %901 = vmatprep.subr.bf16.mxu0 0
      %902 = vmatpush2.bf16.msra.mxu0 0
      %903 = vmatprep.subr.bf16.mxu0 0
      %904 = vmatpush2.bf16.msra.mxu0 0
      %905 = vmatprep.subr.bf16.mxu0 0
      %906 = vmatpush2.bf16.msra.mxu0 0
      %907 = vmatprep.subr.bf16.mxu0 0
      %908 = vmatpush2.bf16.msra.mxu0 0
      %909 = vmatprep.subr.bf16.mxu0 0
      %910 = vmatpush2.bf16.msra.mxu0 0
      %911 = vmatprep.subr.bf16.mxu0 0
      %912 = vmatpush2.bf16.msra.mxu0 0
      %913 = vmatprep.mubr.bf16.mxu0 0
      %914 = vmatmul.mubr.bf16.gmra.mxu0 %v879
      %v915 = vpop.f32.mrf.mxu0
      %v916 = vadd.f32 0.0, %v915
      %v917 = vpop.f32.mrf.mxu0
      %v918 = vpop.f32.mrf.mxu0
      %v919 = vpop.f32.mrf.mxu0
      %920 = vdwg.mxu0
      %v921 = vadd.f32 %v873, %v916
      %v922 = vpack.c.bf16 %v921, %v921
      %v923 = vxor.u32 %v922, 2147516416
      %v925 = vmul.bf16 %v923, 1069105081
      %v926 = vpow.bf16.pop %v925
      %v927 = vadd.bf16 %v926, 1065369472
      %v928 = vrcp.bf16.pop %v927
      %v929 = vmul.bf16 1065369472, %v928
      %v930 = vunpack.c.l.bf16 %v929
      %v931 = vtanh.bf16.pop %v922
      %v932 = vunpack.c.l.bf16 %v931
      %v933 = vmul.f32 %v930, %v765
      %935 = vrot.lane.b32.xlu0 %v932, 80
      %v936 = vpop.permute.xlu0 %935
      %v938 = vmul.f32 %v930, %v936
      %940 = vrot.lane.b32.xlu0 %v938, 24
      %v941 = vpop.permute.xlu0 %940
      %v943 = vadd.f32 %v933, %v941
      %v944 = vpack.c.bf16 %v943, %v943
      %v945 = vtanh.bf16.pop %v944
      %v946 = vunpack.c.l.bf16 %v945
      %948 = vrot.lane.b32.xlu0 %v946, 48
      %v949 = vpop.permute.xlu0 %948
      %v951 = vmul.f32 %v930, %v949
      %v952 = vsel %vm788, 1, 0
      %953 = vset.pattern.permute.xlu0 0
      %954 = vperm.xlu0 %953, %v952
      %v955 = vpop.permute.xlu0 %954
      %vm956 = vcmp.eq.s32.totalorder %v955, 1
      %v957 = vsel %vm956, %v871, %v753
      %v958 = vsel %vm956, %v863, %v754
      %v959 = vsel %vm791, 1, 0
      %960 = vset.pattern.permute.xlu0 0
      %961 = vperm.xlu0 %960, %v959
      %v962 = vpop.permute.xlu0 %961
      %vm963 = vcmp.eq.s32.totalorder %v962, 1
      %v964 = vsel %vm963, %v951, %v764
      %v965 = vsel %vm963, %v943, %v765
      %v966 = vsel %vm956, %v871, 0.0
      %v967 = vpack.c.bf16 %v966, %v966
      %v969 = vunpack.c.l.b16 %v967
      %v970 = vpack.c.b16 %v969, %v969
      %971 = vrot.lane.b32.xlu0 %v970, 56
      %v972 = vpop.permute.xlu0 %971
      %s974 = scalar_lea.vmem %s320, 4
      %975 = vst.msk [vmem:[%s974] sm:$0xf] %vm774, %v972
      %v976 = vsel %vm963, %v951, 0.0
      %v977 = vpack.c.bf16 %v976, %v976
      %v979 = vunpack.c.l.b16 %v977
      %v980 = vpack.c.b16 %v979, %v979
      %981 = vrot.lane.b32.xlu0 %v980, 56
      %v982 = vpop.permute.xlu0 %981
      %s984 = scalar_lea.vmem %s327, 8
      %985 = vst.msk [vmem:[%s984] sm:$0xf] %vm774, %v982
      %s986 = sadd.s32 %s545, 2
      %v987 = vstv %s986
      %vm988 = vcmp.lt.s32.totalorder %v987, %v544
      %s989 = sadd.s32 %s547, 1
      %v990 = vstv %s989
      %vm991 = vcmp.lt.s32.totalorder %v990, %v544
      %s992 = scalar_lea.vmem [#allocation2], 16
      %v993 = vld [vmem:[%s992] sm:$0xff]
      %v994 = vpack.c.bf16 %v957, %v957
      %996 = vrot.lane.b32.xlu0 %v994, 56
      %v997 = vpop.permute.xlu0 %996
      %v999 = vsel %vm568, %v997, 0
      %1001 = vmatprep.subr.bf16.mxu0 0
      %1002 = vmatpush1.bf16.msra.mxu0 0
      %1003 = vmatprep.subr.bf16.mxu0 0
      %1004 = vmatpush1.bf16.msra.mxu0 0
      %1005 = vmatprep.subr.bf16.mxu0 0
      %1006 = vmatpush1.bf16.msra.mxu0 0
      %1007 = vmatprep.subr.bf16.mxu0 0
      %1008 = vmatpush1.bf16.msra.mxu0 0
      %1009 = vmatprep.subr.bf16.mxu0 0
      %1010 = vmatpush1.bf16.msra.mxu0 0
      %1011 = vmatprep.subr.bf16.mxu0 0
      %1012 = vmatpush1.bf16.msra.mxu0 0
      %1013 = vmatprep.subr.bf16.mxu0 0
      %1014 = vmatpush1.bf16.msra.mxu0 %v574
      %1015 = vmatprep.subr.bf16.mxu0 0
      %1016 = vmatpush1.bf16.msra.mxu0 %v565
      %1017 = vmatprep.subr.bf16.mxu0 0
      %1018 = vmatpush2.bf16.msra.mxu0 0
      %1019 = vmatprep.subr.bf16.mxu0 0
      %1020 = vmatpush2.bf16.msra.mxu0 0
      %1021 = vmatprep.subr.bf16.mxu0 0
      %1022 = vmatpush2.bf16.msra.mxu0 0
      %1023 = vmatprep.subr.bf16.mxu0 0
      %1024 = vmatpush2.bf16.msra.mxu0 0
      %1025 = vmatprep.subr.bf16.mxu0 0
      %1026 = vmatpush2.bf16.msra.mxu0 0
      %1027 = vmatprep.subr.bf16.mxu0 0
      %1028 = vmatpush2.bf16.msra.mxu0 0
      %1029 = vmatprep.subr.bf16.mxu0 0
      %1030 = vmatpush2.bf16.msra.mxu0 0
      %1031 = vmatprep.subr.bf16.mxu0 0
      %1032 = vmatpush2.bf16.msra.mxu0 0
      %1033 = vmatprep.mubr.bf16.mxu0 0
      %1034 = vmatmul.mubr.bf16.gmra.mxu0 %v999
      %v1035 = vpop.f32.mrf.mxu0
      %v1036 = vadd.f32 0.0, %v1035
      %v1037 = vpop.f32.mrf.mxu0
      %v1038 = vpop.f32.mrf.mxu0
      %v1039 = vpop.f32.mrf.mxu0
      %1040 = vdwg.mxu0
      %v1041 = vadd.f32 %v993, %v1036
      %v1042 = vpack.c.bf16 %v1041, %v1041
      %v1043 = vxor.u32 %v1042, 2147516416
      %v1045 = vmul.bf16 %v1043, 1069105081
      %v1046 = vpow.bf16.pop %v1045
      %v1047 = vadd.bf16 %v1046, 1065369472
      %v1048 = vrcp.bf16.pop %v1047
      %v1049 = vmul.bf16 1065369472, %v1048
      %v1050 = vunpack.c.l.bf16 %v1049
      %v1051 = vtanh.bf16.pop %v1042
      %v1052 = vunpack.c.l.bf16 %v1051
      %v1053 = vmul.f32 %v1050, %v958
      %1055 = vrot.lane.b32.xlu0 %v1052, 80
      %v1056 = vpop.permute.xlu0 %1055
      %v1058 = vmul.f32 %v1050, %v1056
      %1060 = vrot.lane.b32.xlu0 %v1058, 24
      %v1061 = vpop.permute.xlu0 %1060
      %v1063 = vadd.f32 %v1053, %v1061
      %v1064 = vpack.c.bf16 %v1063, %v1063
      %v1065 = vtanh.bf16.pop %v1064
      %v1066 = vunpack.c.l.bf16 %v1065
      %1068 = vrot.lane.b32.xlu0 %v1066, 48
      %v1069 = vpop.permute.xlu0 %1068
      %v1071 = vmul.f32 %v1050, %v1069
      %s1072 = scalar_lea.vmem [#allocation3], 8
      %v1073 = vld [vmem:[%s1072] sm:$0xff]
      %v1074 = vpack.c.bf16 %v964, %v964
      %1076 = vrot.lane.b32.xlu0 %v1074, 56
      %v1077 = vpop.permute.xlu0 %1076
      %v1079 = vsel %vm568, %v1077, 0
      %1081 = vmatprep.subr.bf16.mxu0 0
      %1082 = vmatpush1.bf16.msra.mxu0 0
      %1083 = vmatprep.subr.bf16.mxu0 0
      %1084 = vmatpush1.bf16.msra.mxu0 0
      %1085 = vmatprep.subr.bf16.mxu0 0
      %1086 = vmatpush1.bf16.msra.mxu0 0
      %1087 = vmatprep.subr.bf16.mxu0 0
      %1088 = vmatpush1.bf16.msra.mxu0 0
      %1089 = vmatprep.subr.bf16.mxu0 0
      %1090 = vmatpush1.bf16.msra.mxu0 0
      %1091 = vmatprep.subr.bf16.mxu0 0
      %1092 = vmatpush1.bf16.msra.mxu0 0
      %1093 = vmatprep.subr.bf16.mxu0 0
      %1094 = vmatpush1.bf16.msra.mxu0 %v667
      %1095 = vmatprep.subr.bf16.mxu0 0
      %1096 = vmatpush1.bf16.msra.mxu0 %v660
      %1097 = vmatprep.subr.bf16.mxu0 0
      %1098 = vmatpush2.bf16.msra.mxu0 0
      %1099 = vmatprep.subr.bf16.mxu0 0
      %1100 = vmatpush2.bf16.msra.mxu0 0
      %1101 = vmatprep.subr.bf16.mxu0 0
      %1102 = vmatpush2.bf16.msra.mxu0 0
      %1103 = vmatprep.subr.bf16.mxu0 0
      %1104 = vmatpush2.bf16.msra.mxu0 0
      %1105 = vmatprep.subr.bf16.mxu0 0
      %1106 = vmatpush2.bf16.msra.mxu0 0
      %1107 = vmatprep.subr.bf16.mxu0 0
      %1108 = vmatpush2.bf16.msra.mxu0 0
      %1109 = vmatprep.subr.bf16.mxu0 0
      %1110 = vmatpush2.bf16.msra.mxu0 0
      %1111 = vmatprep.subr.bf16.mxu0 0
      %1112 = vmatpush2.bf16.msra.mxu0 0
      %1113 = vmatprep.mubr.bf16.mxu0 0
      %1114 = vmatmul.mubr.bf16.gmra.mxu0 %v1079
      %v1115 = vpop.f32.mrf.mxu0
      %v1116 = vadd.f32 0.0, %v1115
      %v1117 = vpop.f32.mrf.mxu0
      %v1118 = vpop.f32.mrf.mxu0
      %v1119 = vpop.f32.mrf.mxu0
      %1120 = vdwg.mxu0
      %v1121 = vadd.f32 %v1073, %v1116
      %v1122 = vpack.c.bf16 %v1121, %v1121
      %v1123 = vxor.u32 %v1122, 2147516416
      %v1125 = vmul.bf16 %v1123, 1069105081
      %v1126 = vpow.bf16.pop %v1125
      %v1127 = vadd.bf16 %v1126, 1065369472
      %v1128 = vrcp.bf16.pop %v1127
      %v1129 = vmul.bf16 1065369472, %v1128
      %v1130 = vunpack.c.l.bf16 %v1129
      %v1131 = vtanh.bf16.pop %v1122
      %v1132 = vunpack.c.l.bf16 %v1131
      %v1133 = vmul.f32 %v1130, %v965
      %1135 = vrot.lane.b32.xlu0 %v1132, 80
      %v1136 = vpop.permute.xlu0 %1135
      %v1138 = vmul.f32 %v1130, %v1136
      %1140 = vrot.lane.b32.xlu0 %v1138, 24
      %v1141 = vpop.permute.xlu0 %1140
      %v1143 = vadd.f32 %v1133, %v1141
      %v1144 = vpack.c.bf16 %v1143, %v1143
      %v1145 = vtanh.bf16.pop %v1144
      %v1146 = vunpack.c.l.bf16 %v1145
      %1148 = vrot.lane.b32.xlu0 %v1146, 48
      %v1149 = vpop.permute.xlu0 %1148
      %v1151 = vmul.f32 %v1130, %v1149
      %v1152 = vsel %vm988, 1, 0
      %1153 = vset.pattern.permute.xlu0 0
      %1154 = vperm.xlu0 %1153, %v1152
      %v1155 = vpop.permute.xlu0 %1154
      %vm1156 = vcmp.eq.s32.totalorder %v1155, 1
      %v1157 = vsel %vm1156, %v1071, %v957
      %v1158 = vsel %vm1156, %v1063, %v958
      %v1159 = vsel %vm991, 1, 0
      %1160 = vset.pattern.permute.xlu0 0
      %1161 = vperm.xlu0 %1160, %v1159
      %v1162 = vpop.permute.xlu0 %1161
      %vm1163 = vcmp.eq.s32.totalorder %v1162, 1
      %v1164 = vsel %vm1163, %v1151, %v964
      %v1165 = vsel %vm1163, %v1143, %v965
      %v1166 = vsel %vm1156, %v1071, 0.0
      %v1167 = vpack.c.bf16 %v1166, %v1166
      %v1169 = vunpack.c.l.b16 %v1167
      %v1170 = vpack.c.b16 %v1169, %v1169
      %1171 = vrot.lane.b32.xlu0 %v1170, 56
      %v1172 = vpop.permute.xlu0 %1171
      %s1174 = scalar_lea.vmem %s320, 8
      %1175 = vst.msk [vmem:[%s1174] sm:$0xf] %vm774, %v1172
      %v1176 = vsel %vm1163, %v1151, 0.0
      %v1177 = vpack.c.bf16 %v1176, %v1176
      %v1179 = vunpack.c.l.b16 %v1177
      %v1180 = vpack.c.b16 %v1179, %v1179
      %1181 = vrot.lane.b32.xlu0 %v1180, 56
      %v1182 = vpop.permute.xlu0 %1181
      %s1184 = scalar_lea.vmem %s327, 4
      %1185 = vst.msk [vmem:[%s1184] sm:$0xf] %vm774, %v1182
      %s1186 = sadd.s32 %s545, 3
      %v1187 = vstv %s1186
      %vm1188 = vcmp.lt.s32.totalorder %v1187, %v544
      %v1189 = vstv %s547
      %vm1190 = vcmp.lt.s32.totalorder %v1189, %v544
      %s1191 = scalar_lea.vmem [#allocation2], 24
      %v1192 = vld [vmem:[%s1191] sm:$0xff]
      %v1193 = vpack.c.bf16 %v1157, %v1157
      %1195 = vrot.lane.b32.xlu0 %v1193, 56
      %v1196 = vpop.permute.xlu0 %1195
      %v1198 = vsel %vm568, %v1196, 0
      %1200 = vmatprep.subr.bf16.mxu0 0
      %1201 = vmatpush1.bf16.msra.mxu0 0
      %1202 = vmatprep.subr.bf16.mxu0 0
      %1203 = vmatpush1.bf16.msra.mxu0 0
      %1204 = vmatprep.subr.bf16.mxu0 0
      %1205 = vmatpush1.bf16.msra.mxu0 0
      %1206 = vmatprep.subr.bf16.mxu0 0
      %1207 = vmatpush1.bf16.msra.mxu0 0
      %1208 = vmatprep.subr.bf16.mxu0 0
      %1209 = vmatpush1.bf16.msra.mxu0 0
      %1210 = vmatprep.subr.bf16.mxu0 0
      %1211 = vmatpush1.bf16.msra.mxu0 0
      %1212 = vmatprep.subr.bf16.mxu0 0
      %1213 = vmatpush1.bf16.msra.mxu0 %v574
      %1214 = vmatprep.subr.bf16.mxu0 0
      %1215 = vmatpush1.bf16.msra.mxu0 %v565
      %1216 = vmatprep.subr.bf16.mxu0 0
      %1217 = vmatpush2.bf16.msra.mxu0 0
      %1218 = vmatprep.subr.bf16.mxu0 0
      %1219 = vmatpush2.bf16.msra.mxu0 0
      %1220 = vmatprep.subr.bf16.mxu0 0
      %1221 = vmatpush2.bf16.msra.mxu0 0
      %1222 = vmatprep.subr.bf16.mxu0 0
      %1223 = vmatpush2.bf16.msra.mxu0 0
      %1224 = vmatprep.subr.bf16.mxu0 0
      %1225 = vmatpush2.bf16.msra.mxu0 0
      %1226 = vmatprep.subr.bf16.mxu0 0
      %1227 = vmatpush2.bf16.msra.mxu0 0
      %1228 = vmatprep.subr.bf16.mxu0 0
      %1229 = vmatpush2.bf16.msra.mxu0 0
      %1230 = vmatprep.subr.bf16.mxu0 0
      %1231 = vmatpush2.bf16.msra.mxu0 0
      %1232 = vmatprep.mubr.bf16.mxu0 0
      %1233 = vmatmul.mubr.bf16.gmra.mxu0 %v1198
      %v1234 = vpop.f32.mrf.mxu0
      %v1235 = vadd.f32 0.0, %v1234
      %v1236 = vpop.f32.mrf.mxu0
      %v1237 = vpop.f32.mrf.mxu0
      %v1238 = vpop.f32.mrf.mxu0
      %1239 = vdwg.mxu0
      %v1240 = vadd.f32 %v1192, %v1235
      %v1241 = vpack.c.bf16 %v1240, %v1240
      %v1242 = vxor.u32 %v1241, 2147516416
      %v1244 = vmul.bf16 %v1242, 1069105081
      %v1245 = vpow.bf16.pop %v1244
      %v1246 = vadd.bf16 %v1245, 1065369472
      %v1247 = vrcp.bf16.pop %v1246
      %v1248 = vmul.bf16 1065369472, %v1247
      %v1249 = vunpack.c.l.bf16 %v1248
      %v1250 = vtanh.bf16.pop %v1241
      %v1251 = vunpack.c.l.bf16 %v1250
      %v1252 = vmul.f32 %v1249, %v1158
      %1254 = vrot.lane.b32.xlu0 %v1251, 80
      %v1255 = vpop.permute.xlu0 %1254
      %v1257 = vmul.f32 %v1249, %v1255
      %1259 = vrot.lane.b32.xlu0 %v1257, 24
      %v1260 = vpop.permute.xlu0 %1259
      %v1262 = vadd.f32 %v1252, %v1260
      %v1263 = vpack.c.bf16 %v1262, %v1262
      %v1264 = vtanh.bf16.pop %v1263
      %v1265 = vunpack.c.l.bf16 %v1264
      %1267 = vrot.lane.b32.xlu0 %v1265, 48
      %v1268 = vpop.permute.xlu0 %1267
      %v1270 = vmul.f32 %v1249, %v1268
      %v1271 = vld [vmem:[#allocation3] sm:$0xff]
      %v1272 = vpack.c.bf16 %v1164, %v1164
      %1274 = vrot.lane.b32.xlu0 %v1272, 56
      %v1275 = vpop.permute.xlu0 %1274
      %v1277 = vsel %vm568, %v1275, 0
      %1279 = vmatprep.subr.bf16.mxu0 0
      %1280 = vmatpush1.bf16.msra.mxu0 0
      %1281 = vmatprep.subr.bf16.mxu0 0
      %1282 = vmatpush1.bf16.msra.mxu0 0
      %1283 = vmatprep.subr.bf16.mxu0 0
      %1284 = vmatpush1.bf16.msra.mxu0 0
      %1285 = vmatprep.subr.bf16.mxu0 0
      %1286 = vmatpush1.bf16.msra.mxu0 0
      %1287 = vmatprep.subr.bf16.mxu0 0
      %1288 = vmatpush1.bf16.msra.mxu0 0
      %1289 = vmatprep.subr.bf16.mxu0 0
      %1290 = vmatpush1.bf16.msra.mxu0 0
      %1291 = vmatprep.subr.bf16.mxu0 0
      %1292 = vmatpush1.bf16.msra.mxu0 %v667
      %1293 = vmatprep.subr.bf16.mxu0 0
      %1294 = vmatpush1.bf16.msra.mxu0 %v660
      %1295 = vmatprep.subr.bf16.mxu0 0
      %1296 = vmatpush2.bf16.msra.mxu0 0
      %1297 = vmatprep.subr.bf16.mxu0 0
      %1298 = vmatpush2.bf16.msra.mxu0 0
      %1299 = vmatprep.subr.bf16.mxu0 0
      %1300 = vmatpush2.bf16.msra.mxu0 0
      %1301 = vmatprep.subr.bf16.mxu0 0
      %1302 = vmatpush2.bf16.msra.mxu0 0
      %1303 = vmatprep.subr.bf16.mxu0 0
      %1304 = vmatpush2.bf16.msra.mxu0 0
      %1305 = vmatprep.subr.bf16.mxu0 0
      %1306 = vmatpush2.bf16.msra.mxu0 0
      %1307 = vmatprep.subr.bf16.mxu0 0
      %1308 = vmatpush2.bf16.msra.mxu0 0
      %1309 = vmatprep.subr.bf16.mxu0 0
      %1310 = vmatpush2.bf16.msra.mxu0 0
      %1311 = vmatprep.mubr.bf16.mxu0 0
      %1312 = vmatmul.mubr.bf16.gmra.mxu0 %v1277
      %v1313 = vpop.f32.mrf.mxu0
      %v1314 = vadd.f32 0.0, %v1313
      %v1315 = vpop.f32.mrf.mxu0
      %v1316 = vpop.f32.mrf.mxu0
      %v1317 = vpop.f32.mrf.mxu0
      %1318 = vdwg.mxu0
      %v1319 = vadd.f32 %v1271, %v1314
      %v1320 = vpack.c.bf16 %v1319, %v1319
      %v1321 = vxor.u32 %v1320, 2147516416
      %v1323 = vmul.bf16 %v1321, 1069105081
      %v1324 = vpow.bf16.pop %v1323
      %v1325 = vadd.bf16 %v1324, 1065369472
      %v1326 = vrcp.bf16.pop %v1325
      %v1327 = vmul.bf16 1065369472, %v1326
      %v1328 = vunpack.c.l.bf16 %v1327
      %v1329 = vtanh.bf16.pop %v1320
      %v1330 = vunpack.c.l.bf16 %v1329
      %v1331 = vmul.f32 %v1328, %v1165
      %1333 = vrot.lane.b32.xlu0 %v1330, 80
      %v1334 = vpop.permute.xlu0 %1333
      %v1336 = vmul.f32 %v1328, %v1334
      %1338 = vrot.lane.b32.xlu0 %v1336, 24
      %v1339 = vpop.permute.xlu0 %1338
      %v1341 = vadd.f32 %v1331, %v1339
      %v1342 = vpack.c.bf16 %v1341, %v1341
      %v1343 = vtanh.bf16.pop %v1342
      %v1344 = vunpack.c.l.bf16 %v1343
      %1346 = vrot.lane.b32.xlu0 %v1344, 48
      %v1347 = vpop.permute.xlu0 %1346
      %v1349 = vmul.f32 %v1328, %v1347
      %v1350 = vsel %vm1188, 1, 0
      %1351 = vset.pattern.permute.xlu0 0
      %1352 = vperm.xlu0 %1351, %v1350
      %v1353 = vpop.permute.xlu0 %1352
      %vm1354 = vcmp.eq.s32.totalorder %v1353, 1
      %v1355 = vsel %vm1354, %v1270, %v1157
      %v1356 = vsel %vm1354, %v1262, %v1158
      %v1357 = vsel %vm1190, 1, 0
      %1358 = vset.pattern.permute.xlu0 0
      %1359 = vperm.xlu0 %1358, %v1357
      %v1360 = vpop.permute.xlu0 %1359
      %vm1361 = vcmp.eq.s32.totalorder %v1360, 1
      %v1362 = vsel %vm1361, %v1349, %v1164
      %v1363 = vsel %vm1361, %v1341, %v1165
      %v1364 = vsel %vm1354, %v1270, 0.0
      %v1365 = vpack.c.bf16 %v1364, %v1364
      %v1367 = vunpack.c.l.b16 %v1365
      %v1368 = vpack.c.b16 %v1367, %v1367
      %1369 = vrot.lane.b32.xlu0 %v1368, 56
      %v1370 = vpop.permute.xlu0 %1369
      %s1372 = scalar_lea.vmem %s320, 12
      %1373 = vst.msk [vmem:[%s1372] sm:$0xf] %vm774, %v1370
      %v1374 = vsel %vm1361, %v1349, 0.0
      %v1375 = vpack.c.bf16 %v1374, %v1374
      %v1377 = vunpack.c.l.b16 %v1375
      %v1378 = vpack.c.b16 %v1377, %v1377
      %1379 = vrot.lane.b32.xlu0 %v1378, 56
      %v1380 = vpop.permute.xlu0 %1379
      %1382 = vst.msk [vmem:[%s327] sm:$0xf] %vm774, %v1380
      %1384 = vrot.lane.b32.xlu0 %v1355, 56
      %v1385 = vpop.permute.xlu0 %1384
      %1387 = vst.msk [vmem:[#allocation4] sm:$0xff] %vm568, %v1385
      %1389 = vrot.lane.b32.xlu0 %v1356, 104
      %v1390 = vpop.permute.xlu0 %1389
      %1392 = vst.msk [vmem:[#allocation5] sm:$0xff] %vm568, %v1390
      %1394 = vrot.lane.b32.xlu0 %v1362, 56
      %v1395 = vpop.permute.xlu0 %1394
      %1397 = vst.msk [vmem:[#allocation6] sm:$0xff] %vm568, %v1395
      %1399 = vrot.lane.b32.xlu0 %v1363, 104
      %v1400 = vpop.permute.xlu0 %1399
      %1402 = vst.msk [vmem:[#allocation7] sm:$0xff] %vm568, %v1400
      %s1403 = smul.u32 4, %s19
      %p1404 = scmp.lt.s32.totalorder %s1403, 7
      %s1405 = scalar_select %p1404, %s1403, 7
      %s1406 = smul.addr %s1405, 4
      %s1407 = scalar_lea.vmem %s6, %s1406
      %s1408 = ssub.s32 1, %s19
      %s1409 = smul.u32 4, %s1408
      %p1410 = scmp.lt.s32.totalorder %s1409, 7
      %s1411 = scalar_select %p1410, %s1409, 7
      %s1412 = smul.addr %s1411, 4
      %s1413 = scalar_lea.vmem %s7, %s1412
      // Predicated region
      $region49: #{ct_forward.6} parent=43 // pred_check
        %p1414 = pneg %p175
      $region50: #{ct_forward.6} parent=43 // pred_check_branch
        %1416 = sbr.rel (%p1414) target = $region52
      $region51: #{ct_forward.6} parent=43 // pred_region
        %s1417 = smul.u32 4, %s19
      $region52: #{ct_forward.6} parent=43 // pred_fallthru
        _
      // Predicated region
      $region53: #{ct_forward.6} parent=43 // pred_check
        %p1418 = pneg %p203
      $region54: #{ct_forward.6} parent=43 // pred_check_branch
        %1420 = sbr.rel (%p1418) target = $region56
      $region55: #{ct_forward.6} parent=43 // pred_region
        %s1421 = ssub.s32 1, %s19
        %s1422 = smul.u32 4, %s1421
      $region56: #{ct_forward.6} parent=43 // pred_fallthru
        _
    $region44: #{ct_forward.6} parent=5 // pred_fallthru
      _
    %p1423 = scmp.le.s32.totalorder 2, %s14
    // Predicated region
    $region57: #{ct_forward.6} parent=5 // pred_check
      %p1424 = pneg %p1423
    $region58: #{ct_forward.6} parent=5 // pred_check_branch
      %1426 = sbr.rel (%p1424) target = $region60
    $region59: #{ct_forward.6} parent=5 // pred_region
      %s1427 = ssub.s32 %s14, 2
      // Predicated region
      $region61: #{ct_forward.6} parent=59 // pred_check
        %p1428 = pneg %p181
      $region62: #{ct_forward.6} parent=59 // pred_check_branch
        %1430 = sbr.rel (%p1428) target = $region64
      $region63: #{ct_forward.6} parent=59 // pred_region
        %s1431 = smul.u32 4, %s20
        %p1432 = scmp.lt.s32.totalorder %s1431, 7
        %s1433 = scalar_select %p1432, %s1431, 7
        %s1434 = smul.addr %s1433, 4
        %s1435 = scalar_lea.vmem %s6, %s1434
      $region64: #{ct_forward.6} parent=59 // pred_fallthru
        _
      // Predicated region
      $region65: #{ct_forward.6} parent=59 // pred_check
        %p1436 = pneg %p209
      $region66: #{ct_forward.6} parent=59 // pred_check_branch
        %1438 = sbr.rel (%p1436) target = $region68
      $region67: #{ct_forward.6} parent=59 // pred_region
        %s1439 = ssub.s32 1, %s20
        %s1440 = smul.u32 4, %s1439
        %p1441 = scmp.lt.s32.totalorder %s1440, 7
        %s1442 = scalar_select %p1441, %s1440, 7
        %s1443 = smul.addr %s1442, 4
        %s1444 = scalar_lea.vmem %s7, %s1443
      $region68: #{ct_forward.6} parent=59 // pred_fallthru
        _
    $region60: #{ct_forward.6} parent=5 // pred_fallthru
      _
  $region6: #{ct_forward.6} parent=0 // loop_footer
    %s18 = sadd.s32 1, %s14
  $region7: #{ct_forward.6} parent=0 // loop_footer_branch
    %13 = sbr.rel target = $region3
  $region8: #{ct_forward.6} parent=0 // loop_exit
    _

</llo_original>
